<compile_context>
chip_gen: v7x
topology: tpu7x:2x2x1
jax: 0.10.0
libtpu: 0.0.40
codegen_flags: <defaults>
</compile_context>

<pallas_src>
import functools
import math

import jax
import jax.numpy as jnp
from jax.experimental import pallas as pl
from jax.experimental.pallas import tpu as pltpu

# ---- small BERT config (shapes consistent with the module's forward) ----
VOCAB = 128
HIDDEN = 32
N_LAYERS = 2
N_HEADS = 4
HEAD_DIM = HIDDEN // N_HEADS
INTERMEDIATE = 64
MAX_POS = 16
TYPE_VOCAB = 2
NUM_LABELS = 3
LANE_PAD = 128          # lane-dense padded width for the classifier output
LN_EPS = 1e-12          # BERT default


def _layer_norm(x, g, b):
    # one-pass mean / variance: sum(x) and sum(x^2) reduces are independent.
    mean = jnp.mean(x, axis=-1, keepdims=True)
    mean_sq = jnp.mean(x * x, axis=-1, keepdims=True)
    var = mean_sq - mean * mean
    return (x - mean) * jax.lax.rsqrt(var + LN_EPS) * g + b


# --------------------------- fused Pallas kernel ---------------------------
# One grid step == one batch element. All weights are VMEM-resident full
# blocks (index_map -> 0), so they are DMA'd once and reused across steps.

def _bert_kernel(ids_ref, tt_ref, mask_ref,
                 wemb_ref, pemb_ref, temb_ref,
                 emb_ln_g_ref, emb_ln_b_ref,
                 qkv_w_ref, qkv_b_ref,
                 ao_w_ref, ao_b_ref,
                 ln1_g_ref, ln1_b_ref,
                 i_w_ref, i_b_ref,
                 o_w_ref, o_b_ref,
                 ln2_g_ref, ln2_b_ref,
                 clf_w_ref, clf_b_ref,
                 logits_ref,
                 *, seq):
    scale = 1.0 / math.sqrt(HEAD_DIM)
    inv_sqrt2 = 1.0 / math.sqrt(2.0)

    # ---------------- embeddings, fully in-kernel --------------------------
    ids = ids_ref[0]                                   # [S, 1] int32
    tt = tt_ref[0]                                     # [S, 1] int32

    # word: one-hot over the 128-entry vocab -> single [S,128]x[128,H] matmul
    vocab_iota = jax.lax.broadcasted_iota(jnp.int32, (seq, VOCAB), 1)
    onehot = (vocab_iota == ids).astype(jnp.bfloat16)  # [S, VOCAB]
    word = jnp.dot(onehot, wemb_ref[...],
                   preferred_element_type=jnp.float32)  # [S, H]
    # position: rows 0..S-1 of the table (static slice)
    pos = pemb_ref[0:seq, :].astype(jnp.float32)        # [S, H]
    # token type (0/1): arithmetic select between the two table rows
    t0 = temb_ref[0:1, :].astype(jnp.float32)           # [1, H]
    t1 = temb_ref[1:2, :].astype(jnp.float32)
    tok = t0 + tt.astype(jnp.float32) * (t1 - t0)       # [S, H]

    x = _layer_norm(word + pos + tok,
                    emb_ln_g_ref[...], emb_ln_b_ref[...])        # [S, H]

    # additive attention mask, broadcast ONCE (hoisted out of all loops)
    add_mask = (1.0 - mask_ref[0]) * -10000.0                    # [1, S]
    mask_full = jnp.broadcast_to(add_mask.reshape(1, 1, seq),
                                 (N_HEADS, seq, seq))            # [NH, S, S]

    # ---------------- transformer encoder stack, unrolled ------------------
    for layer in range(N_LAYERS):
        # fused QKV projection: one [H, 3H] matmul (bf16 weights).
        qkv = (jnp.dot(x.astype(jnp.bfloat16), qkv_w_ref[layer],
                       preferred_element_type=jnp.float32)
               + qkv_b_ref[layer])                               # [S, 3H]
        q = qkv[:, 0 * HIDDEN:1 * HIDDEN]
        k = qkv[:, 1 * HIDDEN:2 * HIDDEN]
        v = qkv[:, 2 * HIDDEN:3 * HIDDEN]

        # heads stacked on a leading batch axis -> ONE batched score matmul
        # and ONE batched PV matmul per layer (results stay in registers).
        qh = jnp.stack([q[:, h * HEAD_DIM:(h + 1) * HEAD_DIM]
                        for h in range(N_HEADS)], axis=0)        # [NH, S, dH]
        kh = jnp.stack([k[:, h * HEAD_DIM:(h + 1) * HEAD_DIM]
                        for h in range(N_HEADS)], axis=0)
        vh = jnp.stack([v[:, h * HEAD_DIM:(h + 1) * HEAD_DIM]
                        for h in range(N_HEADS)], axis=0)

        s = (jnp.einsum('hqd,hkd->hqk', qh, kh,
                        preferred_element_type=jnp.float32) * scale
             + mask_full)                                        # [NH, S, S]
        s = s - jnp.max(s, axis=-1, keepdims=True)
        p = jnp.exp(s)
        p = p / jnp.sum(p, axis=-1, keepdims=True)               # exact
        ctxh = jnp.einsum('hqk,hkd->hqd', p, vh,
                          preferred_element_type=jnp.float32)    # [NH, S, dH]
        # assemble heads in vregs (no VMEM scratch, no masked stores)
        ctx = jnp.concatenate([ctxh[h] for h in range(N_HEADS)],
                              axis=-1)                           # [S, H]

        # attention output projection + residual + LN
        attn_out = (jnp.dot(ctx.astype(jnp.bfloat16), ao_w_ref[layer],
                            preferred_element_type=jnp.float32)
                    + ao_b_ref[layer])
        x = _layer_norm(attn_out + x, ln1_g_ref[layer], ln1_b_ref[layer])

        # feed-forward (exact erf-GELU) + residual + LN
        inter = (jnp.dot(x.astype(jnp.bfloat16), i_w_ref[layer],
                         preferred_element_type=jnp.float32)
                 + i_b_ref[layer])
        inter = 0.5 * inter * (1.0 + jax.lax.erf(inter * inv_sqrt2))
        ffn = (jnp.dot(inter.astype(jnp.bfloat16), o_w_ref[layer],
                       preferred_element_type=jnp.float32)
               + o_b_ref[layer])
        x = _layer_norm(ffn + x, ln2_g_ref[layer], ln2_b_ref[layer])

    # ---- classifier on the raw [CLS] hidden state (row 0): one matmul,
    #      one lane-dense [1, 128] store ----
    cls = x[0:1, :].astype(jnp.bfloat16)                         # [1, H]
    logits_ref[0] = (jnp.dot(cls, clf_w_ref[...],
                             preferred_element_type=jnp.float32)
                     + clf_b_ref[...]).astype(logits_ref.dtype)


# ----------------------------- parameter init -----------------------------

def init_params(key):
    keys = iter(jax.random.split(key, 16))

    def dense(shape):
        w = 0.02 * jax.random.normal(next(keys), shape, jnp.float32)
        return w.astype(jnp.bfloat16)          # bf16 weights (review item)

    params = {
        "word_emb": dense((VOCAB, HIDDEN)),
        "pos_emb": dense((MAX_POS, HIDDEN)),
        "type_emb": dense((TYPE_VOCAB, HIDDEN)),
        "emb_ln_g": jnp.ones((1, HIDDEN), jnp.float32),
        "emb_ln_b": jnp.zeros((1, HIDDEN), jnp.float32),
        # per-layer weights stacked on a leading N_LAYERS axis
        "qkv_w": dense((N_LAYERS, HIDDEN, 3 * HIDDEN)),
        "qkv_b": jnp.zeros((N_LAYERS, 1, 3 * HIDDEN), jnp.float32),
        "ao_w": dense((N_LAYERS, HIDDEN, HIDDEN)),
        "ao_b": jnp.zeros((N_LAYERS, 1, HIDDEN), jnp.float32),
        "ln1_g": jnp.ones((N_LAYERS, 1, HIDDEN), jnp.float32),
        "ln1_b": jnp.zeros((N_LAYERS, 1, HIDDEN), jnp.float32),
        "i_w": dense((N_LAYERS, HIDDEN, INTERMEDIATE)),
        "i_b": jnp.zeros((N_LAYERS, 1, INTERMEDIATE), jnp.float32),
        "o_w": dense((N_LAYERS, INTERMEDIATE, HIDDEN)),
        "o_b": jnp.zeros((N_LAYERS, 1, HIDDEN), jnp.float32),
        "ln2_g": jnp.ones((N_LAYERS, 1, HIDDEN), jnp.float32),
        "ln2_b": jnp.zeros((N_LAYERS, 1, HIDDEN), jnp.float32),
    }
    # classifier: pad the output dim to 128 lanes (sliced back in wrapper)
    clf_w = 0.02 * jax.random.normal(next(keys), (HIDDEN, NUM_LABELS),
                                     jnp.float32)
    params["clf_w_pad"] = jnp.pad(
        clf_w, ((0, 0), (0, LANE_PAD - NUM_LABELS))).astype(jnp.bfloat16)
    params["clf_b_pad"] = jnp.zeros((1, LANE_PAD), jnp.float32)
    return params


# ----------------------------- model forward ------------------------------

def custom_model_forward(params, input_ids, token_type_ids=None,
                         attention_mask=None):
    b, s = input_ids.shape
    assert s <= MAX_POS
    if token_type_ids is None:
        token_type_ids = jnp.zeros_like(input_ids)
    if attention_mask is None:
        attention_mask = jnp.ones_like(input_ids)

    # kernel inputs (ids / mask reshaped so each grid step gets one batch row)
    ids3 = input_ids.astype(jnp.int32).reshape(b, s, 1)
    tt3 = token_type_ids.astype(jnp.int32).reshape(b, s, 1)
    mask3 = attention_mask.astype(jnp.float32).reshape(b, 1, s)

    weights = (params["word_emb"], params["pos_emb"], params["type_emb"],
               params["emb_ln_g"], params["emb_ln_b"],
               params["qkv_w"], params["qkv_b"],
               params["ao_w"], params["ao_b"],
               params["ln1_g"], params["ln1_b"],
               params["i_w"], params["i_b"],
               params["o_w"], params["o_b"],
               params["ln2_g"], params["ln2_b"],
               params["clf_w_pad"], params["clf_b_pad"])

    def replicated(arr):
        nd = arr.ndim
        return pl.BlockSpec(arr.shape, lambda i, _nd=nd: (0,) * _nd)

    in_specs = [
        pl.BlockSpec((1, s, 1), lambda i: (i, 0, 0)),   # input_ids
        pl.BlockSpec((1, s, 1), lambda i: (i, 0, 0)),   # token_type_ids
        pl.BlockSpec((1, 1, s), lambda i: (i, 0, 0)),   # attention_mask
    ] + [replicated(w) for w in weights]

    kernel = functools.partial(_bert_kernel, seq=s)
    logits_padded = pl.pallas_call(
        kernel,
        out_shape=jax.ShapeDtypeStruct((b, 1, LANE_PAD), jnp.float32),
        grid_spec=pltpu.PrefetchScalarGridSpec(
            num_scalar_prefetch=0,
            grid=(b,),
            in_specs=in_specs,
            out_specs=pl.BlockSpec((1, 1, LANE_PAD), lambda i: (i, 0, 0)),
        ),
        compiler_params=pltpu.CompilerParams(
            dimension_semantics=("parallel",)),   # 2nd TC on v7x
    )(ids3, tt3, mask3, *weights)

    return logits_padded.reshape(b, LANE_PAD)[:, :NUM_LABELS]


# TODO(synk): training-mode CrossEntropyLoss branch (labels is not None) omitted;
# inference path (returning logits) is implemented, dropout is eval-mode no-op.


if __name__ == "__main__":
    key = jax.random.PRNGKey(0)
    k_param, k_ids = jax.random.split(key)
    params = init_params(k_param)

    B, S = 2, 8
    input_ids = jax.random.randint(k_ids, (B, S), 0, VOCAB, dtype=jnp.int32)
    token_type_ids = jnp.zeros((B, S), jnp.int32)
    attention_mask = jnp.ones((B, S), jnp.int32)

    logits = custom_model_forward(params, input_ids, token_type_ids,
                                  attention_mask)
    logits = jax.block_until_ready(logits)
    assert logits.shape == (B, NUM_LABELS)
    assert bool(jnp.all(jnp.isfinite(logits)))
    print("KERNEL_OK")
</pallas_src>

<mosaic_0001>
module attributes {stable_mosaic.version = 11 : i64} {
  func.func @_bert_kernel(%arg0: i32, %arg1: memref<1x8x1xi32, #tpu.memory_space<vmem>>, %arg2: memref<1x8x1xi32, #tpu.memory_space<vmem>>, %arg3: memref<1x1x8xf32, #tpu.memory_space<vmem>>, %arg4: memref<128x32xbf16, #tpu.memory_space<vmem>>, %arg5: memref<16x32xbf16, #tpu.memory_space<vmem>>, %arg6: memref<2x32xbf16, #tpu.memory_space<vmem>>, %arg7: memref<1x32xf32, #tpu.memory_space<vmem>>, %arg8: memref<1x32xf32, #tpu.memory_space<vmem>>, %arg9: memref<2x32x96xbf16, #tpu.memory_space<vmem>>, %arg10: memref<2x1x96xf32, #tpu.memory_space<vmem>>, %arg11: memref<2x32x32xbf16, #tpu.memory_space<vmem>>, %arg12: memref<2x1x32xf32, #tpu.memory_space<vmem>>, %arg13: memref<2x1x32xf32, #tpu.memory_space<vmem>>, %arg14: memref<2x1x32xf32, #tpu.memory_space<vmem>>, %arg15: memref<2x32x64xbf16, #tpu.memory_space<vmem>>, %arg16: memref<2x1x64xf32, #tpu.memory_space<vmem>>, %arg17: memref<2x64x32xbf16, #tpu.memory_space<vmem>>, %arg18: memref<2x1x32xf32, #tpu.memory_space<vmem>>, %arg19: memref<2x1x32xf32, #tpu.memory_space<vmem>>, %arg20: memref<2x1x32xf32, #tpu.memory_space<vmem>>, %arg21: memref<32x128xbf16, #tpu.memory_space<vmem>>, %arg22: memref<1x128xf32, #tpu.memory_space<vmem>>, %arg23: memref<1x1x128xf32, #tpu.memory_space<vmem>>) attributes {dimension_semantics = [#tpu.dimension_semantics<parallel>], iteration_bounds = array<i64: 2>, scalar_prefetch = 0 : i64, scratch_operands = 0 : i64, tpu.core_type = #tpu.core_type<tc>, window_params = [{transform_indices = @transform_0, window_bounds = array<i64: 1, 8, 1>}, {transform_indices = @transform_1, window_bounds = array<i64: 1, 8, 1>}, {transform_indices = @transform_2, window_bounds = array<i64: 1, 1, 8>}, {pipeline_mode = #tpu.pipeline_mode<synchronous>, transform_indices = @transform_3, window_bounds = array<i64: 128, 32>}, {pipeline_mode = #tpu.pipeline_mode<synchronous>, transform_indices = @transform_4, window_bounds = array<i64: 16, 32>}, {pipeline_mode = #tpu.pipeline_mode<synchronous>, transform_indices = @transform_5, window_bounds = array<i64: 2, 32>}, {pipeline_mode = #tpu.pipeline_mode<synchronous>, transform_indices = @transform_6, window_bounds = array<i64: 1, 32>}, {pipeline_mode = #tpu.pipeline_mode<synchronous>, transform_indices = @transform_7, window_bounds = array<i64: 1, 32>}, {pipeline_mode = #tpu.pipeline_mode<synchronous>, transform_indices = @transform_8, window_bounds = array<i64: 2, 32, 96>}, {pipeline_mode = #tpu.pipeline_mode<synchronous>, transform_indices = @transform_9, window_bounds = array<i64: 2, 1, 96>}, {pipeline_mode = #tpu.pipeline_mode<synchronous>, transform_indices = @transform_10, window_bounds = array<i64: 2, 32, 32>}, {pipeline_mode = #tpu.pipeline_mode<synchronous>, transform_indices = @transform_11, window_bounds = array<i64: 2, 1, 32>}, {pipeline_mode = #tpu.pipeline_mode<synchronous>, transform_indices = @transform_12, window_bounds = array<i64: 2, 1, 32>}, {pipeline_mode = #tpu.pipeline_mode<synchronous>, transform_indices = @transform_13, window_bounds = array<i64: 2, 1, 32>}, {pipeline_mode = #tpu.pipeline_mode<synchronous>, transform_indices = @transform_14, window_bounds = array<i64: 2, 32, 64>}, {pipeline_mode = #tpu.pipeline_mode<synchronous>, transform_indices = @transform_15, window_bounds = array<i64: 2, 1, 64>}, {pipeline_mode = #tpu.pipeline_mode<synchronous>, transform_indices = @transform_16, window_bounds = array<i64: 2, 64, 32>}, {pipeline_mode = #tpu.pipeline_mode<synchronous>, transform_indices = @transform_17, window_bounds = array<i64: 2, 1, 32>}, {pipeline_mode = #tpu.pipeline_mode<synchronous>, transform_indices = @transform_18, window_bounds = array<i64: 2, 1, 32>}, {pipeline_mode = #tpu.pipeline_mode<synchronous>, transform_indices = @transform_19, window_bounds = array<i64: 2, 1, 32>}, {pipeline_mode = #tpu.pipeline_mode<synchronous>, transform_indices = @transform_20, window_bounds = array<i64: 32, 128>}, {pipeline_mode = #tpu.pipeline_mode<synchronous>, transform_indices = @transform_21, window_bounds = array<i64: 1, 128>}, {transform_indices = @transform_22, window_bounds = array<i64: 1, 1, 128>}]} {
    %c0 = arith.constant 0 : index
    %c0_0 = arith.constant 0 : index
    %c0_1 = arith.constant 0 : index
    %0 = vector.load %arg1[%c0, %c0_0, %c0_1] : memref<1x8x1xi32, #tpu.memory_space<vmem>>, vector<1x8x1xi32>
    %1 = vector.shape_cast %0 : vector<1x8x1xi32> to vector<8x1xi32>
    %c0_2 = arith.constant 0 : index
    %c0_3 = arith.constant 0 : index
    %c0_4 = arith.constant 0 : index
    %2 = vector.load %arg2[%c0_2, %c0_3, %c0_4] : memref<1x8x1xi32, #tpu.memory_space<vmem>>, vector<1x8x1xi32>
    %3 = vector.shape_cast %2 : vector<1x8x1xi32> to vector<8x1xi32>
    %4 = tpu.iota {dimensions = array<i32: 1>} : vector<8x128xi32>
    %5 = vector.broadcast %1 : vector<8x1xi32> to vector<8x128xi32>
    %6 = arith.cmpi eq, %4, %5 : vector<8x128xi32>
    %7 = arith.extui %6 : vector<8x128xi1> to vector<8x128xi32>
    %8 = arith.sitofp %7 : vector<8x128xi32> to vector<8x128xf32>
    %9 = arith.truncf %8 : vector<8x128xf32> to vector<8x128xbf16>
    %c0_5 = arith.constant 0 : index
    %c0_6 = arith.constant 0 : index
    %10 = vector.load %arg4[%c0_5, %c0_6] : memref<128x32xbf16, #tpu.memory_space<vmem>>, vector<128x32xbf16>
    %cst = arith.constant dense<0.000000e+00> : vector<8x32xf32>
    %11 = tpu.matmul %9, %10, %cst {dimension_numbers = #tpu.dot_dimension_numbers<[1], [0], [0], [1], [0, 0, 1, 1], [], []>} : vector<8x128xbf16>, vector<128x32xbf16>, vector<8x32xf32> -> vector<8x32xf32>
    %c0_7 = arith.constant 0 : index
    %c0_8 = arith.constant 0 : index
    %12 = vector.load %arg5[%c0_7, %c0_8] : memref<16x32xbf16, #tpu.memory_space<vmem>>, vector<8x32xbf16>
    %13 = arith.extf %12 : vector<8x32xbf16> to vector<8x32xf32>
    %c0_9 = arith.constant 0 : index
    %c0_10 = arith.constant 0 : index
    %14 = vector.load %arg6[%c0_9, %c0_10] : memref<2x32xbf16, #tpu.memory_space<vmem>>, vector<1x32xbf16>
    %15 = arith.extf %14 : vector<1x32xbf16> to vector<1x32xf32>
    %c1 = arith.constant 1 : index
    %c0_11 = arith.constant 0 : index
    %16 = vector.load %arg6[%c1, %c0_11] : memref<2x32xbf16, #tpu.memory_space<vmem>>, vector<1x32xbf16>
    %17 = arith.extf %16 : vector<1x32xbf16> to vector<1x32xf32>
    %18 = arith.sitofp %3 : vector<8x1xi32> to vector<8x1xf32>
    %19 = arith.subf %17, %15 : vector<1x32xf32>
    %20 = vector.broadcast %18 : vector<8x1xf32> to vector<8x32xf32>
    %21 = vector.broadcast %19 : vector<1x32xf32> to vector<8x32xf32>
    %22 = arith.mulf %20, %21 : vector<8x32xf32>
    %23 = vector.broadcast %15 : vector<1x32xf32> to vector<8x32xf32>
    %24 = arith.addf %23, %22 : vector<8x32xf32>
    %25 = arith.addf %11, %13 : vector<8x32xf32>
    %26 = arith.addf %25, %24 : vector<8x32xf32>
    %c0_12 = arith.constant 0 : index
    %c0_13 = arith.constant 0 : index
    %27 = vector.load %arg7[%c0_12, %c0_13] : memref<1x32xf32, #tpu.memory_space<vmem>>, vector<1x32xf32>
    %c0_14 = arith.constant 0 : index
    %c0_15 = arith.constant 0 : index
    %28 = vector.load %arg8[%c0_14, %c0_15] : memref<1x32xf32, #tpu.memory_space<vmem>>, vector<1x32xf32>
    %cst_16 = arith.constant dense<0.000000e+00> : vector<8xf32>
    %29 = vector.multi_reduction <add>, %26, %cst_16 [1] : vector<8x32xf32> to vector<8xf32>
    %30 = vector.shape_cast %29 : vector<8xf32> to vector<8x1xf32>
    %cst_17 = arith.constant 3.200000e+01 : f32
    %31 = vector.broadcast %cst_17 : f32 to vector<8x1xf32>
    %32 = arith.divf %30, %31 : vector<8x1xf32>
    %33 = arith.mulf %26, %26 : vector<8x32xf32>
    %cst_18 = arith.constant dense<0.000000e+00> : vector<8xf32>
    %34 = vector.multi_reduction <add>, %33, %cst_18 [1] : vector<8x32xf32> to vector<8xf32>
    %35 = vector.shape_cast %34 : vector<8xf32> to vector<8x1xf32>
    %cst_19 = arith.constant 3.200000e+01 : f32
    %36 = vector.broadcast %cst_19 : f32 to vector<8x1xf32>
    %37 = arith.divf %35, %36 : vector<8x1xf32>
    %38 = arith.mulf %32, %32 : vector<8x1xf32>
    %39 = arith.subf %37, %38 : vector<8x1xf32>
    %40 = vector.broadcast %32 : vector<8x1xf32> to vector<8x32xf32>
    %41 = arith.subf %26, %40 : vector<8x32xf32>
    %cst_20 = arith.constant 9.99999996E-13 : f32
    %42 = vector.broadcast %cst_20 : f32 to vector<8x1xf32>
    %43 = arith.addf %39, %42 : vector<8x1xf32>
    %44 = math.rsqrt %43 : vector<8x1xf32>
    %45 = vector.broadcast %44 : vector<8x1xf32> to vector<8x32xf32>
    %46 = arith.mulf %41, %45 : vector<8x32xf32>
    %47 = vector.broadcast %27 : vector<1x32xf32> to vector<8x32xf32>
    %48 = arith.mulf %46, %47 : vector<8x32xf32>
    %49 = vector.broadcast %28 : vector<1x32xf32> to vector<8x32xf32>
    %50 = arith.addf %48, %49 : vector<8x32xf32>
    %c0_21 = arith.constant 0 : index
    %c0_22 = arith.constant 0 : index
    %c0_23 = arith.constant 0 : index
    %51 = vector.load %arg3[%c0_21, %c0_22, %c0_23] : memref<1x1x8xf32, #tpu.memory_space<vmem>>, vector<1x1x8xf32>
    %52 = vector.shape_cast %51 : vector<1x1x8xf32> to vector<1x8xf32>
    %cst_24 = arith.constant 1.000000e+00 : f32
    %53 = vector.broadcast %cst_24 : f32 to vector<1x8xf32>
    %54 = arith.subf %53, %52 : vector<1x8xf32>
    %cst_25 = arith.constant -1.000000e+04 : f32
    %55 = vector.broadcast %cst_25 : f32 to vector<1x8xf32>
    %56 = arith.mulf %54, %55 : vector<1x8xf32>
    %57 = vector.shape_cast %56 : vector<1x8xf32> to vector<1x1x8xf32>
    %58 = vector.shape_cast %57 : vector<1x1x8xf32> to vector<1x1x8xf32>
    %59 = vector.broadcast %58 : vector<1x1x8xf32> to vector<4x8x8xf32>
    %60 = arith.truncf %50 : vector<8x32xf32> to vector<8x32xbf16>
    %c0_26 = arith.constant 0 : index
    %c0_27 = arith.constant 0 : index
    %c0_28 = arith.constant 0 : index
    %61 = vector.load %arg9[%c0_26, %c0_27, %c0_28] : memref<2x32x96xbf16, #tpu.memory_space<vmem>>, vector<1x32x96xbf16>
    %62 = vector.shape_cast %61 : vector<1x32x96xbf16> to vector<32x96xbf16>
    %cst_29 = arith.constant dense<0.000000e+00> : vector<8x96xf32>
    %63 = tpu.matmul %60, %62, %cst_29 {dimension_numbers = #tpu.dot_dimension_numbers<[1], [0], [0], [1], [0, 0, 1, 1], [], []>} : vector<8x32xbf16>, vector<32x96xbf16>, vector<8x96xf32> -> vector<8x96xf32>
    %c0_30 = arith.constant 0 : index
    %c0_31 = arith.constant 0 : index
    %c0_32 = arith.constant 0 : index
    %64 = vector.load %arg10[%c0_30, %c0_31, %c0_32] : memref<2x1x96xf32, #tpu.memory_space<vmem>>, vector<1x1x96xf32>
    %65 = vector.shape_cast %64 : vector<1x1x96xf32> to vector<1x96xf32>
    %66 = vector.broadcast %65 : vector<1x96xf32> to vector<8x96xf32>
    %67 = arith.addf %63, %66 : vector<8x96xf32>
    %68 = vector.extract_strided_slice %67 {offsets = [0, 0], sizes = [8, 32], strides = [1, 1]} : vector<8x96xf32> to vector<8x32xf32>
    %69 = vector.extract_strided_slice %67 {offsets = [0, 32], sizes = [8, 32], strides = [1, 1]} : vector<8x96xf32> to vector<8x32xf32>
    %70 = vector.extract_strided_slice %67 {offsets = [0, 64], sizes = [8, 32], strides = [1, 1]} : vector<8x96xf32> to vector<8x32xf32>
    %71 = vector.extract_strided_slice %68 {offsets = [0, 0], sizes = [8, 8], strides = [1, 1]} : vector<8x32xf32> to vector<8x8xf32>
    %72 = vector.extract_strided_slice %68 {offsets = [0, 8], sizes = [8, 8], strides = [1, 1]} : vector<8x32xf32> to vector<8x8xf32>
    %73 = vector.extract_strided_slice %68 {offsets = [0, 16], sizes = [8, 8], strides = [1, 1]} : vector<8x32xf32> to vector<8x8xf32>
    %74 = vector.extract_strided_slice %68 {offsets = [0, 24], sizes = [8, 8], strides = [1, 1]} : vector<8x32xf32> to vector<8x8xf32>
    %75 = vector.shape_cast %71 : vector<8x8xf32> to vector<1x8x8xf32>
    %76 = vector.shape_cast %72 : vector<8x8xf32> to vector<1x8x8xf32>
    %77 = vector.shape_cast %73 : vector<8x8xf32> to vector<1x8x8xf32>
    %78 = vector.shape_cast %74 : vector<8x8xf32> to vector<1x8x8xf32>
    %79 = tpu.concatenate %75, %76, %77, %78 in 0 : vector<1x8x8xf32>, vector<1x8x8xf32>, vector<1x8x8xf32>, vector<1x8x8xf32> -> vector<4x8x8xf32>
    %80 = vector.extract_strided_slice %69 {offsets = [0, 0], sizes = [8, 8], strides = [1, 1]} : vector<8x32xf32> to vector<8x8xf32>
    %81 = vector.extract_strided_slice %69 {offsets = [0, 8], sizes = [8, 8], strides = [1, 1]} : vector<8x32xf32> to vector<8x8xf32>
    %82 = vector.extract_strided_slice %69 {offsets = [0, 16], sizes = [8, 8], strides = [1, 1]} : vector<8x32xf32> to vector<8x8xf32>
    %83 = vector.extract_strided_slice %69 {offsets = [0, 24], sizes = [8, 8], strides = [1, 1]} : vector<8x32xf32> to vector<8x8xf32>
    %84 = vector.shape_cast %80 : vector<8x8xf32> to vector<1x8x8xf32>
    %85 = vector.shape_cast %81 : vector<8x8xf32> to vector<1x8x8xf32>
    %86 = vector.shape_cast %82 : vector<8x8xf32> to vector<1x8x8xf32>
    %87 = vector.shape_cast %83 : vector<8x8xf32> to vector<1x8x8xf32>
    %88 = tpu.concatenate %84, %85, %86, %87 in 0 : vector<1x8x8xf32>, vector<1x8x8xf32>, vector<1x8x8xf32>, vector<1x8x8xf32> -> vector<4x8x8xf32>
    %89 = vector.extract_strided_slice %70 {offsets = [0, 0], sizes = [8, 8], strides = [1, 1]} : vector<8x32xf32> to vector<8x8xf32>
    %90 = vector.extract_strided_slice %70 {offsets = [0, 8], sizes = [8, 8], strides = [1, 1]} : vector<8x32xf32> to vector<8x8xf32>
    %91 = vector.extract_strided_slice %70 {offsets = [0, 16], sizes = [8, 8], strides = [1, 1]} : vector<8x32xf32> to vector<8x8xf32>
    %92 = vector.extract_strided_slice %70 {offsets = [0, 24], sizes = [8, 8], strides = [1, 1]} : vector<8x32xf32> to vector<8x8xf32>
    %93 = vector.shape_cast %89 : vector<8x8xf32> to vector<1x8x8xf32>
    %94 = vector.shape_cast %90 : vector<8x8xf32> to vector<1x8x8xf32>
    %95 = vector.shape_cast %91 : vector<8x8xf32> to vector<1x8x8xf32>
    %96 = vector.shape_cast %92 : vector<8x8xf32> to vector<1x8x8xf32>
    %97 = tpu.concatenate %93, %94, %95, %96 in 0 : vector<1x8x8xf32>, vector<1x8x8xf32>, vector<1x8x8xf32>, vector<1x8x8xf32> -> vector<4x8x8xf32>
    "tpu.trace_start"() <{level = 10 : i32, message = "hqd,hkd->hqk"}> : () -> ()
    %cst_33 = arith.constant dense<0.000000e+00> : vector<4x8x8xf32>
    %98 = tpu.matmul %79, %88, %cst_33 {dimension_numbers = #tpu.dot_dimension_numbers<[2], [2], [1], [1], [0, 0, 0, 1, 1, 1], [0], [0]>} : vector<4x8x8xf32>, vector<4x8x8xf32>, vector<4x8x8xf32> -> vector<4x8x8xf32>
    "tpu.trace_stop"() : () -> ()
    %cst_34 = arith.constant 0.353553385 : f32
    %99 = vector.broadcast %cst_34 : f32 to vector<4x8x8xf32>
    %100 = arith.mulf %98, %99 : vector<4x8x8xf32>
    %101 = arith.addf %100, %59 : vector<4x8x8xf32>
    %cst_35 = arith.constant dense<0xFF800000> : vector<4x8xf32>
    %102 = vector.multi_reduction <maximumf>, %101, %cst_35 [2] : vector<4x8x8xf32> to vector<4x8xf32>
    %103 = vector.shape_cast %102 : vector<4x8xf32> to vector<4x8x1xf32>
    %104 = vector.broadcast %103 : vector<4x8x1xf32> to vector<4x8x8xf32>
    %105 = arith.subf %101, %104 : vector<4x8x8xf32>
    %106 = math.exp %105 : vector<4x8x8xf32>
    %cst_36 = arith.constant dense<0.000000e+00> : vector<4x8xf32>
    %107 = vector.multi_reduction <add>, %106, %cst_36 [2] : vector<4x8x8xf32> to vector<4x8xf32>
    %108 = vector.shape_cast %107 : vector<4x8xf32> to vector<4x8x1xf32>
    %109 = vector.broadcast %108 : vector<4x8x1xf32> to vector<4x8x8xf32>
    %110 = arith.divf %106, %109 : vector<4x8x8xf32>
    "tpu.trace_start"() <{level = 10 : i32, message = "hqk,hkd->hqd"}> : () -> ()
    %cst_37 = arith.constant dense<0.000000e+00> : vector<4x8x8xf32>
    %111 = tpu.matmul %110, %97, %cst_37 {dimension_numbers = #tpu.dot_dimension_numbers<[2], [1], [1], [2], [0, 0, 0, 1, 1, 2], [0], [0]>} : vector<4x8x8xf32>, vector<4x8x8xf32>, vector<4x8x8xf32> -> vector<4x8x8xf32>
    "tpu.trace_stop"() : () -> ()
    %112 = vector.extract_strided_slice %111 {offsets = [0, 0, 0], sizes = [1, 8, 8], strides = [1, 1, 1]} : vector<4x8x8xf32> to vector<1x8x8xf32>
    %113 = vector.shape_cast %112 : vector<1x8x8xf32> to vector<8x8xf32>
    %114 = vector.extract_strided_slice %111 {offsets = [1, 0, 0], sizes = [1, 8, 8], strides = [1, 1, 1]} : vector<4x8x8xf32> to vector<1x8x8xf32>
    %115 = vector.shape_cast %114 : vector<1x8x8xf32> to vector<8x8xf32>
    %116 = vector.extract_strided_slice %111 {offsets = [2, 0, 0], sizes = [1, 8, 8], strides = [1, 1, 1]} : vector<4x8x8xf32> to vector<1x8x8xf32>
    %117 = vector.shape_cast %116 : vector<1x8x8xf32> to vector<8x8xf32>
    %118 = vector.extract_strided_slice %111 {offsets = [3, 0, 0], sizes = [1, 8, 8], strides = [1, 1, 1]} : vector<4x8x8xf32> to vector<1x8x8xf32>
    %119 = vector.shape_cast %118 : vector<1x8x8xf32> to vector<8x8xf32>
    %120 = tpu.concatenate %113, %115, %117, %119 in 1 : vector<8x8xf32>, vector<8x8xf32>, vector<8x8xf32>, vector<8x8xf32> -> vector<8x32xf32>
    %121 = arith.truncf %120 : vector<8x32xf32> to vector<8x32xbf16>
    %c0_38 = arith.constant 0 : index
    %c0_39 = arith.constant 0 : index
    %c0_40 = arith.constant 0 : index
    %122 = vector.load %arg11[%c0_38, %c0_39, %c0_40] : memref<2x32x32xbf16, #tpu.memory_space<vmem>>, vector<1x32x32xbf16>
    %123 = vector.shape_cast %122 : vector<1x32x32xbf16> to vector<32x32xbf16>
    %cst_41 = arith.constant dense<0.000000e+00> : vector<8x32xf32>
    %124 = tpu.matmul %121, %123, %cst_41 {dimension_numbers = #tpu.dot_dimension_numbers<[1], [0], [0], [1], [0, 0, 1, 1], [], []>} : vector<8x32xbf16>, vector<32x32xbf16>, vector<8x32xf32> -> vector<8x32xf32>
    %c0_42 = arith.constant 0 : index
    %c0_43 = arith.constant 0 : index
    %c0_44 = arith.constant 0 : index
    %125 = vector.load %arg12[%c0_42, %c0_43, %c0_44] : memref<2x1x32xf32, #tpu.memory_space<vmem>>, vector<1x1x32xf32>
    %126 = vector.shape_cast %125 : vector<1x1x32xf32> to vector<1x32xf32>
    %127 = vector.broadcast %126 : vector<1x32xf32> to vector<8x32xf32>
    %128 = arith.addf %124, %127 : vector<8x32xf32>
    %129 = arith.addf %128, %50 : vector<8x32xf32>
    %c0_45 = arith.constant 0 : index
    %c0_46 = arith.constant 0 : index
    %c0_47 = arith.constant 0 : index
    %130 = vector.load %arg13[%c0_45, %c0_46, %c0_47] : memref<2x1x32xf32, #tpu.memory_space<vmem>>, vector<1x1x32xf32>
    %131 = vector.shape_cast %130 : vector<1x1x32xf32> to vector<1x32xf32>
    %c0_48 = arith.constant 0 : index
    %c0_49 = arith.constant 0 : index
    %c0_50 = arith.constant 0 : index
    %132 = vector.load %arg14[%c0_48, %c0_49, %c0_50] : memref<2x1x32xf32, #tpu.memory_space<vmem>>, vector<1x1x32xf32>
    %133 = vector.shape_cast %132 : vector<1x1x32xf32> to vector<1x32xf32>
    %cst_51 = arith.constant dense<0.000000e+00> : vector<8xf32>
    %134 = vector.multi_reduction <add>, %129, %cst_51 [1] : vector<8x32xf32> to vector<8xf32>
    %135 = vector.shape_cast %134 : vector<8xf32> to vector<8x1xf32>
    %cst_52 = arith.constant 3.200000e+01 : f32
    %136 = vector.broadcast %cst_52 : f32 to vector<8x1xf32>
    %137 = arith.divf %135, %136 : vector<8x1xf32>
    %138 = arith.mulf %129, %129 : vector<8x32xf32>
    %cst_53 = arith.constant dense<0.000000e+00> : vector<8xf32>
    %139 = vector.multi_reduction <add>, %138, %cst_53 [1] : vector<8x32xf32> to vector<8xf32>
    %140 = vector.shape_cast %139 : vector<8xf32> to vector<8x1xf32>
    %cst_54 = arith.constant 3.200000e+01 : f32
    %141 = vector.broadcast %cst_54 : f32 to vector<8x1xf32>
    %142 = arith.divf %140, %141 : vector<8x1xf32>
    %143 = arith.mulf %137, %137 : vector<8x1xf32>
    %144 = arith.subf %142, %143 : vector<8x1xf32>
    %145 = vector.broadcast %137 : vector<8x1xf32> to vector<8x32xf32>
    %146 = arith.subf %129, %145 : vector<8x32xf32>
    %cst_55 = arith.constant 9.99999996E-13 : f32
    %147 = vector.broadcast %cst_55 : f32 to vector<8x1xf32>
    %148 = arith.addf %144, %147 : vector<8x1xf32>
    %149 = math.rsqrt %148 : vector<8x1xf32>
    %150 = vector.broadcast %149 : vector<8x1xf32> to vector<8x32xf32>
    %151 = arith.mulf %146, %150 : vector<8x32xf32>
    %152 = vector.broadcast %131 : vector<1x32xf32> to vector<8x32xf32>
    %153 = arith.mulf %151, %152 : vector<8x32xf32>
    %154 = vector.broadcast %133 : vector<1x32xf32> to vector<8x32xf32>
    %155 = arith.addf %153, %154 : vector<8x32xf32>
    %156 = arith.truncf %155 : vector<8x32xf32> to vector<8x32xbf16>
    %c0_56 = arith.constant 0 : index
    %c0_57 = arith.constant 0 : index
    %c0_58 = arith.constant 0 : index
    %157 = vector.load %arg15[%c0_56, %c0_57, %c0_58] : memref<2x32x64xbf16, #tpu.memory_space<vmem>>, vector<1x32x64xbf16>
    %158 = vector.shape_cast %157 : vector<1x32x64xbf16> to vector<32x64xbf16>
    %cst_59 = arith.constant dense<0.000000e+00> : vector<8x64xf32>
    %159 = tpu.matmul %156, %158, %cst_59 {dimension_numbers = #tpu.dot_dimension_numbers<[1], [0], [0], [1], [0, 0, 1, 1], [], []>} : vector<8x32xbf16>, vector<32x64xbf16>, vector<8x64xf32> -> vector<8x64xf32>
    %c0_60 = arith.constant 0 : index
    %c0_61 = arith.constant 0 : index
    %c0_62 = arith.constant 0 : index
    %160 = vector.load %arg16[%c0_60, %c0_61, %c0_62] : memref<2x1x64xf32, #tpu.memory_space<vmem>>, vector<1x1x64xf32>
    %161 = vector.shape_cast %160 : vector<1x1x64xf32> to vector<1x64xf32>
    %162 = vector.broadcast %161 : vector<1x64xf32> to vector<8x64xf32>
    %163 = arith.addf %159, %162 : vector<8x64xf32>
    %cst_63 = arith.constant 5.000000e-01 : f32
    %164 = vector.broadcast %cst_63 : f32 to vector<8x64xf32>
    %165 = arith.mulf %164, %163 : vector<8x64xf32>
    %cst_64 = arith.constant 0.707106769 : f32
    %166 = vector.broadcast %cst_64 : f32 to vector<8x64xf32>
    %167 = arith.mulf %163, %166 : vector<8x64xf32>
    %168 = math.erf %167 : vector<8x64xf32>
    %cst_65 = arith.constant 1.000000e+00 : f32
    %169 = vector.broadcast %cst_65 : f32 to vector<8x64xf32>
    %170 = arith.addf %169, %168 : vector<8x64xf32>
    %171 = arith.mulf %165, %170 : vector<8x64xf32>
    %172 = arith.truncf %171 : vector<8x64xf32> to vector<8x64xbf16>
    %c0_66 = arith.constant 0 : index
    %c0_67 = arith.constant 0 : index
    %c0_68 = arith.constant 0 : index
    %173 = vector.load %arg17[%c0_66, %c0_67, %c0_68] : memref<2x64x32xbf16, #tpu.memory_space<vmem>>, vector<1x64x32xbf16>
    %174 = vector.shape_cast %173 : vector<1x64x32xbf16> to vector<64x32xbf16>
    %cst_69 = arith.constant dense<0.000000e+00> : vector<8x32xf32>
    %175 = tpu.matmul %172, %174, %cst_69 {dimension_numbers = #tpu.dot_dimension_numbers<[1], [0], [0], [1], [0, 0, 1, 1], [], []>} : vector<8x64xbf16>, vector<64x32xbf16>, vector<8x32xf32> -> vector<8x32xf32>
    %c0_70 = arith.constant 0 : index
    %c0_71 = arith.constant 0 : index
    %c0_72 = arith.constant 0 : index
    %176 = vector.load %arg18[%c0_70, %c0_71, %c0_72] : memref<2x1x32xf32, #tpu.memory_space<vmem>>, vector<1x1x32xf32>
    %177 = vector.shape_cast %176 : vector<1x1x32xf32> to vector<1x32xf32>
    %178 = vector.broadcast %177 : vector<1x32xf32> to vector<8x32xf32>
    %179 = arith.addf %175, %178 : vector<8x32xf32>
    %180 = arith.addf %179, %155 : vector<8x32xf32>
    %c0_73 = arith.constant 0 : index
    %c0_74 = arith.constant 0 : index
    %c0_75 = arith.constant 0 : index
    %181 = vector.load %arg19[%c0_73, %c0_74, %c0_75] : memref<2x1x32xf32, #tpu.memory_space<vmem>>, vector<1x1x32xf32>
    %182 = vector.shape_cast %181 : vector<1x1x32xf32> to vector<1x32xf32>
    %c0_76 = arith.constant 0 : index
    %c0_77 = arith.constant 0 : index
    %c0_78 = arith.constant 0 : index
    %183 = vector.load %arg20[%c0_76, %c0_77, %c0_78] : memref<2x1x32xf32, #tpu.memory_space<vmem>>, vector<1x1x32xf32>
    %184 = vector.shape_cast %183 : vector<1x1x32xf32> to vector<1x32xf32>
    %cst_79 = arith.constant dense<0.000000e+00> : vector<8xf32>
    %185 = vector.multi_reduction <add>, %180, %cst_79 [1] : vector<8x32xf32> to vector<8xf32>
    %186 = vector.shape_cast %185 : vector<8xf32> to vector<8x1xf32>
    %cst_80 = arith.constant 3.200000e+01 : f32
    %187 = vector.broadcast %cst_80 : f32 to vector<8x1xf32>
    %188 = arith.divf %186, %187 : vector<8x1xf32>
    %189 = arith.mulf %180, %180 : vector<8x32xf32>
    %cst_81 = arith.constant dense<0.000000e+00> : vector<8xf32>
    %190 = vector.multi_reduction <add>, %189, %cst_81 [1] : vector<8x32xf32> to vector<8xf32>
    %191 = vector.shape_cast %190 : vector<8xf32> to vector<8x1xf32>
    %cst_82 = arith.constant 3.200000e+01 : f32
    %192 = vector.broadcast %cst_82 : f32 to vector<8x1xf32>
    %193 = arith.divf %191, %192 : vector<8x1xf32>
    %194 = arith.mulf %188, %188 : vector<8x1xf32>
    %195 = arith.subf %193, %194 : vector<8x1xf32>
    %196 = vector.broadcast %188 : vector<8x1xf32> to vector<8x32xf32>
    %197 = arith.subf %180, %196 : vector<8x32xf32>
    %cst_83 = arith.constant 9.99999996E-13 : f32
    %198 = vector.broadcast %cst_83 : f32 to vector<8x1xf32>
    %199 = arith.addf %195, %198 : vector<8x1xf32>
    %200 = math.rsqrt %199 : vector<8x1xf32>
    %201 = vector.broadcast %200 : vector<8x1xf32> to vector<8x32xf32>
    %202 = arith.mulf %197, %201 : vector<8x32xf32>
    %203 = vector.broadcast %182 : vector<1x32xf32> to vector<8x32xf32>
    %204 = arith.mulf %202, %203 : vector<8x32xf32>
    %205 = vector.broadcast %184 : vector<1x32xf32> to vector<8x32xf32>
    %206 = arith.addf %204, %205 : vector<8x32xf32>
    %207 = arith.truncf %206 : vector<8x32xf32> to vector<8x32xbf16>
    %c1_84 = arith.constant 1 : index
    %c0_85 = arith.constant 0 : index
    %c0_86 = arith.constant 0 : index
    %208 = vector.load %arg9[%c1_84, %c0_85, %c0_86] : memref<2x32x96xbf16, #tpu.memory_space<vmem>>, vector<1x32x96xbf16>
    %209 = vector.shape_cast %208 : vector<1x32x96xbf16> to vector<32x96xbf16>
    %cst_87 = arith.constant dense<0.000000e+00> : vector<8x96xf32>
    %210 = tpu.matmul %207, %209, %cst_87 {dimension_numbers = #tpu.dot_dimension_numbers<[1], [0], [0], [1], [0, 0, 1, 1], [], []>} : vector<8x32xbf16>, vector<32x96xbf16>, vector<8x96xf32> -> vector<8x96xf32>
    %c1_88 = arith.constant 1 : index
    %c0_89 = arith.constant 0 : index
    %c0_90 = arith.constant 0 : index
    %211 = vector.load %arg10[%c1_88, %c0_89, %c0_90] : memref<2x1x96xf32, #tpu.memory_space<vmem>>, vector<1x1x96xf32>
    %212 = vector.shape_cast %211 : vector<1x1x96xf32> to vector<1x96xf32>
    %213 = vector.broadcast %212 : vector<1x96xf32> to vector<8x96xf32>
    %214 = arith.addf %210, %213 : vector<8x96xf32>
    %215 = vector.extract_strided_slice %214 {offsets = [0, 0], sizes = [8, 32], strides = [1, 1]} : vector<8x96xf32> to vector<8x32xf32>
    %216 = vector.extract_strided_slice %214 {offsets = [0, 32], sizes = [8, 32], strides = [1, 1]} : vector<8x96xf32> to vector<8x32xf32>
    %217 = vector.extract_strided_slice %214 {offsets = [0, 64], sizes = [8, 32], strides = [1, 1]} : vector<8x96xf32> to vector<8x32xf32>
    %218 = vector.extract_strided_slice %215 {offsets = [0, 0], sizes = [8, 8], strides = [1, 1]} : vector<8x32xf32> to vector<8x8xf32>
    %219 = vector.extract_strided_slice %215 {offsets = [0, 8], sizes = [8, 8], strides = [1, 1]} : vector<8x32xf32> to vector<8x8xf32>
    %220 = vector.extract_strided_slice %215 {offsets = [0, 16], sizes = [8, 8], strides = [1, 1]} : vector<8x32xf32> to vector<8x8xf32>
    %221 = vector.extract_strided_slice %215 {offsets = [0, 24], sizes = [8, 8], strides = [1, 1]} : vector<8x32xf32> to vector<8x8xf32>
    %222 = vector.shape_cast %218 : vector<8x8xf32> to vector<1x8x8xf32>
    %223 = vector.shape_cast %219 : vector<8x8xf32> to vector<1x8x8xf32>
    %224 = vector.shape_cast %220 : vector<8x8xf32> to vector<1x8x8xf32>
    %225 = vector.shape_cast %221 : vector<8x8xf32> to vector<1x8x8xf32>
    %226 = tpu.concatenate %222, %223, %224, %225 in 0 : vector<1x8x8xf32>, vector<1x8x8xf32>, vector<1x8x8xf32>, vector<1x8x8xf32> -> vector<4x8x8xf32>
    %227 = vector.extract_strided_slice %216 {offsets = [0, 0], sizes = [8, 8], strides = [1, 1]} : vector<8x32xf32> to vector<8x8xf32>
    %228 = vector.extract_strided_slice %216 {offsets = [0, 8], sizes = [8, 8], strides = [1, 1]} : vector<8x32xf32> to vector<8x8xf32>
    %229 = vector.extract_strided_slice %216 {offsets = [0, 16], sizes = [8, 8], strides = [1, 1]} : vector<8x32xf32> to vector<8x8xf32>
    %230 = vector.extract_strided_slice %216 {offsets = [0, 24], sizes = [8, 8], strides = [1, 1]} : vector<8x32xf32> to vector<8x8xf32>
    %231 = vector.shape_cast %227 : vector<8x8xf32> to vector<1x8x8xf32>
    %232 = vector.shape_cast %228 : vector<8x8xf32> to vector<1x8x8xf32>
    %233 = vector.shape_cast %229 : vector<8x8xf32> to vector<1x8x8xf32>
    %234 = vector.shape_cast %230 : vector<8x8xf32> to vector<1x8x8xf32>
    %235 = tpu.concatenate %231, %232, %233, %234 in 0 : vector<1x8x8xf32>, vector<1x8x8xf32>, vector<1x8x8xf32>, vector<1x8x8xf32> -> vector<4x8x8xf32>
    %236 = vector.extract_strided_slice %217 {offsets = [0, 0], sizes = [8, 8], strides = [1, 1]} : vector<8x32xf32> to vector<8x8xf32>
    %237 = vector.extract_strided_slice %217 {offsets = [0, 8], sizes = [8, 8], strides = [1, 1]} : vector<8x32xf32> to vector<8x8xf32>
    %238 = vector.extract_strided_slice %217 {offsets = [0, 16], sizes = [8, 8], strides = [1, 1]} : vector<8x32xf32> to vector<8x8xf32>
    %239 = vector.extract_strided_slice %217 {offsets = [0, 24], sizes = [8, 8], strides = [1, 1]} : vector<8x32xf32> to vector<8x8xf32>
    %240 = vector.shape_cast %236 : vector<8x8xf32> to vector<1x8x8xf32>
    %241 = vector.shape_cast %237 : vector<8x8xf32> to vector<1x8x8xf32>
    %242 = vector.shape_cast %238 : vector<8x8xf32> to vector<1x8x8xf32>
    %243 = vector.shape_cast %239 : vector<8x8xf32> to vector<1x8x8xf32>
    %244 = tpu.concatenate %240, %241, %242, %243 in 0 : vector<1x8x8xf32>, vector<1x8x8xf32>, vector<1x8x8xf32>, vector<1x8x8xf32> -> vector<4x8x8xf32>
    "tpu.trace_start"() <{level = 10 : i32, message = "hqd,hkd->hqk"}> : () -> ()
    %cst_91 = arith.constant dense<0.000000e+00> : vector<4x8x8xf32>
    %245 = tpu.matmul %226, %235, %cst_91 {dimension_numbers = #tpu.dot_dimension_numbers<[2], [2], [1], [1], [0, 0, 0, 1, 1, 1], [0], [0]>} : vector<4x8x8xf32>, vector<4x8x8xf32>, vector<4x8x8xf32> -> vector<4x8x8xf32>
    "tpu.trace_stop"() : () -> ()
    %cst_92 = arith.constant 0.353553385 : f32
    %246 = vector.broadcast %cst_92 : f32 to vector<4x8x8xf32>
    %247 = arith.mulf %245, %246 : vector<4x8x8xf32>
    %248 = arith.addf %247, %59 : vector<4x8x8xf32>
    %cst_93 = arith.constant dense<0xFF800000> : vector<4x8xf32>
    %249 = vector.multi_reduction <maximumf>, %248, %cst_93 [2] : vector<4x8x8xf32> to vector<4x8xf32>
    %250 = vector.shape_cast %249 : vector<4x8xf32> to vector<4x8x1xf32>
    %251 = vector.broadcast %250 : vector<4x8x1xf32> to vector<4x8x8xf32>
    %252 = arith.subf %248, %251 : vector<4x8x8xf32>
    %253 = math.exp %252 : vector<4x8x8xf32>
    %cst_94 = arith.constant dense<0.000000e+00> : vector<4x8xf32>
    %254 = vector.multi_reduction <add>, %253, %cst_94 [2] : vector<4x8x8xf32> to vector<4x8xf32>
    %255 = vector.shape_cast %254 : vector<4x8xf32> to vector<4x8x1xf32>
    %256 = vector.broadcast %255 : vector<4x8x1xf32> to vector<4x8x8xf32>
    %257 = arith.divf %253, %256 : vector<4x8x8xf32>
    "tpu.trace_start"() <{level = 10 : i32, message = "hqk,hkd->hqd"}> : () -> ()
    %cst_95 = arith.constant dense<0.000000e+00> : vector<4x8x8xf32>
    %258 = tpu.matmul %257, %244, %cst_95 {dimension_numbers = #tpu.dot_dimension_numbers<[2], [1], [1], [2], [0, 0, 0, 1, 1, 2], [0], [0]>} : vector<4x8x8xf32>, vector<4x8x8xf32>, vector<4x8x8xf32> -> vector<4x8x8xf32>
    "tpu.trace_stop"() : () -> ()
    %259 = vector.extract_strided_slice %258 {offsets = [0, 0, 0], sizes = [1, 8, 8], strides = [1, 1, 1]} : vector<4x8x8xf32> to vector<1x8x8xf32>
    %260 = vector.shape_cast %259 : vector<1x8x8xf32> to vector<8x8xf32>
    %261 = vector.extract_strided_slice %258 {offsets = [1, 0, 0], sizes = [1, 8, 8], strides = [1, 1, 1]} : vector<4x8x8xf32> to vector<1x8x8xf32>
    %262 = vector.shape_cast %261 : vector<1x8x8xf32> to vector<8x8xf32>
    %263 = vector.extract_strided_slice %258 {offsets = [2, 0, 0], sizes = [1, 8, 8], strides = [1, 1, 1]} : vector<4x8x8xf32> to vector<1x8x8xf32>
    %264 = vector.shape_cast %263 : vector<1x8x8xf32> to vector<8x8xf32>
    %265 = vector.extract_strided_slice %258 {offsets = [3, 0, 0], sizes = [1, 8, 8], strides = [1, 1, 1]} : vector<4x8x8xf32> to vector<1x8x8xf32>
    %266 = vector.shape_cast %265 : vector<1x8x8xf32> to vector<8x8xf32>
    %267 = tpu.concatenate %260, %262, %264, %266 in 1 : vector<8x8xf32>, vector<8x8xf32>, vector<8x8xf32>, vector<8x8xf32> -> vector<8x32xf32>
    %268 = arith.truncf %267 : vector<8x32xf32> to vector<8x32xbf16>
    %c1_96 = arith.constant 1 : index
    %c0_97 = arith.constant 0 : index
    %c0_98 = arith.constant 0 : index
    %269 = vector.load %arg11[%c1_96, %c0_97, %c0_98] : memref<2x32x32xbf16, #tpu.memory_space<vmem>>, vector<1x32x32xbf16>
    %270 = vector.shape_cast %269 : vector<1x32x32xbf16> to vector<32x32xbf16>
    %cst_99 = arith.constant dense<0.000000e+00> : vector<8x32xf32>
    %271 = tpu.matmul %268, %270, %cst_99 {dimension_numbers = #tpu.dot_dimension_numbers<[1], [0], [0], [1], [0, 0, 1, 1], [], []>} : vector<8x32xbf16>, vector<32x32xbf16>, vector<8x32xf32> -> vector<8x32xf32>
    %c1_100 = arith.constant 1 : index
    %c0_101 = arith.constant 0 : index
    %c0_102 = arith.constant 0 : index
    %272 = vector.load %arg12[%c1_100, %c0_101, %c0_102] : memref<2x1x32xf32, #tpu.memory_space<vmem>>, vector<1x1x32xf32>
    %273 = vector.shape_cast %272 : vector<1x1x32xf32> to vector<1x32xf32>
    %274 = vector.broadcast %273 : vector<1x32xf32> to vector<8x32xf32>
    %275 = arith.addf %271, %274 : vector<8x32xf32>
    %276 = arith.addf %275, %206 : vector<8x32xf32>
    %c1_103 = arith.constant 1 : index
    %c0_104 = arith.constant 0 : index
    %c0_105 = arith.constant 0 : index
    %277 = vector.load %arg13[%c1_103, %c0_104, %c0_105] : memref<2x1x32xf32, #tpu.memory_space<vmem>>, vector<1x1x32xf32>
    %278 = vector.shape_cast %277 : vector<1x1x32xf32> to vector<1x32xf32>
    %c1_106 = arith.constant 1 : index
    %c0_107 = arith.constant 0 : index
    %c0_108 = arith.constant 0 : index
    %279 = vector.load %arg14[%c1_106, %c0_107, %c0_108] : memref<2x1x32xf32, #tpu.memory_space<vmem>>, vector<1x1x32xf32>
    %280 = vector.shape_cast %279 : vector<1x1x32xf32> to vector<1x32xf32>
    %cst_109 = arith.constant dense<0.000000e+00> : vector<8xf32>
    %281 = vector.multi_reduction <add>, %276, %cst_109 [1] : vector<8x32xf32> to vector<8xf32>
    %282 = vector.shape_cast %281 : vector<8xf32> to vector<8x1xf32>
    %cst_110 = arith.constant 3.200000e+01 : f32
    %283 = vector.broadcast %cst_110 : f32 to vector<8x1xf32>
    %284 = arith.divf %282, %283 : vector<8x1xf32>
    %285 = arith.mulf %276, %276 : vector<8x32xf32>
    %cst_111 = arith.constant dense<0.000000e+00> : vector<8xf32>
    %286 = vector.multi_reduction <add>, %285, %cst_111 [1] : vector<8x32xf32> to vector<8xf32>
    %287 = vector.shape_cast %286 : vector<8xf32> to vector<8x1xf32>
    %cst_112 = arith.constant 3.200000e+01 : f32
    %288 = vector.broadcast %cst_112 : f32 to vector<8x1xf32>
    %289 = arith.divf %287, %288 : vector<8x1xf32>
    %290 = arith.mulf %284, %284 : vector<8x1xf32>
    %291 = arith.subf %289, %290 : vector<8x1xf32>
    %292 = vector.broadcast %284 : vector<8x1xf32> to vector<8x32xf32>
    %293 = arith.subf %276, %292 : vector<8x32xf32>
    %cst_113 = arith.constant 9.99999996E-13 : f32
    %294 = vector.broadcast %cst_113 : f32 to vector<8x1xf32>
    %295 = arith.addf %291, %294 : vector<8x1xf32>
    %296 = math.rsqrt %295 : vector<8x1xf32>
    %297 = vector.broadcast %296 : vector<8x1xf32> to vector<8x32xf32>
    %298 = arith.mulf %293, %297 : vector<8x32xf32>
    %299 = vector.broadcast %278 : vector<1x32xf32> to vector<8x32xf32>
    %300 = arith.mulf %298, %299 : vector<8x32xf32>
    %301 = vector.broadcast %280 : vector<1x32xf32> to vector<8x32xf32>
    %302 = arith.addf %300, %301 : vector<8x32xf32>
    %303 = arith.truncf %302 : vector<8x32xf32> to vector<8x32xbf16>
    %c1_114 = arith.constant 1 : index
    %c0_115 = arith.constant 0 : index
    %c0_116 = arith.constant 0 : index
    %304 = vector.load %arg15[%c1_114, %c0_115, %c0_116] : memref<2x32x64xbf16, #tpu.memory_space<vmem>>, vector<1x32x64xbf16>
    %305 = vector.shape_cast %304 : vector<1x32x64xbf16> to vector<32x64xbf16>
    %cst_117 = arith.constant dense<0.000000e+00> : vector<8x64xf32>
    %306 = tpu.matmul %303, %305, %cst_117 {dimension_numbers = #tpu.dot_dimension_numbers<[1], [0], [0], [1], [0, 0, 1, 1], [], []>} : vector<8x32xbf16>, vector<32x64xbf16>, vector<8x64xf32> -> vector<8x64xf32>
    %c1_118 = arith.constant 1 : index
    %c0_119 = arith.constant 0 : index
    %c0_120 = arith.constant 0 : index
    %307 = vector.load %arg16[%c1_118, %c0_119, %c0_120] : memref<2x1x64xf32, #tpu.memory_space<vmem>>, vector<1x1x64xf32>
    %308 = vector.shape_cast %307 : vector<1x1x64xf32> to vector<1x64xf32>
    %309 = vector.broadcast %308 : vector<1x64xf32> to vector<8x64xf32>
    %310 = arith.addf %306, %309 : vector<8x64xf32>
    %cst_121 = arith.constant 5.000000e-01 : f32
    %311 = vector.broadcast %cst_121 : f32 to vector<8x64xf32>
    %312 = arith.mulf %311, %310 : vector<8x64xf32>
    %cst_122 = arith.constant 0.707106769 : f32
    %313 = vector.broadcast %cst_122 : f32 to vector<8x64xf32>
    %314 = arith.mulf %310, %313 : vector<8x64xf32>
    %315 = math.erf %314 : vector<8x64xf32>
    %cst_123 = arith.constant 1.000000e+00 : f32
    %316 = vector.broadcast %cst_123 : f32 to vector<8x64xf32>
    %317 = arith.addf %316, %315 : vector<8x64xf32>
    %318 = arith.mulf %312, %317 : vector<8x64xf32>
    %319 = arith.truncf %318 : vector<8x64xf32> to vector<8x64xbf16>
    %c1_124 = arith.constant 1 : index
    %c0_125 = arith.constant 0 : index
    %c0_126 = arith.constant 0 : index
    %320 = vector.load %arg17[%c1_124, %c0_125, %c0_126] : memref<2x64x32xbf16, #tpu.memory_space<vmem>>, vector<1x64x32xbf16>
    %321 = vector.shape_cast %320 : vector<1x64x32xbf16> to vector<64x32xbf16>
    %cst_127 = arith.constant dense<0.000000e+00> : vector<8x32xf32>
    %322 = tpu.matmul %319, %321, %cst_127 {dimension_numbers = #tpu.dot_dimension_numbers<[1], [0], [0], [1], [0, 0, 1, 1], [], []>} : vector<8x64xbf16>, vector<64x32xbf16>, vector<8x32xf32> -> vector<8x32xf32>
    %c1_128 = arith.constant 1 : index
    %c0_129 = arith.constant 0 : index
    %c0_130 = arith.constant 0 : index
    %323 = vector.load %arg18[%c1_128, %c0_129, %c0_130] : memref<2x1x32xf32, #tpu.memory_space<vmem>>, vector<1x1x32xf32>
    %324 = vector.shape_cast %323 : vector<1x1x32xf32> to vector<1x32xf32>
    %325 = vector.broadcast %324 : vector<1x32xf32> to vector<8x32xf32>
    %326 = arith.addf %322, %325 : vector<8x32xf32>
    %327 = arith.addf %326, %302 : vector<8x32xf32>
    %c1_131 = arith.constant 1 : index
    %c0_132 = arith.constant 0 : index
    %c0_133 = arith.constant 0 : index
    %328 = vector.load %arg19[%c1_131, %c0_132, %c0_133] : memref<2x1x32xf32, #tpu.memory_space<vmem>>, vector<1x1x32xf32>
    %329 = vector.shape_cast %328 : vector<1x1x32xf32> to vector<1x32xf32>
    %c1_134 = arith.constant 1 : index
    %c0_135 = arith.constant 0 : index
    %c0_136 = arith.constant 0 : index
    %330 = vector.load %arg20[%c1_134, %c0_135, %c0_136] : memref<2x1x32xf32, #tpu.memory_space<vmem>>, vector<1x1x32xf32>
    %331 = vector.shape_cast %330 : vector<1x1x32xf32> to vector<1x32xf32>
    %cst_137 = arith.constant dense<0.000000e+00> : vector<8xf32>
    %332 = vector.multi_reduction <add>, %327, %cst_137 [1] : vector<8x32xf32> to vector<8xf32>
    %333 = vector.shape_cast %332 : vector<8xf32> to vector<8x1xf32>
    %cst_138 = arith.constant 3.200000e+01 : f32
    %334 = vector.broadcast %cst_138 : f32 to vector<8x1xf32>
    %335 = arith.divf %333, %334 : vector<8x1xf32>
    %336 = arith.mulf %327, %327 : vector<8x32xf32>
    %cst_139 = arith.constant dense<0.000000e+00> : vector<8xf32>
    %337 = vector.multi_reduction <add>, %336, %cst_139 [1] : vector<8x32xf32> to vector<8xf32>
    %338 = vector.shape_cast %337 : vector<8xf32> to vector<8x1xf32>
    %cst_140 = arith.constant 3.200000e+01 : f32
    %339 = vector.broadcast %cst_140 : f32 to vector<8x1xf32>
    %340 = arith.divf %338, %339 : vector<8x1xf32>
    %341 = arith.mulf %335, %335 : vector<8x1xf32>
    %342 = arith.subf %340, %341 : vector<8x1xf32>
    %343 = vector.broadcast %335 : vector<8x1xf32> to vector<8x32xf32>
    %344 = arith.subf %327, %343 : vector<8x32xf32>
    %cst_141 = arith.constant 9.99999996E-13 : f32
    %345 = vector.broadcast %cst_141 : f32 to vector<8x1xf32>
    %346 = arith.addf %342, %345 : vector<8x1xf32>
    %347 = math.rsqrt %346 : vector<8x1xf32>
    %348 = vector.broadcast %347 : vector<8x1xf32> to vector<8x32xf32>
    %349 = arith.mulf %344, %348 : vector<8x32xf32>
    %350 = vector.broadcast %329 : vector<1x32xf32> to vector<8x32xf32>
    %351 = arith.mulf %349, %350 : vector<8x32xf32>
    %352 = vector.broadcast %331 : vector<1x32xf32> to vector<8x32xf32>
    %353 = arith.addf %351, %352 : vector<8x32xf32>
    %354 = vector.extract_strided_slice %353 {offsets = [0, 0], sizes = [1, 32], strides = [1, 1]} : vector<8x32xf32> to vector<1x32xf32>
    %355 = arith.truncf %354 : vector<1x32xf32> to vector<1x32xbf16>
    %c0_142 = arith.constant 0 : index
    %c0_143 = arith.constant 0 : index
    %356 = vector.load %arg21[%c0_142, %c0_143] : memref<32x128xbf16, #tpu.memory_space<vmem>>, vector<32x128xbf16>
    %cst_144 = arith.constant dense<0.000000e+00> : vector<1x128xf32>
    %357 = tpu.matmul %355, %356, %cst_144 {dimension_numbers = #tpu.dot_dimension_numbers<[1], [0], [0], [1], [0, 0, 1, 1], [], []>} : vector<1x32xbf16>, vector<32x128xbf16>, vector<1x128xf32> -> vector<1x128xf32>
    %c0_145 = arith.constant 0 : index
    %c0_146 = arith.constant 0 : index
    %358 = vector.load %arg22[%c0_145, %c0_146] : memref<1x128xf32, #tpu.memory_space<vmem>>, vector<1x128xf32>
    %359 = arith.addf %357, %358 : vector<1x128xf32>
    %c0_147 = arith.constant 0 : index
    %c0_148 = arith.constant 0 : index
    %c0_149 = arith.constant 0 : index
    %360 = vector.load %arg23[%c0_147, %c0_148, %c0_149] : memref<1x1x128xf32, #tpu.memory_space<vmem>>, vector<1x1x128xf32>
    %361 = vector.shape_cast %360 : vector<1x1x128xf32> to vector<1x128xf32>
    %362 = vector.shape_cast %359 : vector<1x128xf32> to vector<1x1x128xf32>
    tpu.vector_store %arg23[%c0_147, %c0_148, %c0_149], %362 {strides = array<i32>} : memref<1x1x128xf32, #tpu.memory_space<vmem>>, vector<1x1x128xf32>,
    return
  }
  func.func @transform_0(%arg0: i32) -> (i32, i32, i32) {
    %c0_i32 = arith.constant 0 : i32
    %c0_i32_0 = arith.constant 0 : i32
    %c0_i32_1 = arith.constant 0 : i32
    return %arg0, %c0_i32, %c0_i32_0 : i32, i32, i32
  }
  func.func @transform_1(%arg0: i32) -> (i32, i32, i32) {
    %c0_i32 = arith.constant 0 : i32
    %c0_i32_0 = arith.constant 0 : i32
    %c0_i32_1 = arith.constant 0 : i32
    return %arg0, %c0_i32, %c0_i32_0 : i32, i32, i32
  }
  func.func @transform_2(%arg0: i32) -> (i32, i32, i32) {
    %c0_i32 = arith.constant 0 : i32
    %c0_i32_0 = arith.constant 0 : i32
    %c0_i32_1 = arith.constant 0 : i32
    return %arg0, %c0_i32, %c0_i32_0 : i32, i32, i32
  }
  func.func @transform_3(%arg0: i32) -> (i32, i32) {
    %c0_i32 = arith.constant 0 : i32
    %c0_i32_0 = arith.constant 0 : i32
    %c0_i32_1 = arith.constant 0 : i32
    return %c0_i32, %c0_i32_0 : i32, i32
  }
  func.func @transform_4(%arg0: i32) -> (i32, i32) {
    %c0_i32 = arith.constant 0 : i32
    %c0_i32_0 = arith.constant 0 : i32
    %c0_i32_1 = arith.constant 0 : i32
    return %c0_i32, %c0_i32_0 : i32, i32
  }
  func.func @transform_5(%arg0: i32) -> (i32, i32) {
    %c0_i32 = arith.constant 0 : i32
    %c0_i32_0 = arith.constant 0 : i32
    %c0_i32_1 = arith.constant 0 : i32
    return %c0_i32, %c0_i32_0 : i32, i32
  }
  func.func @transform_6(%arg0: i32) -> (i32, i32) {
    %c0_i32 = arith.constant 0 : i32
    %c0_i32_0 = arith.constant 0 : i32
    %c0_i32_1 = arith.constant 0 : i32
    return %c0_i32, %c0_i32_0 : i32, i32
  }
  func.func @transform_7(%arg0: i32) -> (i32, i32) {
    %c0_i32 = arith.constant 0 : i32
    %c0_i32_0 = arith.constant 0 : i32
    %c0_i32_1 = arith.constant 0 : i32
    return %c0_i32, %c0_i32_0 : i32, i32
  }
  func.func @transform_8(%arg0: i32) -> (i32, i32, i32) {
    %c0_i32 = arith.constant 0 : i32
    %c0_i32_0 = arith.constant 0 : i32
    %c0_i32_1 = arith.constant 0 : i32
    %c0_i32_2 = arith.constant 0 : i32
    return %c0_i32, %c0_i32_0, %c0_i32_1 : i32, i32, i32
  }
  func.func @transform_9(%arg0: i32) -> (i32, i32, i32) {
    %c0_i32 = arith.constant 0 : i32
    %c0_i32_0 = arith.constant 0 : i32
    %c0_i32_1 = arith.constant 0 : i32
    %c0_i32_2 = arith.constant 0 : i32
    return %c0_i32, %c0_i32_0, %c0_i32_1 : i32, i32, i32
  }
  func.func @transform_10(%arg0: i32) -> (i32, i32, i32) {
    %c0_i32 = arith.constant 0 : i32
    %c0_i32_0 = arith.constant 0 : i32
    %c0_i32_1 = arith.constant 0 : i32
    %c0_i32_2 = arith.constant 0 : i32
    return %c0_i32, %c0_i32_0, %c0_i32_1 : i32, i32, i32
  }
  func.func @transform_11(%arg0: i32) -> (i32, i32, i32) {
    %c0_i32 = arith.constant 0 : i32
    %c0_i32_0 = arith.constant 0 : i32
    %c0_i32_1 = arith.constant 0 : i32
    %c0_i32_2 = arith.constant 0 : i32
    return %c0_i32, %c0_i32_0, %c0_i32_1 : i32, i32, i32
  }
  func.func @transform_12(%arg0: i32) -> (i32, i32, i32) {
    %c0_i32 = arith.constant 0 : i32
    %c0_i32_0 = arith.constant 0 : i32
    %c0_i32_1 = arith.constant 0 : i32
    %c0_i32_2 = arith.constant 0 : i32
    return %c0_i32, %c0_i32_0, %c0_i32_1 : i32, i32, i32
  }
  func.func @transform_13(%arg0: i32) -> (i32, i32, i32) {
    %c0_i32 = arith.constant 0 : i32
    %c0_i32_0 = arith.constant 0 : i32
    %c0_i32_1 = arith.constant 0 : i32
    %c0_i32_2 = arith.constant 0 : i32
    return %c0_i32, %c0_i32_0, %c0_i32_1 : i32, i32, i32
  }
  func.func @transform_14(%arg0: i32) -> (i32, i32, i32) {
    %c0_i32 = arith.constant 0 : i32
    %c0_i32_0 = arith.constant 0 : i32
    %c0_i32_1 = arith.constant 0 : i32
    %c0_i32_2 = arith.constant 0 : i32
    return %c0_i32, %c0_i32_0, %c0_i32_1 : i32, i32, i32
  }
  func.func @transform_15(%arg0: i32) -> (i32, i32, i32) {
    %c0_i32 = arith.constant 0 : i32
    %c0_i32_0 = arith.constant 0 : i32
    %c0_i32_1 = arith.constant 0 : i32
    %c0_i32_2 = arith.constant 0 : i32
    return %c0_i32, %c0_i32_0, %c0_i32_1 : i32, i32, i32
  }
  func.func @transform_16(%arg0: i32) -> (i32, i32, i32) {
    %c0_i32 = arith.constant 0 : i32
    %c0_i32_0 = arith.constant 0 : i32
    %c0_i32_1 = arith.constant 0 : i32
    %c0_i32_2 = arith.constant 0 : i32
    return %c0_i32, %c0_i32_0, %c0_i32_1 : i32, i32, i32
  }
  func.func @transform_17(%arg0: i32) -> (i32, i32, i32) {
    %c0_i32 = arith.constant 0 : i32
    %c0_i32_0 = arith.constant 0 : i32
    %c0_i32_1 = arith.constant 0 : i32
    %c0_i32_2 = arith.constant 0 : i32
    return %c0_i32, %c0_i32_0, %c0_i32_1 : i32, i32, i32
  }
  func.func @transform_18(%arg0: i32) -> (i32, i32, i32) {
    %c0_i32 = arith.constant 0 : i32
    %c0_i32_0 = arith.constant 0 : i32
    %c0_i32_1 = arith.constant 0 : i32
    %c0_i32_2 = arith.constant 0 : i32
    return %c0_i32, %c0_i32_0, %c0_i32_1 : i32, i32, i32
  }
  func.func @transform_19(%arg0: i32) -> (i32, i32, i32) {
    %c0_i32 = arith.constant 0 : i32
    %c0_i32_0 = arith.constant 0 : i32
    %c0_i32_1 = arith.constant 0 : i32
    %c0_i32_2 = arith.constant 0 : i32
    return %c0_i32, %c0_i32_0, %c0_i32_1 : i32, i32, i32
  }
  func.func @transform_20(%arg0: i32) -> (i32, i32) {
    %c0_i32 = arith.constant 0 : i32
    %c0_i32_0 = arith.constant 0 : i32
    %c0_i32_1 = arith.constant 0 : i32
    return %c0_i32, %c0_i32_0 : i32, i32
  }
  func.func @transform_21(%arg0: i32) -> (i32, i32) {
    %c0_i32 = arith.constant 0 : i32
    %c0_i32_0 = arith.constant 0 : i32
    %c0_i32_1 = arith.constant 0 : i32
    return %c0_i32, %c0_i32_0 : i32, i32
  }
  func.func @transform_22(%arg0: i32) -> (i32, i32, i32) {
    %c0_i32 = arith.constant 0 : i32
    %c0_i32_0 = arith.constant 0 : i32
    %c0_i32_1 = arith.constant 0 : i32
    return %arg0, %c0_i32, %c0_i32_0 : i32, i32, i32
  }
}

</mosaic_0001>

<llo_original>
// kernel: tpu_custom_call.1
$region0: #{tpu_custom_call.1}
  #allocation0 [shape = 'u32[]', space=smem, size = 0x4, offset = 0x4, fixed_abs, tag = 'smem constant byte address 0x4 - core index']
  #allocation1 [shape = 'u32[144,128]{1,0:T(1,128)}', space=vmem, size = 0x12000, scoped, tag = 'internal scratch']
  %s0 = inlined_call_operand.vmem [shape: s32[2,8,1], index: 0, kind: input, shape index: {}]
  %s1 = inlined_call_operand.vmem [shape: s32[2,8,1], index: 1, kind: input, shape index: {}]
  %s2 = inlined_call_operand.vmem [shape: f32[2,1,8], index: 2, kind: input, shape index: {}]
  %s3 = inlined_call_operand.vmem [shape: bf16[128,32], index: 3, kind: input, shape index: {}]
  %s4 = inlined_call_operand.vmem [shape: bf16[16,32], index: 4, kind: input, shape index: {}]
  %s5 = inlined_call_operand.vmem [shape: bf16[2,32], index: 5, kind: input, shape index: {}]
  %s6 = inlined_call_operand.vmem [shape: f32[1,32], index: 6, kind: input, shape index: {}]
  %s7 = inlined_call_operand.vmem [shape: f32[1,32], index: 7, kind: input, shape index: {}]
  %s8 = inlined_call_operand.vmem [shape: bf16[2,32,96], index: 8, kind: input, shape index: {}]
  %s9 = inlined_call_operand.vmem [shape: f32[2,1,96], index: 9, kind: input, shape index: {}]
  %s10 = inlined_call_operand.vmem [shape: bf16[2,32,32], index: 10, kind: input, shape index: {}]
  %s11 = inlined_call_operand.vmem [shape: f32[2,1,32], index: 11, kind: input, shape index: {}]
  %s12 = inlined_call_operand.vmem [shape: f32[2,1,32], index: 12, kind: input, shape index: {}]
  %s13 = inlined_call_operand.vmem [shape: f32[2,1,32], index: 13, kind: input, shape index: {}]
  %s14 = inlined_call_operand.vmem [shape: bf16[2,32,64], index: 14, kind: input, shape index: {}]
  %s15 = inlined_call_operand.vmem [shape: f32[2,1,64], index: 15, kind: input, shape index: {}]
  %s16 = inlined_call_operand.vmem [shape: bf16[2,64,32], index: 16, kind: input, shape index: {}]
  %s17 = inlined_call_operand.vmem [shape: f32[2,1,32], index: 17, kind: input, shape index: {}]
  %s18 = inlined_call_operand.vmem [shape: f32[2,1,32], index: 18, kind: input, shape index: {}]
  %s19 = inlined_call_operand.vmem [shape: f32[2,1,32], index: 19, kind: input, shape index: {}]
  %s20 = inlined_call_operand.vmem [shape: bf16[32,128], index: 20, kind: input, shape index: {}]
  %s21 = inlined_call_operand.vmem [shape: f32[1,128], index: 21, kind: input, shape index: {}]
  %s22 = inlined_call_operand.hbm [shape: f32[2,1,128], index: 22, kind: output, shape index: {}]
  %s23 = sld [smem:[#allocation0]]
  $region121: #{tpu_custom_call.1} parent=0
    _
  %s25 = ssub.s32 1, %s23
  %s26 = scalar_select 0, %s25, %s23
  $region1: #{tpu_custom_call.1} parent=0
    #allocation2 [shape = 'u8[1024]{0}', space=vmem, size = 0x400, scoped, tag = 'output window, operand 0']
    #allocation3 [shape = 's32[2]{0}', space=sflag, size = 0x8, scoped, tag = 'scoped memory for tpu_custom_call.1']
    %27 = vsyncpa [#allocation3], 0
    %s28 = scalar_lea.sflag [#allocation3], 1
    %29 = vsyncpa %s28, 0
    loop: start=0, step=1, limit=4
    $region2: #{tpu_custom_call.1} parent=1 // loop_pre_header
      _
    $region3: #{tpu_custom_call.1} parent=1 // loop_header
      %s31 = sphi 0, %s35
      %p32 = scmp.ge.s32.totalorder %s31, 4
      %s41 = sphi 0, %s43
      %s44 = sphi 0, %s41
      %s45 = sphi 0, %s44
      %s61 = sphi 0, %s45
      %s67 = sphi 0, %s69
      %s70 = sphi 0, %s67
      %s71 = sphi 0, %s70
      %s87 = sphi 0, %s71
      %s93 = sphi 0, %s95
      %s96 = sphi 0, %s93
      %s97 = sphi 0, %s96
      %s113 = sphi 0, %s97
      %s117 = sphi 0, %s117
      %s119 = sphi 0, %s117
      %s120 = sphi 0, %s119
      %s134 = sphi 0, %s120
      %s138 = sphi 0, %s138
      %s140 = sphi 0, %s138
      %s141 = sphi 0, %s140
      %s155 = sphi 0, %s141
      %s159 = sphi 0, %s159
      %s161 = sphi 0, %s159
      %s162 = sphi 0, %s161
      %s176 = sphi 0, %s162
      %s180 = sphi 0, %s180
      %s182 = sphi 0, %s180
      %s183 = sphi 0, %s182
      %s197 = sphi 0, %s183
      %s201 = sphi 0, %s201
      %s203 = sphi 0, %s201
      %s204 = sphi 0, %s203
      %s218 = sphi 0, %s204
      %s222 = sphi 0, %s222
      %s224 = sphi 0, %s222
      %s225 = sphi 0, %s224
      %s239 = sphi 0, %s225
      %s243 = sphi 0, %s243
      %s245 = sphi 0, %s243
      %s246 = sphi 0, %s245
      %s260 = sphi 0, %s246
      %s264 = sphi 0, %s264
      %s266 = sphi 0, %s264
      %s267 = sphi 0, %s266
      %s281 = sphi 0, %s267
      %s285 = sphi 0, %s285
      %s287 = sphi 0, %s285
      %s288 = sphi 0, %s287
      %s302 = sphi 0, %s288
      %s306 = sphi 0, %s306
      %s308 = sphi 0, %s306
      %s309 = sphi 0, %s308
      %s323 = sphi 0, %s309
      %s327 = sphi 0, %s327
      %s329 = sphi 0, %s327
      %s330 = sphi 0, %s329
      %s344 = sphi 0, %s330
      %s348 = sphi 0, %s348
      %s350 = sphi 0, %s348
      %s351 = sphi 0, %s350
      %s365 = sphi 0, %s351
      %s369 = sphi 0, %s369
      %s371 = sphi 0, %s369
      %s372 = sphi 0, %s371
      %s386 = sphi 0, %s372
      %s390 = sphi 0, %s390
      %s392 = sphi 0, %s390
      %s393 = sphi 0, %s392
      %s407 = sphi 0, %s393
      %s411 = sphi 0, %s411
      %s413 = sphi 0, %s411
      %s414 = sphi 0, %s413
      %s428 = sphi 0, %s414
      %s432 = sphi 0, %s432
      %s434 = sphi 0, %s432
      %s435 = sphi 0, %s434
      %s449 = sphi 0, %s435
      %s453 = sphi 0, %s453
      %s455 = sphi 0, %s453
      %s456 = sphi 0, %s455
      %s470 = sphi 0, %s456
      %s474 = sphi 0, %s474
      %s476 = sphi 0, %s474
      %s477 = sphi 0, %s476
      %s491 = sphi 0, %s477
      %s495 = sphi 0, %s495
      %s497 = sphi 0, %s495
      %s498 = sphi 0, %s497
      %s512 = sphi 0, %s498
      %s518 = sphi 0, %s520
      %s521 = sphi 0, %s518
      %s522 = sphi 0, %s521
      %s538 = sphi 0, %s522
    $region4: #{tpu_custom_call.1} parent=1 // loop_header_branch
      %34 = sbr.rel (%p32) target = $region8
    $region5: #{tpu_custom_call.1} parent=1 // loop_body
      %s36 = ssub.s32 %s31, 1
      %s37 = ssub.s32 %s31, 2
      %s38 = sadd.s32 %s31, 1
      %s39 = ssub.s32 %s31, %s38
      %p40 = scmp.eq.s32.totalorder %s39, 0
      %s42 = sadd.s32 %s41, 1
      %s43 = scalar_select %p40, %s41, %s42
      %p46 = pneg %p40
      %p47 = scmp.eq.s32.totalorder %s31, 1
      %p48 = por %p46, %p47
      %p49 = scmp.ne.s32.totalorder %s41, %s44
      %p50 = scmp.eq.s32.totalorder %s31, 0
      %p51 = por %p49, %p50
      %p52 = scmp.ne.s32.totalorder %s41, %s44
      %p53 = scmp.eq.s32.totalorder %s36, 1
      %p54 = por %p52, %p53
      %p55 = scmp.ne.s32.totalorder %s44, %s45
      %p56 = scmp.eq.s32.totalorder %s36, 0
      %p57 = por %p55, %p56
      %p58 = scmp.ne.s32.totalorder %s44, %s45
      %p59 = scmp.eq.s32.totalorder %s37, 1
      %p60 = por %p58, %p59
      %p62 = scmp.ne.s32.totalorder %s45, %s61
      %p63 = scmp.eq.s32.totalorder %s37, 0
      %p64 = por %p62, %p63
      %s65 = ssub.s32 %s31, %s38
      %p66 = scmp.eq.s32.totalorder %s65, 0
      %s68 = sadd.s32 %s67, 1
      %s69 = scalar_select %p66, %s67, %s68
      %p72 = pneg %p66
      %p73 = scmp.eq.s32.totalorder %s31, 1
      %p74 = por %p72, %p73
      %p75 = scmp.ne.s32.totalorder %s67, %s70
      %p76 = scmp.eq.s32.totalorder %s31, 0
      %p77 = por %p75, %p76
      %p78 = scmp.ne.s32.totalorder %s67, %s70
      %p79 = scmp.eq.s32.totalorder %s36, 1
      %p80 = por %p78, %p79
      %p81 = scmp.ne.s32.totalorder %s70, %s71
      %p82 = scmp.eq.s32.totalorder %s36, 0
      %p83 = por %p81, %p82
      %p84 = scmp.ne.s32.totalorder %s70, %s71
      %p85 = scmp.eq.s32.totalorder %s37, 1
      %p86 = por %p84, %p85
      %p88 = scmp.ne.s32.totalorder %s71, %s87
      %p89 = scmp.eq.s32.totalorder %s37, 0
      %p90 = por %p88, %p89
      %s91 = ssub.s32 %s31, %s38
      %p92 = scmp.eq.s32.totalorder %s91, 0
      %s94 = sadd.s32 %s93, 1
      %s95 = scalar_select %p92, %s93, %s94
      %p98 = pneg %p92
      %p99 = scmp.eq.s32.totalorder %s31, 1
      %p100 = por %p98, %p99
      %p101 = scmp.ne.s32.totalorder %s93, %s96
      %p102 = scmp.eq.s32.totalorder %s31, 0
      %p103 = por %p101, %p102
      %p104 = scmp.ne.s32.totalorder %s93, %s96
      %p105 = scmp.eq.s32.totalorder %s36, 1
      %p106 = por %p104, %p105
      %p107 = scmp.ne.s32.totalorder %s96, %s97
      %p108 = scmp.eq.s32.totalorder %s36, 0
      %p109 = por %p107, %p108
      %p110 = scmp.ne.s32.totalorder %s96, %s97
      %p111 = scmp.eq.s32.totalorder %s37, 1
      %p112 = por %p110, %p111
      %p114 = scmp.ne.s32.totalorder %s97, %s113
      %p115 = scmp.eq.s32.totalorder %s37, 0
      %p116 = por %p114, %p115
      %s118 = sadd.s32 %s117, 1
      %p121 = scmp.eq.s32.totalorder %s31, 1
      %p122 = scmp.ne.s32.totalorder %s117, %s119
      %p123 = scmp.eq.s32.totalorder %s31, 0
      %p124 = por %p122, %p123
      %p125 = scmp.ne.s32.totalorder %s117, %s119
      %p126 = scmp.eq.s32.totalorder %s36, 1
      %p127 = por %p125, %p126
      %p128 = scmp.ne.s32.totalorder %s119, %s120
      %p129 = scmp.eq.s32.totalorder %s36, 0
      %p130 = por %p128, %p129
      %p131 = scmp.ne.s32.totalorder %s119, %s120
      %p132 = scmp.eq.s32.totalorder %s37, 1
      %p133 = por %p131, %p132
      %p135 = scmp.ne.s32.totalorder %s120, %s134
      %p136 = scmp.eq.s32.totalorder %s37, 0
      %p137 = por %p135, %p136
      %s139 = sadd.s32 %s138, 1
      %p142 = scmp.eq.s32.totalorder %s31, 1
      %p143 = scmp.ne.s32.totalorder %s138, %s140
      %p144 = scmp.eq.s32.totalorder %s31, 0
      %p145 = por %p143, %p144
      %p146 = scmp.ne.s32.totalorder %s138, %s140
      %p147 = scmp.eq.s32.totalorder %s36, 1
      %p148 = por %p146, %p147
      %p149 = scmp.ne.s32.totalorder %s140, %s141
      %p150 = scmp.eq.s32.totalorder %s36, 0
      %p151 = por %p149, %p150
      %p152 = scmp.ne.s32.totalorder %s140, %s141
      %p153 = scmp.eq.s32.totalorder %s37, 1
      %p154 = por %p152, %p153
      %p156 = scmp.ne.s32.totalorder %s141, %s155
      %p157 = scmp.eq.s32.totalorder %s37, 0
      %p158 = por %p156, %p157
      %s160 = sadd.s32 %s159, 1
      %p163 = scmp.eq.s32.totalorder %s31, 1
      %p164 = scmp.ne.s32.totalorder %s159, %s161
      %p165 = scmp.eq.s32.totalorder %s31, 0
      %p166 = por %p164, %p165
      %p167 = scmp.ne.s32.totalorder %s159, %s161
      %p168 = scmp.eq.s32.totalorder %s36, 1
      %p169 = por %p167, %p168
      %p170 = scmp.ne.s32.totalorder %s161, %s162
      %p171 = scmp.eq.s32.totalorder %s36, 0
      %p172 = por %p170, %p171
      %p173 = scmp.ne.s32.totalorder %s161, %s162
      %p174 = scmp.eq.s32.totalorder %s37, 1
      %p175 = por %p173, %p174
      %p177 = scmp.ne.s32.totalorder %s162, %s176
      %p178 = scmp.eq.s32.totalorder %s37, 0
      %p179 = por %p177, %p178
      %s181 = sadd.s32 %s180, 1
      %p184 = scmp.eq.s32.totalorder %s31, 1
      %p185 = scmp.ne.s32.totalorder %s180, %s182
      %p186 = scmp.eq.s32.totalorder %s31, 0
      %p187 = por %p185, %p186
      %p188 = scmp.ne.s32.totalorder %s180, %s182
      %p189 = scmp.eq.s32.totalorder %s36, 1
      %p190 = por %p188, %p189
      %p191 = scmp.ne.s32.totalorder %s182, %s183
      %p192 = scmp.eq.s32.totalorder %s36, 0
      %p193 = por %p191, %p192
      %p194 = scmp.ne.s32.totalorder %s182, %s183
      %p195 = scmp.eq.s32.totalorder %s37, 1
      %p196 = por %p194, %p195
      %p198 = scmp.ne.s32.totalorder %s183, %s197
      %p199 = scmp.eq.s32.totalorder %s37, 0
      %p200 = por %p198, %p199
      %s202 = sadd.s32 %s201, 1
      %p205 = scmp.eq.s32.totalorder %s31, 1
      %p206 = scmp.ne.s32.totalorder %s201, %s203
      %p207 = scmp.eq.s32.totalorder %s31, 0
      %p208 = por %p206, %p207
      %p209 = scmp.ne.s32.totalorder %s201, %s203
      %p210 = scmp.eq.s32.totalorder %s36, 1
      %p211 = por %p209, %p210
      %p212 = scmp.ne.s32.totalorder %s203, %s204
      %p213 = scmp.eq.s32.totalorder %s36, 0
      %p214 = por %p212, %p213
      %p215 = scmp.ne.s32.totalorder %s203, %s204
      %p216 = scmp.eq.s32.totalorder %s37, 1
      %p217 = por %p215, %p216
      %p219 = scmp.ne.s32.totalorder %s204, %s218
      %p220 = scmp.eq.s32.totalorder %s37, 0
      %p221 = por %p219, %p220
      %s223 = sadd.s32 %s222, 1
      %p226 = scmp.eq.s32.totalorder %s31, 1
      %p227 = scmp.ne.s32.totalorder %s222, %s224
      %p228 = scmp.eq.s32.totalorder %s31, 0
      %p229 = por %p227, %p228
      %p230 = scmp.ne.s32.totalorder %s222, %s224
      %p231 = scmp.eq.s32.totalorder %s36, 1
      %p232 = por %p230, %p231
      %p233 = scmp.ne.s32.totalorder %s224, %s225
      %p234 = scmp.eq.s32.totalorder %s36, 0
      %p235 = por %p233, %p234
      %p236 = scmp.ne.s32.totalorder %s224, %s225
      %p237 = scmp.eq.s32.totalorder %s37, 1
      %p238 = por %p236, %p237
      %p240 = scmp.ne.s32.totalorder %s225, %s239
      %p241 = scmp.eq.s32.totalorder %s37, 0
      %p242 = por %p240, %p241
      %s244 = sadd.s32 %s243, 1
      %p247 = scmp.eq.s32.totalorder %s31, 1
      %p248 = scmp.ne.s32.totalorder %s243, %s245
      %p249 = scmp.eq.s32.totalorder %s31, 0
      %p250 = por %p248, %p249
      %p251 = scmp.ne.s32.totalorder %s243, %s245
      %p252 = scmp.eq.s32.totalorder %s36, 1
      %p253 = por %p251, %p252
      %p254 = scmp.ne.s32.totalorder %s245, %s246
      %p255 = scmp.eq.s32.totalorder %s36, 0
      %p256 = por %p254, %p255
      %p257 = scmp.ne.s32.totalorder %s245, %s246
      %p258 = scmp.eq.s32.totalorder %s37, 1
      %p259 = por %p257, %p258
      %p261 = scmp.ne.s32.totalorder %s246, %s260
      %p262 = scmp.eq.s32.totalorder %s37, 0
      %p263 = por %p261, %p262
      %s265 = sadd.s32 %s264, 1
      %p268 = scmp.eq.s32.totalorder %s31, 1
      %p269 = scmp.ne.s32.totalorder %s264, %s266
      %p270 = scmp.eq.s32.totalorder %s31, 0
      %p271 = por %p269, %p270
      %p272 = scmp.ne.s32.totalorder %s264, %s266
      %p273 = scmp.eq.s32.totalorder %s36, 1
      %p274 = por %p272, %p273
      %p275 = scmp.ne.s32.totalorder %s266, %s267
      %p276 = scmp.eq.s32.totalorder %s36, 0
      %p277 = por %p275, %p276
      %p278 = scmp.ne.s32.totalorder %s266, %s267
      %p279 = scmp.eq.s32.totalorder %s37, 1
      %p280 = por %p278, %p279
      %p282 = scmp.ne.s32.totalorder %s267, %s281
      %p283 = scmp.eq.s32.totalorder %s37, 0
      %p284 = por %p282, %p283
      %s286 = sadd.s32 %s285, 1
      %p289 = scmp.eq.s32.totalorder %s31, 1
      %p290 = scmp.ne.s32.totalorder %s285, %s287
      %p291 = scmp.eq.s32.totalorder %s31, 0
      %p292 = por %p290, %p291
      %p293 = scmp.ne.s32.totalorder %s285, %s287
      %p294 = scmp.eq.s32.totalorder %s36, 1
      %p295 = por %p293, %p294
      %p296 = scmp.ne.s32.totalorder %s287, %s288
      %p297 = scmp.eq.s32.totalorder %s36, 0
      %p298 = por %p296, %p297
      %p299 = scmp.ne.s32.totalorder %s287, %s288
      %p300 = scmp.eq.s32.totalorder %s37, 1
      %p301 = por %p299, %p300
      %p303 = scmp.ne.s32.totalorder %s288, %s302
      %p304 = scmp.eq.s32.totalorder %s37, 0
      %p305 = por %p303, %p304
      %s307 = sadd.s32 %s306, 1
      %p310 = scmp.eq.s32.totalorder %s31, 1
      %p311 = scmp.ne.s32.totalorder %s306, %s308
      %p312 = scmp.eq.s32.totalorder %s31, 0
      %p313 = por %p311, %p312
      %p314 = scmp.ne.s32.totalorder %s306, %s308
      %p315 = scmp.eq.s32.totalorder %s36, 1
      %p316 = por %p314, %p315
      %p317 = scmp.ne.s32.totalorder %s308, %s309
      %p318 = scmp.eq.s32.totalorder %s36, 0
      %p319 = por %p317, %p318
      %p320 = scmp.ne.s32.totalorder %s308, %s309
      %p321 = scmp.eq.s32.totalorder %s37, 1
      %p322 = por %p320, %p321
      %p324 = scmp.ne.s32.totalorder %s309, %s323
      %p325 = scmp.eq.s32.totalorder %s37, 0
      %p326 = por %p324, %p325
      %s328 = sadd.s32 %s327, 1
      %p331 = scmp.eq.s32.totalorder %s31, 1
      %p332 = scmp.ne.s32.totalorder %s327, %s329
      %p333 = scmp.eq.s32.totalorder %s31, 0
      %p334 = por %p332, %p333
      %p335 = scmp.ne.s32.totalorder %s327, %s329
      %p336 = scmp.eq.s32.totalorder %s36, 1
      %p337 = por %p335, %p336
      %p338 = scmp.ne.s32.totalorder %s329, %s330
      %p339 = scmp.eq.s32.totalorder %s36, 0
      %p340 = por %p338, %p339
      %p341 = scmp.ne.s32.totalorder %s329, %s330
      %p342 = scmp.eq.s32.totalorder %s37, 1
      %p343 = por %p341, %p342
      %p345 = scmp.ne.s32.totalorder %s330, %s344
      %p346 = scmp.eq.s32.totalorder %s37, 0
      %p347 = por %p345, %p346
      %s349 = sadd.s32 %s348, 1
      %p352 = scmp.eq.s32.totalorder %s31, 1
      %p353 = scmp.ne.s32.totalorder %s348, %s350
      %p354 = scmp.eq.s32.totalorder %s31, 0
      %p355 = por %p353, %p354
      %p356 = scmp.ne.s32.totalorder %s348, %s350
      %p357 = scmp.eq.s32.totalorder %s36, 1
      %p358 = por %p356, %p357
      %p359 = scmp.ne.s32.totalorder %s350, %s351
      %p360 = scmp.eq.s32.totalorder %s36, 0
      %p361 = por %p359, %p360
      %p362 = scmp.ne.s32.totalorder %s350, %s351
      %p363 = scmp.eq.s32.totalorder %s37, 1
      %p364 = por %p362, %p363
      %p366 = scmp.ne.s32.totalorder %s351, %s365
      %p367 = scmp.eq.s32.totalorder %s37, 0
      %p368 = por %p366, %p367
      %s370 = sadd.s32 %s369, 1
      %p373 = scmp.eq.s32.totalorder %s31, 1
      %p374 = scmp.ne.s32.totalorder %s369, %s371
      %p375 = scmp.eq.s32.totalorder %s31, 0
      %p376 = por %p374, %p375
      %p377 = scmp.ne.s32.totalorder %s369, %s371
      %p378 = scmp.eq.s32.totalorder %s36, 1
      %p379 = por %p377, %p378
      %p380 = scmp.ne.s32.totalorder %s371, %s372
      %p381 = scmp.eq.s32.totalorder %s36, 0
      %p382 = por %p380, %p381
      %p383 = scmp.ne.s32.totalorder %s371, %s372
      %p384 = scmp.eq.s32.totalorder %s37, 1
      %p385 = por %p383, %p384
      %p387 = scmp.ne.s32.totalorder %s372, %s386
      %p388 = scmp.eq.s32.totalorder %s37, 0
      %p389 = por %p387, %p388
      %s391 = sadd.s32 %s390, 1
      %p394 = scmp.eq.s32.totalorder %s31, 1
      %p395 = scmp.ne.s32.totalorder %s390, %s392
      %p396 = scmp.eq.s32.totalorder %s31, 0
      %p397 = por %p395, %p396
      %p398 = scmp.ne.s32.totalorder %s390, %s392
      %p399 = scmp.eq.s32.totalorder %s36, 1
      %p400 = por %p398, %p399
      %p401 = scmp.ne.s32.totalorder %s392, %s393
      %p402 = scmp.eq.s32.totalorder %s36, 0
      %p403 = por %p401, %p402
      %p404 = scmp.ne.s32.totalorder %s392, %s393
      %p405 = scmp.eq.s32.totalorder %s37, 1
      %p406 = por %p404, %p405
      %p408 = scmp.ne.s32.totalorder %s393, %s407
      %p409 = scmp.eq.s32.totalorder %s37, 0
      %p410 = por %p408, %p409
      %s412 = sadd.s32 %s411, 1
      %p415 = scmp.eq.s32.totalorder %s31, 1
      %p416 = scmp.ne.s32.totalorder %s411, %s413
      %p417 = scmp.eq.s32.totalorder %s31, 0
      %p418 = por %p416, %p417
      %p419 = scmp.ne.s32.totalorder %s411, %s413
      %p420 = scmp.eq.s32.totalorder %s36, 1
      %p421 = por %p419, %p420
      %p422 = scmp.ne.s32.totalorder %s413, %s414
      %p423 = scmp.eq.s32.totalorder %s36, 0
      %p424 = por %p422, %p423
      %p425 = scmp.ne.s32.totalorder %s413, %s414
      %p426 = scmp.eq.s32.totalorder %s37, 1
      %p427 = por %p425, %p426
      %p429 = scmp.ne.s32.totalorder %s414, %s428
      %p430 = scmp.eq.s32.totalorder %s37, 0
      %p431 = por %p429, %p430
      %s433 = sadd.s32 %s432, 1
      %p436 = scmp.eq.s32.totalorder %s31, 1
      %p437 = scmp.ne.s32.totalorder %s432, %s434
      %p438 = scmp.eq.s32.totalorder %s31, 0
      %p439 = por %p437, %p438
      %p440 = scmp.ne.s32.totalorder %s432, %s434
      %p441 = scmp.eq.s32.totalorder %s36, 1
      %p442 = por %p440, %p441
      %p443 = scmp.ne.s32.totalorder %s434, %s435
      %p444 = scmp.eq.s32.totalorder %s36, 0
      %p445 = por %p443, %p444
      %p446 = scmp.ne.s32.totalorder %s434, %s435
      %p447 = scmp.eq.s32.totalorder %s37, 1
      %p448 = por %p446, %p447
      %p450 = scmp.ne.s32.totalorder %s435, %s449
      %p451 = scmp.eq.s32.totalorder %s37, 0
      %p452 = por %p450, %p451
      %s454 = sadd.s32 %s453, 1
      %p457 = scmp.eq.s32.totalorder %s31, 1
      %p458 = scmp.ne.s32.totalorder %s453, %s455
      %p459 = scmp.eq.s32.totalorder %s31, 0
      %p460 = por %p458, %p459
      %p461 = scmp.ne.s32.totalorder %s453, %s455
      %p462 = scmp.eq.s32.totalorder %s36, 1
      %p463 = por %p461, %p462
      %p464 = scmp.ne.s32.totalorder %s455, %s456
      %p465 = scmp.eq.s32.totalorder %s36, 0
      %p466 = por %p464, %p465
      %p467 = scmp.ne.s32.totalorder %s455, %s456
      %p468 = scmp.eq.s32.totalorder %s37, 1
      %p469 = por %p467, %p468
      %p471 = scmp.ne.s32.totalorder %s456, %s470
      %p472 = scmp.eq.s32.totalorder %s37, 0
      %p473 = por %p471, %p472
      %s475 = sadd.s32 %s474, 1
      %p478 = scmp.eq.s32.totalorder %s31, 1
      %p479 = scmp.ne.s32.totalorder %s474, %s476
      %p480 = scmp.eq.s32.totalorder %s31, 0
      %p481 = por %p479, %p480
      %p482 = scmp.ne.s32.totalorder %s474, %s476
      %p483 = scmp.eq.s32.totalorder %s36, 1
      %p484 = por %p482, %p483
      %p485 = scmp.ne.s32.totalorder %s476, %s477
      %p486 = scmp.eq.s32.totalorder %s36, 0
      %p487 = por %p485, %p486
      %p488 = scmp.ne.s32.totalorder %s476, %s477
      %p489 = scmp.eq.s32.totalorder %s37, 1
      %p490 = por %p488, %p489
      %p492 = scmp.ne.s32.totalorder %s477, %s491
      %p493 = scmp.eq.s32.totalorder %s37, 0
      %p494 = por %p492, %p493
      %s496 = sadd.s32 %s495, 1
      %p499 = scmp.eq.s32.totalorder %s31, 1
      %p500 = scmp.ne.s32.totalorder %s495, %s497
      %p501 = scmp.eq.s32.totalorder %s31, 0
      %p502 = por %p500, %p501
      %p503 = scmp.ne.s32.totalorder %s495, %s497
      %p504 = scmp.eq.s32.totalorder %s36, 1
      %p505 = por %p503, %p504
      %p506 = scmp.ne.s32.totalorder %s497, %s498
      %p507 = scmp.eq.s32.totalorder %s36, 0
      %p508 = por %p506, %p507
      %p509 = scmp.ne.s32.totalorder %s497, %s498
      %p510 = scmp.eq.s32.totalorder %s37, 1
      %p511 = por %p509, %p510
      %p513 = scmp.ne.s32.totalorder %s498, %s512
      %p514 = scmp.eq.s32.totalorder %s37, 0
      %p515 = por %p513, %p514
      %s516 = ssub.s32 %s31, %s38
      %p517 = scmp.eq.s32.totalorder %s516, 0
      %s519 = sadd.s32 %s518, 1
      %s520 = scalar_select %p517, %s518, %s519
      %p523 = pneg %p517
      %p524 = scmp.eq.s32.totalorder %s31, 1
      %p525 = por %p523, %p524
      %p526 = scmp.ne.s32.totalorder %s518, %s521
      %p527 = scmp.eq.s32.totalorder %s31, 0
      %p528 = por %p526, %p527
      %p529 = scmp.ne.s32.totalorder %s518, %s521
      %p530 = scmp.eq.s32.totalorder %s36, 1
      %p531 = por %p529, %p530
      %p532 = scmp.ne.s32.totalorder %s521, %s522
      %p533 = scmp.eq.s32.totalorder %s36, 0
      %p534 = por %p532, %p533
      %p535 = scmp.ne.s32.totalorder %s521, %s522
      %p536 = scmp.eq.s32.totalorder %s37, 1
      %p537 = por %p535, %p536
      %p539 = scmp.ne.s32.totalorder %s522, %s538
      %p540 = scmp.eq.s32.totalorder %s37, 0
      %p541 = por %p539, %p540
      %p542 = scmp.le.s32.totalorder 1, %s31
      %p543 = scmp.lt.s32.totalorder %s31, 3
      %p544 = pnand %p542, %p543
      %p545 = pneg %p544
      // Predicated region
      $region9: #{tpu_custom_call.1} parent=5 // pred_check
        _
      $region10: #{tpu_custom_call.1} parent=5 // pred_check_branch
        %547 = sbr.rel (%p544) target = $region12
      $region11: #{tpu_custom_call.1} parent=5 // pred_region
        %s548 = ssub.s32 %s31, 1
        // Predicated region
        $region13: #{tpu_custom_call.1} parent=11 // pred_check
          %p549 = pneg %p130
        $region14: #{tpu_custom_call.1} parent=11 // pred_check_branch
          %551 = sbr.rel (%p549) target = $region16
        $region15: #{tpu_custom_call.1} parent=11 // pred_region
          _
        $region16: #{tpu_custom_call.1} parent=11 // pred_fallthru
          _
        // Predicated region
        $region17: #{tpu_custom_call.1} parent=11 // pred_check
          %p552 = pneg %p151
        $region18: #{tpu_custom_call.1} parent=11 // pred_check_branch
          %554 = sbr.rel (%p552) target = $region20
        $region19: #{tpu_custom_call.1} parent=11 // pred_region
          _
        $region20: #{tpu_custom_call.1} parent=11 // pred_fallthru
          _
        // Predicated region
        $region21: #{tpu_custom_call.1} parent=11 // pred_check
          %p555 = pneg %p172
        $region22: #{tpu_custom_call.1} parent=11 // pred_check_branch
          %557 = sbr.rel (%p555) target = $region24
        $region23: #{tpu_custom_call.1} parent=11 // pred_region
          _
        $region24: #{tpu_custom_call.1} parent=11 // pred_fallthru
          _
        // Predicated region
        $region25: #{tpu_custom_call.1} parent=11 // pred_check
          %p558 = pneg %p193
        $region26: #{tpu_custom_call.1} parent=11 // pred_check_branch
          %560 = sbr.rel (%p558) target = $region28
        $region27: #{tpu_custom_call.1} parent=11 // pred_region
          _
        $region28: #{tpu_custom_call.1} parent=11 // pred_fallthru
          _
        // Predicated region
        $region29: #{tpu_custom_call.1} parent=11 // pred_check
          %p561 = pneg %p214
        $region30: #{tpu_custom_call.1} parent=11 // pred_check_branch
          %563 = sbr.rel (%p561) target = $region32
        $region31: #{tpu_custom_call.1} parent=11 // pred_region
          _
        $region32: #{tpu_custom_call.1} parent=11 // pred_fallthru
          _
        // Predicated region
        $region33: #{tpu_custom_call.1} parent=11 // pred_check
          %p564 = pneg %p235
        $region34: #{tpu_custom_call.1} parent=11 // pred_check_branch
          %566 = sbr.rel (%p564) target = $region36
        $region35: #{tpu_custom_call.1} parent=11 // pred_region
          _
        $region36: #{tpu_custom_call.1} parent=11 // pred_fallthru
          _
        // Predicated region
        $region37: #{tpu_custom_call.1} parent=11 // pred_check
          %p567 = pneg %p256
        $region38: #{tpu_custom_call.1} parent=11 // pred_check_branch
          %569 = sbr.rel (%p567) target = $region40
        $region39: #{tpu_custom_call.1} parent=11 // pred_region
          _
        $region40: #{tpu_custom_call.1} parent=11 // pred_fallthru
          _
        // Predicated region
        $region41: #{tpu_custom_call.1} parent=11 // pred_check
          %p570 = pneg %p277
        $region42: #{tpu_custom_call.1} parent=11 // pred_check_branch
          %572 = sbr.rel (%p570) target = $region44
        $region43: #{tpu_custom_call.1} parent=11 // pred_region
          _
        $region44: #{tpu_custom_call.1} parent=11 // pred_fallthru
          _
        // Predicated region
        $region45: #{tpu_custom_call.1} parent=11 // pred_check
          %p573 = pneg %p298
        $region46: #{tpu_custom_call.1} parent=11 // pred_check_branch
          %575 = sbr.rel (%p573) target = $region48
        $region47: #{tpu_custom_call.1} parent=11 // pred_region
          _
        $region48: #{tpu_custom_call.1} parent=11 // pred_fallthru
          _
        // Predicated region
        $region49: #{tpu_custom_call.1} parent=11 // pred_check
          %p576 = pneg %p319
        $region50: #{tpu_custom_call.1} parent=11 // pred_check_branch
          %578 = sbr.rel (%p576) target = $region52
        $region51: #{tpu_custom_call.1} parent=11 // pred_region
          _
        $region52: #{tpu_custom_call.1} parent=11 // pred_fallthru
          _
        // Predicated region
        $region53: #{tpu_custom_call.1} parent=11 // pred_check
          %p579 = pneg %p340
        $region54: #{tpu_custom_call.1} parent=11 // pred_check_branch
          %581 = sbr.rel (%p579) target = $region56
        $region55: #{tpu_custom_call.1} parent=11 // pred_region
          _
        $region56: #{tpu_custom_call.1} parent=11 // pred_fallthru
          _
        // Predicated region
        $region57: #{tpu_custom_call.1} parent=11 // pred_check
          %p582 = pneg %p361
        $region58: #{tpu_custom_call.1} parent=11 // pred_check_branch
          %584 = sbr.rel (%p582) target = $region60
        $region59: #{tpu_custom_call.1} parent=11 // pred_region
          _
        $region60: #{tpu_custom_call.1} parent=11 // pred_fallthru
          _
        // Predicated region
        $region61: #{tpu_custom_call.1} parent=11 // pred_check
          %p585 = pneg %p382
        $region62: #{tpu_custom_call.1} parent=11 // pred_check_branch
          %587 = sbr.rel (%p585) target = $region64
        $region63: #{tpu_custom_call.1} parent=11 // pred_region
          _
        $region64: #{tpu_custom_call.1} parent=11 // pred_fallthru
          _
        // Predicated region
        $region65: #{tpu_custom_call.1} parent=11 // pred_check
          %p588 = pneg %p403
        $region66: #{tpu_custom_call.1} parent=11 // pred_check_branch
          %590 = sbr.rel (%p588) target = $region68
        $region67: #{tpu_custom_call.1} parent=11 // pred_region
          _
        $region68: #{tpu_custom_call.1} parent=11 // pred_fallthru
          _
        // Predicated region
        $region69: #{tpu_custom_call.1} parent=11 // pred_check
          %p591 = pneg %p424
        $region70: #{tpu_custom_call.1} parent=11 // pred_check_branch
          %593 = sbr.rel (%p591) target = $region72
        $region71: #{tpu_custom_call.1} parent=11 // pred_region
          _
        $region72: #{tpu_custom_call.1} parent=11 // pred_fallthru
          _
        // Predicated region
        $region73: #{tpu_custom_call.1} parent=11 // pred_check
          %p594 = pneg %p445
        $region74: #{tpu_custom_call.1} parent=11 // pred_check_branch
          %596 = sbr.rel (%p594) target = $region76
        $region75: #{tpu_custom_call.1} parent=11 // pred_region
          _
        $region76: #{tpu_custom_call.1} parent=11 // pred_fallthru
          _
        // Predicated region
        $region77: #{tpu_custom_call.1} parent=11 // pred_check
          %p597 = pneg %p466
        $region78: #{tpu_custom_call.1} parent=11 // pred_check_branch
          %599 = sbr.rel (%p597) target = $region80
        $region79: #{tpu_custom_call.1} parent=11 // pred_region
          _
        $region80: #{tpu_custom_call.1} parent=11 // pred_fallthru
          _
        // Predicated region
        $region81: #{tpu_custom_call.1} parent=11 // pred_check
          %p600 = pneg %p487
        $region82: #{tpu_custom_call.1} parent=11 // pred_check_branch
          %602 = sbr.rel (%p600) target = $region84
        $region83: #{tpu_custom_call.1} parent=11 // pred_region
          _
        $region84: #{tpu_custom_call.1} parent=11 // pred_fallthru
          _
        // Predicated region
        $region85: #{tpu_custom_call.1} parent=11 // pred_check
          %p603 = pneg %p508
        $region86: #{tpu_custom_call.1} parent=11 // pred_check_branch
          %605 = sbr.rel (%p603) target = $region88
        $region87: #{tpu_custom_call.1} parent=11 // pred_region
          _
        $region88: #{tpu_custom_call.1} parent=11 // pred_fallthru
          _
      $region12: #{tpu_custom_call.1} parent=5 // pred_fallthru
        _
      %p606 = scmp.lt.s32.totalorder %s31, 2
      // Predicated region
      $region89: #{tpu_custom_call.1} parent=5 // pred_check
        %p607 = pneg %p606
      $region90: #{tpu_custom_call.1} parent=5 // pred_check_branch
        %609 = sbr.rel (%p607) target = $region92
      $region91: #{tpu_custom_call.1} parent=5 // pred_region
        // Predicated region
        $region93: #{tpu_custom_call.1} parent=91 // pred_check
          %p610 = pneg %p51
        $region94: #{tpu_custom_call.1} parent=91 // pred_check_branch
          %612 = sbr.rel (%p610) target = $region96
        $region95: #{tpu_custom_call.1} parent=91 // pred_region
          %p613 = scmp.lt.s32.totalorder %s31, 1
          %s614 = scalar_select %p613, %s31, 1
          %s615 = smul.addr %s614, 8
          %s616 = scalar_lea.vmem %s0, %s615
        $region96: #{tpu_custom_call.1} parent=91 // pred_fallthru
          _
        // Predicated region
        $region97: #{tpu_custom_call.1} parent=91 // pred_check
          %p617 = pneg %p77
        $region98: #{tpu_custom_call.1} parent=91 // pred_check_branch
          %619 = sbr.rel (%p617) target = $region100
        $region99: #{tpu_custom_call.1} parent=91 // pred_region
          %p620 = scmp.lt.s32.totalorder %s31, 1
          %s621 = scalar_select %p620, %s31, 1
          %s622 = smul.addr %s621, 8
          %s623 = scalar_lea.vmem %s1, %s622
        $region100: #{tpu_custom_call.1} parent=91 // pred_fallthru
          _
        // Predicated region
        $region101: #{tpu_custom_call.1} parent=91 // pred_check
          %p624 = pneg %p103
        $region102: #{tpu_custom_call.1} parent=91 // pred_check_branch
          %626 = sbr.rel (%p624) target = $region104
        $region103: #{tpu_custom_call.1} parent=91 // pred_region
          %p627 = scmp.lt.s32.totalorder %s31, 1
          %s628 = scalar_select %p627, %s31, 1
          %s629 = scalar_lea.vmem %s2, %s628
        $region104: #{tpu_custom_call.1} parent=91 // pred_fallthru
          _
      $region92: #{tpu_custom_call.1} parent=5 // pred_fallthru
        _
      %p630 = scmp.le.s32.totalorder 1, %s31
      %p631 = scmp.lt.s32.totalorder %s31, 3
      %p632 = pnand %p630, %p631
      %p633 = pneg %p632
      // Predicated region
      $region105: #{tpu_custom_call.1} parent=5 // pred_check
        _
      $region106: #{tpu_custom_call.1} parent=5 // pred_check_branch
        %635 = sbr.rel (%p632) target = $region108
      $region107: #{tpu_custom_call.1} parent=5 // pred_region
        %s636 = ssub.s32 %s31, 1
        %p637 = scmp.lt.s32.totalorder %s36, 1
        %s638 = scalar_select %p637, %s36, 1
        %s639 = smul.addr %s638, 8
        %s640 = scalar_lea.vmem %s0, %s639
        %p641 = pneg %p57
        %p642 = pneg %p54
        %p643 = scmp.lt.s32.totalorder %s36, 1
        %s644 = scalar_select %p643, %s36, 1
        %s645 = smul.addr %s644, 8
        %s646 = scalar_lea.vmem %s1, %s645
        %p647 = pneg %p83
        %p648 = pneg %p80
        %p649 = scmp.lt.s32.totalorder %s36, 1
        %s650 = scalar_select %p649, %s36, 1
        %s651 = scalar_lea.vmem %s2, %s650
        %p652 = pneg %p109
        %p653 = pneg %p106
        %p654 = pneg %p130
        %p655 = pneg %p127
        %p656 = pneg %p151
        %p657 = pneg %p148
        %p658 = pneg %p172
        %p659 = pneg %p169
        %p660 = pneg %p193
        %p661 = pneg %p190
        %p662 = pneg %p214
        %p663 = pneg %p211
        %p664 = pneg %p235
        %p665 = pneg %p232
        %p666 = pneg %p256
        %p667 = pneg %p253
        %p668 = pneg %p277
        %p669 = pneg %p274
        %p670 = pneg %p298
        %p671 = pneg %p295
        %p672 = pneg %p319
        %p673 = pneg %p316
        %p674 = pneg %p340
        %p675 = pneg %p337
        %p676 = pneg %p361
        %p677 = pneg %p358
        %p678 = pneg %p382
        %p679 = pneg %p379
        %p680 = pneg %p403
        %p681 = pneg %p400
        %p682 = pneg %p424
        %p683 = pneg %p421
        %p684 = pneg %p445
        %p685 = pneg %p442
        %p686 = pneg %p466
        %p687 = pneg %p463
        %p688 = pneg %p487
        %p689 = pneg %p484
        %p690 = pneg %p508
        %p691 = pneg %p505
        %p692 = pneg %p534
        %p693 = pneg %p531
        %s694 = sand.u32 %s521, 1
        %s695 = scalar_lea.sflag [#allocation3], %s694
        %s696 = sand.u32 %s521, 1
        %s697 = scalar_lea.vmem [#allocation2], %s696
        %p698 = scmp.lt.s32.totalorder %s36, 1
        %s699 = scalar_select %p698, %s36, 1
        %s700 = smul.addr %s699, 8
        %s701 = scalar_lea.vmem %s0, %s700
        %p702 = scmp.lt.s32.totalorder %s36, 1
        %s703 = scalar_select %p702, %s36, 1
        %s704 = smul.addr %s703, 8
        %s705 = scalar_lea.vmem %s1, %s704
        %p706 = scmp.lt.s32.totalorder %s36, 1
        %s707 = scalar_select %p706, %s36, 1
        %s708 = scalar_lea.vmem %s2, %s707
        %v710 = vld [vmem:[%s701] sm:$0xff]
        %v711 = vld [vmem:[%s705] sm:$0xff]
        %v712 = vlaneseq
        %v713 = vand.u32 %v712, 127
        %714 = vset.pattern.permute.xlu0 0
        %715 = vperm.xlu0 %714, %v710
        %v716 = vpop.permute.xlu0 %715
        %vm717 = vcmp.eq.s32.totalorder %v713, %v716
        %v718 = vsel %vm717, 1, 0
        %v719 = vcvt.s32.f32 %v718
        %v720 = vpack.c.bf16 %v719, %v719
        %v721 = vld [vmem:[%s3] sm:$0xf]
        %v722 = vld [vmem:[%s3 + $0x4] sm:$0xf]
        %v723 = vld [vmem:[%s3 + $0x8] sm:$0xf]
        %v724 = vld [vmem:[%s3 + $0xc] sm:$0xf]
        %v725 = vld [vmem:[%s3 + $0x10] sm:$0xf]
        %v726 = vld [vmem:[%s3 + $0x14] sm:$0xf]
        %v727 = vld [vmem:[%s3 + $0x18] sm:$0xf]
        %v728 = vld [vmem:[%s3 + $0x1c] sm:$0xf]
        %v729 = vld [vmem:[%s3 + $0x20] sm:$0xf]
        %v730 = vld [vmem:[%s3 + $0x24] sm:$0xf]
        %v731 = vld [vmem:[%s3 + $0x28] sm:$0xf]
        %v732 = vld [vmem:[%s3 + $0x2c] sm:$0xf]
        %v733 = vld [vmem:[%s3 + $0x30] sm:$0xf]
        %v734 = vld [vmem:[%s3 + $0x34] sm:$0xf]
        %v735 = vld [vmem:[%s3 + $0x38] sm:$0xf]
        %v736 = vld [vmem:[%s3 + $0x3c] sm:$0xf]
        %v737 = vld [vmem:[%s4] sm:$0xf]
        %v738 = vunpack.c.l.bf16 %v737
        %v739 = vld [vmem:[%s5] sm:$0x1]
        %v740 = vunpack.c.l.bf16 %v739
        %v741 = vcvt.s32.f32 %v711
        %v743 = vrot.slane %v740, 7
        %v745 = vsub.f32 %v740, %v743
        %747 = vset.pattern.permute.xlu0 0
        %748 = vperm.xlu0 %747, %v741
        %v749 = vpop.permute.xlu0 %748
        %v751 = vlaneseq
        %v752 = vshrl.u32 %v751, 7
        %v753 = vsub.s32 1, %v752
        %v754 = vrot.slane %v745, %v753
        %v755 = vmul.f32 %v749, %v754
        %v756 = vlaneseq
        %v757 = vshrl.u32 %v756, 7
        %v758 = vsub.s32 0, %v757
        %v759 = vrot.slane %v740, %v758
        %v760 = vadd.f32 %v759, %v755
        %v777 = vunpack.c.l.b16 %v721
        %v778 = vunpack.c.l.b16 %v722
        %v779 = vunpack.c.l.b16 %v723
        %v780 = vunpack.c.l.b16 %v724
        %v781 = vunpack.c.l.b16 %v725
        %v782 = vunpack.c.l.b16 %v726
        %v783 = vunpack.c.l.b16 %v727
        %v784 = vunpack.c.l.b16 %v728
        %v785 = vunpack.c.l.b16 %v729
        %v786 = vunpack.c.l.b16 %v730
        %v787 = vunpack.c.l.b16 %v731
        %v788 = vunpack.c.l.b16 %v732
        %v789 = vunpack.c.l.b16 %v733
        %v790 = vunpack.c.l.b16 %v734
        %v791 = vunpack.c.l.b16 %v735
        %v792 = vunpack.c.l.b16 %v736
        %v793 = vpack.c.b16 %v778, %v777
        %v794 = vpack.c.b16 %v780, %v779
        %v795 = vpack.c.b16 %v782, %v781
        %v796 = vpack.c.b16 %v784, %v783
        %v797 = vpack.c.b16 %v786, %v785
        %v798 = vpack.c.b16 %v788, %v787
        %v799 = vpack.c.b16 %v790, %v789
        %v800 = vpack.c.b16 %v792, %v791
        %809 = vmatprep.subr.bf16.mxu0 0
        %810 = vmatpush1.bf16.msra.mxu0 %v793
        %811 = vmatprep.subr.bf16.mxu0 0
        %812 = vmatpush1.bf16.msra.mxu0 %v794
        %813 = vmatprep.subr.bf16.mxu0 0
        %814 = vmatpush1.bf16.msra.mxu0 %v795
        %815 = vmatprep.subr.bf16.mxu0 0
        %816 = vmatpush1.bf16.msra.mxu0 %v796
        %817 = vmatprep.subr.bf16.mxu0 0
        %818 = vmatpush1.bf16.msra.mxu0 %v797
        %819 = vmatprep.subr.bf16.mxu0 0
        %820 = vmatpush1.bf16.msra.mxu0 %v798
        %821 = vmatprep.subr.bf16.mxu0 0
        %822 = vmatpush1.bf16.msra.mxu0 %v799
        %823 = vmatprep.subr.bf16.mxu0 0
        %824 = vmatpush1.bf16.msra.mxu0 %v800
        %825 = vmatprep.subr.bf16.mxu0 0
        %826 = vmatpush1.bf16.msra.mxu0 0
        %827 = vmatprep.subr.bf16.mxu0 0
        %828 = vmatpush1.bf16.msra.mxu0 0
        %829 = vmatprep.subr.bf16.mxu0 0
        %830 = vmatpush1.bf16.msra.mxu0 0
        %831 = vmatprep.subr.bf16.mxu0 0
        %832 = vmatpush1.bf16.msra.mxu0 0
        %833 = vmatprep.subr.bf16.mxu0 0
        %834 = vmatpush1.bf16.msra.mxu0 0
        %835 = vmatprep.subr.bf16.mxu0 0
        %836 = vmatpush1.bf16.msra.mxu0 0
        %837 = vmatprep.subr.bf16.mxu0 0
        %838 = vmatpush1.bf16.msra.mxu0 0
        %839 = vmatprep.subr.bf16.mxu0 0
        %840 = vmatpush1.bf16.msra.mxu0 0
        %841 = vmatprep.mubr.bf16.mxu0 0
        %842 = vmatmul.mubr.bf16.gmra.mrb[0].mxu0 %v720
        %v843 = vpop.f32.mrb[0].mxu0
        %v844 = vadd.f32 %v738, %v843
        %v845 = vpop.f32.mrb[0].mxu0
        %v846 = vpop.f32.mrb[0].mxu0
        %v847 = vpop.f32.mrb[0].mxu0
        %848 = vdwg.mxu0
        %v849 = vadd.f32 %v844, %v760
        %v850 = vld [vmem:[%s6] sm:$0x1]
        %v851 = vld [vmem:[%s7] sm:$0x1]
        %vm852 = vcmask 261120
        %v853 = vsel %vm852, %v849, 0.0
        %854 = vadd.xlane.f32.xlu0 %v853
        %v855 = vpop.xlane.xlu0 %854
        %v856 = vrcp.pop 32.0
        %v857 = vmul.f32 %v855, %v856
        %v858 = vmul.f32 %v849, %v849
        %v859 = vsel %vm852, %v858, 0.0
        %860 = vadd.xlane.f32.xlu0 %v859
        %v861 = vpop.xlane.xlu0 %860
        %v862 = vmul.f32 %v861, %v856
        %v863 = vmul.f32 %v857, %v857
        %v864 = vsub.f32 %v862, %v863
        %v865 = vsub.f32 %v849, %v857
        %v866 = vadd.f32 %v864, 1e-12
        %v867 = vrsqrt.pop %v866
        %v868 = vmul.f32 %v865, %v867
        %v870 = vlaneseq
        %v871 = vshrl.u32 %v870, 7
        %v872 = vsub.s32 0, %v871
        %v873 = vrot.slane %v850, %v872
        %v875 = vmul.f32 %v868, %v873
        %v877 = vlaneseq
        %v878 = vshrl.u32 %v877, 7
        %v879 = vsub.s32 0, %v878
        %v880 = vrot.slane %v851, %v879
        %v882 = vadd.f32 %v875, %v880
        %v883 = vld [vmem:[%s708] sm:$0x1]
        %v884 = vsub.f32 1.0, %v883
        %v885 = vmul.f32 %v884, -10000.0
        %v887 = vlaneseq
        %v888 = vshrl.u32 %v887, 7
        %v889 = vsub.s32 0, %v888
        %v890 = vrot.slane %v885, %v889
        %v892 = vpack.c.bf16 %v882, %v882
        %v893 = vld [vmem:[%s8] sm:$0xf]
        %v894 = vld [vmem:[%s8 + $0x4] sm:$0xf]
        %v895 = vld [vmem:[%s8 + $0x8] sm:$0xf]
        %v896 = vld [vmem:[%s8 + $0xc] sm:$0xf]
        %v897 = vld [vmem:[%s9] sm:$0x1]
        %v899 = vlaneseq
        %v900 = vshrl.u32 %v899, 7
        %v901 = vsub.s32 0, %v900
        %v902 = vrot.slane %v897, %v901
        %v908 = vunpack.c.l.b16 %v893
        %v909 = vunpack.c.l.b16 %v894
        %v910 = vunpack.c.l.b16 %v895
        %v911 = vunpack.c.l.b16 %v896
        %v912 = vpack.c.b16 %v909, %v908
        %v913 = vpack.c.b16 %v911, %v910
        %v917 = vsel %vm852, %v892, 0
        %919 = vmatprep.subr.bf16.mxu0 0
        %920 = vmatpush1.bf16.msra.mxu0 %v912
        %921 = vmatprep.subr.bf16.mxu0 0
        %922 = vmatpush1.bf16.msra.mxu0 %v913
        %923 = vmatprep.subr.bf16.mxu0 0
        %924 = vmatpush1.bf16.msra.mxu0 0
        %925 = vmatprep.subr.bf16.mxu0 0
        %926 = vmatpush1.bf16.msra.mxu0 0
        %927 = vmatprep.subr.bf16.mxu0 0
        %928 = vmatpush1.bf16.msra.mxu0 0
        %929 = vmatprep.subr.bf16.mxu0 0
        %930 = vmatpush1.bf16.msra.mxu0 0
        %931 = vmatprep.subr.bf16.mxu0 0
        %932 = vmatpush1.bf16.msra.mxu0 0
        %933 = vmatprep.subr.bf16.mxu0 0
        %934 = vmatpush1.bf16.msra.mxu0 0
        %935 = vmatprep.subr.bf16.mxu0 0
        %936 = vmatpush1.bf16.msra.mxu0 0
        %937 = vmatprep.subr.bf16.mxu0 0
        %938 = vmatpush1.bf16.msra.mxu0 0
        %939 = vmatprep.subr.bf16.mxu0 0
        %940 = vmatpush1.bf16.msra.mxu0 0
        %941 = vmatprep.subr.bf16.mxu0 0
        %942 = vmatpush1.bf16.msra.mxu0 0
        %943 = vmatprep.subr.bf16.mxu0 0
        %944 = vmatpush1.bf16.msra.mxu0 0
        %945 = vmatprep.subr.bf16.mxu0 0
        %946 = vmatpush1.bf16.msra.mxu0 0
        %947 = vmatprep.subr.bf16.mxu0 0
        %948 = vmatpush1.bf16.msra.mxu0 0
        %949 = vmatprep.subr.bf16.mxu0 0
        %950 = vmatpush1.bf16.msra.mxu0 0
        %951 = vmatprep.mubr.bf16.mxu0 0
        %952 = vmatmul.mubr.bf16.gmra.mrb[0].mxu0 %v917
        %v953 = vpop.f32.mrb[0].mxu0
        %v954 = vadd.f32 %v902, %v953
        %v955 = vpop.f32.mrb[0].mxu0
        %v956 = vpop.f32.mrb[0].mxu0
        %v957 = vpop.f32.mrb[0].mxu0
        %958 = vdwg.mxu0
        %960 = vrot.lane.b32.xlu0 %v954, 120
        %v961 = vpop.permute.xlu0 %960
        %962 = vrot.lane.b32.xlu0 %v954, 112
        %v963 = vpop.permute.xlu0 %962
        %964 = vrot.lane.b32.xlu0 %v954, 104
        %v965 = vpop.permute.xlu0 %964
        %966 = vrot.lane.b32.xlu0 %v954, 96
        %v967 = vpop.permute.xlu0 %966
        %vm968 = vcmask 64512
        %v969 = vsel %vm968, %v954, 0
        %v971 = vsel %vm968, %v967, 0
        %973 = vmatprep.subr.mxu0 0.0
        %974 = vmatpush1.xpose.msra.mxu0 %v971
        %975 = vmatprep.subr.mxu0 0.0
        %976 = vmatpush1.xpose.msra.mxu0 0.0
        %977 = vmatprep.subr.mxu0 0.0
        %978 = vmatpush1.xpose.msra.mxu0 0.0
        %979 = vmatprep.subr.mxu0 0.0
        %980 = vmatpush1.xpose.msra.mxu0 0.0
        %981 = vmatprep.subr.mxu0 0.0
        %982 = vmatpush1.xpose.msra.mxu0 0.0
        %983 = vmatprep.subr.mxu0 0.0
        %984 = vmatpush1.xpose.msra.mxu0 0.0
        %985 = vmatprep.subr.mxu0 0.0
        %986 = vmatpush1.xpose.msra.mxu0 0.0
        %987 = vmatprep.subr.mxu0 0.0
        %988 = vmatpush1.xpose.msra.mxu0 0.0
        %989 = vmatprep.subr.mxu0 0.0
        %990 = vmatpush1.xpose.msra.mxu0 0.0
        %991 = vmatprep.subr.mxu0 0.0
        %992 = vmatpush1.xpose.msra.mxu0 0.0
        %993 = vmatprep.subr.mxu0 0.0
        %994 = vmatpush1.xpose.msra.mxu0 0.0
        %995 = vmatprep.subr.mxu0 0.0
        %996 = vmatpush1.xpose.msra.mxu0 0.0
        %997 = vmatprep.subr.mxu0 0.0
        %998 = vmatpush1.xpose.msra.mxu0 0.0
        %999 = vmatprep.subr.mxu0 0.0
        %1000 = vmatpush1.xpose.msra.mxu0 0.0
        %1001 = vmatprep.subr.mxu0 0.0
        %1002 = vmatpush1.xpose.msra.mxu0 0.0
        %1003 = vmatprep.subr.mxu0 0.0
        %1004 = vmatpush1.xpose.msra.mxu0 0.0
        %1005 = vmatprep.subr.mxu0 0.0
        %1006 = vmatpush1.xpose.msra.mxu0 0.0
        %1007 = vmatprep.subr.mxu0 0.0
        %1008 = vmatpush1.xpose.msra.mxu0 0.0
        %1009 = vmatprep.subr.mxu0 0.0
        %1010 = vmatpush1.xpose.msra.mxu0 0.0
        %1011 = vmatprep.subr.mxu0 0.0
        %1012 = vmatpush1.xpose.msra.mxu0 0.0
        %1013 = vmatprep.subr.mxu0 0.0
        %1014 = vmatpush1.xpose.msra.mxu0 0.0
        %1015 = vmatprep.subr.mxu0 0.0
        %1016 = vmatpush1.xpose.msra.mxu0 0.0
        %1017 = vmatprep.subr.mxu0 0.0
        %1018 = vmatpush1.xpose.msra.mxu0 0.0
        %1019 = vmatprep.subr.mxu0 0.0
        %1020 = vmatpush1.xpose.msra.mxu0 0.0
        %1021 = vmatprep.subr.mxu0 0.0
        %1022 = vmatpush1.xpose.msra.mxu0 0.0
        %1023 = vmatprep.subr.mxu0 0.0
        %1024 = vmatpush1.xpose.msra.mxu0 0.0
        %1025 = vmatprep.subr.mxu0 0.0
        %1026 = vmatpush1.xpose.msra.mxu0 0.0
        %1027 = vmatprep.subr.mxu0 0.0
        %1028 = vmatpush1.xpose.msra.mxu0 0.0
        %1029 = vmatprep.subr.mxu0 0.0
        %1030 = vmatpush1.xpose.msra.mxu0 0.0
        %1031 = vmatprep.subr.mxu0 0.0
        %1032 = vmatpush1.xpose.msra.mxu0 0.0
        %1033 = vmatprep.subr.mxu0 0.0
        %1034 = vmatpush1.xpose.msra.mxu0 0.0
        %1035 = vmatprep.subr.mxu0 0.0
        %1036 = vmatpush1.xpose.msra.mxu0 0.0
        %1037 = vmatprep.mubr.f32.mxu0 0.0
        %1038 = vmatmul.mubr.f32.gmra.mrb[0].mxu0 %v969
        %v1039 = vpop.f32.mrb[0].mxu0
        %v1040 = vadd.f32 0.0, %v1039
        %v1041 = vpop.f32.mrb[0].mxu0
        %1042 = vdwg.mxu0
        %1043 = vrot.lane.b32.xlu0 %v961, 96
        %v1044 = vpop.permute.xlu0 %1043
        %v1045 = vsel %vm968, %v961, 0
        %v1047 = vsel %vm968, %v1044, 0
        %1049 = vmatprep.subr.mxu0 0.0
        %1050 = vmatpush1.xpose.msra.mxu0 %v1047
        %1051 = vmatprep.subr.mxu0 0.0
        %1052 = vmatpush1.xpose.msra.mxu0 0.0
        %1053 = vmatprep.subr.mxu0 0.0
        %1054 = vmatpush1.xpose.msra.mxu0 0.0
        %1055 = vmatprep.subr.mxu0 0.0
        %1056 = vmatpush1.xpose.msra.mxu0 0.0
        %1057 = vmatprep.subr.mxu0 0.0
        %1058 = vmatpush1.xpose.msra.mxu0 0.0
        %1059 = vmatprep.subr.mxu0 0.0
        %1060 = vmatpush1.xpose.msra.mxu0 0.0
        %1061 = vmatprep.subr.mxu0 0.0
        %1062 = vmatpush1.xpose.msra.mxu0 0.0
        %1063 = vmatprep.subr.mxu0 0.0
        %1064 = vmatpush1.xpose.msra.mxu0 0.0
        %1065 = vmatprep.subr.mxu0 0.0
        %1066 = vmatpush1.xpose.msra.mxu0 0.0
        %1067 = vmatprep.subr.mxu0 0.0
        %1068 = vmatpush1.xpose.msra.mxu0 0.0
        %1069 = vmatprep.subr.mxu0 0.0
        %1070 = vmatpush1.xpose.msra.mxu0 0.0
        %1071 = vmatprep.subr.mxu0 0.0
        %1072 = vmatpush1.xpose.msra.mxu0 0.0
        %1073 = vmatprep.subr.mxu0 0.0
        %1074 = vmatpush1.xpose.msra.mxu0 0.0
        %1075 = vmatprep.subr.mxu0 0.0
        %1076 = vmatpush1.xpose.msra.mxu0 0.0
        %1077 = vmatprep.subr.mxu0 0.0
        %1078 = vmatpush1.xpose.msra.mxu0 0.0
        %1079 = vmatprep.subr.mxu0 0.0
        %1080 = vmatpush1.xpose.msra.mxu0 0.0
        %1081 = vmatprep.subr.mxu0 0.0
        %1082 = vmatpush1.xpose.msra.mxu0 0.0
        %1083 = vmatprep.subr.mxu0 0.0
        %1084 = vmatpush1.xpose.msra.mxu0 0.0
        %1085 = vmatprep.subr.mxu0 0.0
        %1086 = vmatpush1.xpose.msra.mxu0 0.0
        %1087 = vmatprep.subr.mxu0 0.0
        %1088 = vmatpush1.xpose.msra.mxu0 0.0
        %1089 = vmatprep.subr.mxu0 0.0
        %1090 = vmatpush1.xpose.msra.mxu0 0.0
        %1091 = vmatprep.subr.mxu0 0.0
        %1092 = vmatpush1.xpose.msra.mxu0 0.0
        %1093 = vmatprep.subr.mxu0 0.0
        %1094 = vmatpush1.xpose.msra.mxu0 0.0
        %1095 = vmatprep.subr.mxu0 0.0
        %1096 = vmatpush1.xpose.msra.mxu0 0.0
        %1097 = vmatprep.subr.mxu0 0.0
        %1098 = vmatpush1.xpose.msra.mxu0 0.0
        %1099 = vmatprep.subr.mxu0 0.0
        %1100 = vmatpush1.xpose.msra.mxu0 0.0
        %1101 = vmatprep.subr.mxu0 0.0
        %1102 = vmatpush1.xpose.msra.mxu0 0.0
        %1103 = vmatprep.subr.mxu0 0.0
        %1104 = vmatpush1.xpose.msra.mxu0 0.0
        %1105 = vmatprep.subr.mxu0 0.0
        %1106 = vmatpush1.xpose.msra.mxu0 0.0
        %1107 = vmatprep.subr.mxu0 0.0
        %1108 = vmatpush1.xpose.msra.mxu0 0.0
        %1109 = vmatprep.subr.mxu0 0.0
        %1110 = vmatpush1.xpose.msra.mxu0 0.0
        %1111 = vmatprep.subr.mxu0 0.0
        %1112 = vmatpush1.xpose.msra.mxu0 0.0
        %1113 = vmatprep.mubr.f32.mxu0 0.0
        %1114 = vmatmul.mubr.f32.gmra.mrb[0].mxu0 %v1045
        %v1115 = vpop.f32.mrb[0].mxu0
        %v1116 = vadd.f32 0.0, %v1115
        %v1117 = vpop.f32.mrb[0].mxu0
        %1118 = vdwg.mxu0
        %1119 = vrot.lane.b32.xlu0 %v963, 96
        %v1120 = vpop.permute.xlu0 %1119
        %v1121 = vsel %vm968, %v963, 0
        %v1123 = vsel %vm968, %v1120, 0
        %1125 = vmatprep.subr.mxu0 0.0
        %1126 = vmatpush1.xpose.msra.mxu0 %v1123
        %1127 = vmatprep.subr.mxu0 0.0
        %1128 = vmatpush1.xpose.msra.mxu0 0.0
        %1129 = vmatprep.subr.mxu0 0.0
        %1130 = vmatpush1.xpose.msra.mxu0 0.0
        %1131 = vmatprep.subr.mxu0 0.0
        %1132 = vmatpush1.xpose.msra.mxu0 0.0
        %1133 = vmatprep.subr.mxu0 0.0
        %1134 = vmatpush1.xpose.msra.mxu0 0.0
        %1135 = vmatprep.subr.mxu0 0.0
        %1136 = vmatpush1.xpose.msra.mxu0 0.0
        %1137 = vmatprep.subr.mxu0 0.0
        %1138 = vmatpush1.xpose.msra.mxu0 0.0
        %1139 = vmatprep.subr.mxu0 0.0
        %1140 = vmatpush1.xpose.msra.mxu0 0.0
        %1141 = vmatprep.subr.mxu0 0.0
        %1142 = vmatpush1.xpose.msra.mxu0 0.0
        %1143 = vmatprep.subr.mxu0 0.0
        %1144 = vmatpush1.xpose.msra.mxu0 0.0
        %1145 = vmatprep.subr.mxu0 0.0
        %1146 = vmatpush1.xpose.msra.mxu0 0.0
        %1147 = vmatprep.subr.mxu0 0.0
        %1148 = vmatpush1.xpose.msra.mxu0 0.0
        %1149 = vmatprep.subr.mxu0 0.0
        %1150 = vmatpush1.xpose.msra.mxu0 0.0
        %1151 = vmatprep.subr.mxu0 0.0
        %1152 = vmatpush1.xpose.msra.mxu0 0.0
        %1153 = vmatprep.subr.mxu0 0.0
        %1154 = vmatpush1.xpose.msra.mxu0 0.0
        %1155 = vmatprep.subr.mxu0 0.0
        %1156 = vmatpush1.xpose.msra.mxu0 0.0
        %1157 = vmatprep.subr.mxu0 0.0
        %1158 = vmatpush1.xpose.msra.mxu0 0.0
        %1159 = vmatprep.subr.mxu0 0.0
        %1160 = vmatpush1.xpose.msra.mxu0 0.0
        %1161 = vmatprep.subr.mxu0 0.0
        %1162 = vmatpush1.xpose.msra.mxu0 0.0
        %1163 = vmatprep.subr.mxu0 0.0
        %1164 = vmatpush1.xpose.msra.mxu0 0.0
        %1165 = vmatprep.subr.mxu0 0.0
        %1166 = vmatpush1.xpose.msra.mxu0 0.0
        %1167 = vmatprep.subr.mxu0 0.0
        %1168 = vmatpush1.xpose.msra.mxu0 0.0
        %1169 = vmatprep.subr.mxu0 0.0
        %1170 = vmatpush1.xpose.msra.mxu0 0.0
        %1171 = vmatprep.subr.mxu0 0.0
        %1172 = vmatpush1.xpose.msra.mxu0 0.0
        %1173 = vmatprep.subr.mxu0 0.0
        %1174 = vmatpush1.xpose.msra.mxu0 0.0
        %1175 = vmatprep.subr.mxu0 0.0
        %1176 = vmatpush1.xpose.msra.mxu0 0.0
        %1177 = vmatprep.subr.mxu0 0.0
        %1178 = vmatpush1.xpose.msra.mxu0 0.0
        %1179 = vmatprep.subr.mxu0 0.0
        %1180 = vmatpush1.xpose.msra.mxu0 0.0
        %1181 = vmatprep.subr.mxu0 0.0
        %1182 = vmatpush1.xpose.msra.mxu0 0.0
        %1183 = vmatprep.subr.mxu0 0.0
        %1184 = vmatpush1.xpose.msra.mxu0 0.0
        %1185 = vmatprep.subr.mxu0 0.0
        %1186 = vmatpush1.xpose.msra.mxu0 0.0
        %1187 = vmatprep.subr.mxu0 0.0
        %1188 = vmatpush1.xpose.msra.mxu0 0.0
        %1189 = vmatprep.mubr.f32.mxu0 0.0
        %1190 = vmatmul.mubr.f32.gmra.mrb[0].mxu0 %v1121
        %v1191 = vpop.f32.mrb[0].mxu0
        %v1192 = vadd.f32 0.0, %v1191
        %v1193 = vpop.f32.mrb[0].mxu0
        %1194 = vdwg.mxu0
        %1195 = vrot.lane.b32.xlu0 %v965, 96
        %v1196 = vpop.permute.xlu0 %1195
        %v1197 = vsel %vm968, %v965, 0
        %v1199 = vsel %vm968, %v1196, 0
        %1201 = vmatprep.subr.mxu0 0.0
        %1202 = vmatpush1.xpose.msra.mxu0 %v1199
        %1203 = vmatprep.subr.mxu0 0.0
        %1204 = vmatpush1.xpose.msra.mxu0 0.0
        %1205 = vmatprep.subr.mxu0 0.0
        %1206 = vmatpush1.xpose.msra.mxu0 0.0
        %1207 = vmatprep.subr.mxu0 0.0
        %1208 = vmatpush1.xpose.msra.mxu0 0.0
        %1209 = vmatprep.subr.mxu0 0.0
        %1210 = vmatpush1.xpose.msra.mxu0 0.0
        %1211 = vmatprep.subr.mxu0 0.0
        %1212 = vmatpush1.xpose.msra.mxu0 0.0
        %1213 = vmatprep.subr.mxu0 0.0
        %1214 = vmatpush1.xpose.msra.mxu0 0.0
        %1215 = vmatprep.subr.mxu0 0.0
        %1216 = vmatpush1.xpose.msra.mxu0 0.0
        %1217 = vmatprep.subr.mxu0 0.0
        %1218 = vmatpush1.xpose.msra.mxu0 0.0
        %1219 = vmatprep.subr.mxu0 0.0
        %1220 = vmatpush1.xpose.msra.mxu0 0.0
        %1221 = vmatprep.subr.mxu0 0.0
        %1222 = vmatpush1.xpose.msra.mxu0 0.0
        %1223 = vmatprep.subr.mxu0 0.0
        %1224 = vmatpush1.xpose.msra.mxu0 0.0
        %1225 = vmatprep.subr.mxu0 0.0
        %1226 = vmatpush1.xpose.msra.mxu0 0.0
        %1227 = vmatprep.subr.mxu0 0.0
        %1228 = vmatpush1.xpose.msra.mxu0 0.0
        %1229 = vmatprep.subr.mxu0 0.0
        %1230 = vmatpush1.xpose.msra.mxu0 0.0
        %1231 = vmatprep.subr.mxu0 0.0
        %1232 = vmatpush1.xpose.msra.mxu0 0.0
        %1233 = vmatprep.subr.mxu0 0.0
        %1234 = vmatpush1.xpose.msra.mxu0 0.0
        %1235 = vmatprep.subr.mxu0 0.0
        %1236 = vmatpush1.xpose.msra.mxu0 0.0
        %1237 = vmatprep.subr.mxu0 0.0
        %1238 = vmatpush1.xpose.msra.mxu0 0.0
        %1239 = vmatprep.subr.mxu0 0.0
        %1240 = vmatpush1.xpose.msra.mxu0 0.0
        %1241 = vmatprep.subr.mxu0 0.0
        %1242 = vmatpush1.xpose.msra.mxu0 0.0
        %1243 = vmatprep.subr.mxu0 0.0
        %1244 = vmatpush1.xpose.msra.mxu0 0.0
        %1245 = vmatprep.subr.mxu0 0.0
        %1246 = vmatpush1.xpose.msra.mxu0 0.0
        %1247 = vmatprep.subr.mxu0 0.0
        %1248 = vmatpush1.xpose.msra.mxu0 0.0
        %1249 = vmatprep.subr.mxu0 0.0
        %1250 = vmatpush1.xpose.msra.mxu0 0.0
        %1251 = vmatprep.subr.mxu0 0.0
        %1252 = vmatpush1.xpose.msra.mxu0 0.0
        %1253 = vmatprep.subr.mxu0 0.0
        %1254 = vmatpush1.xpose.msra.mxu0 0.0
        %1255 = vmatprep.subr.mxu0 0.0
        %1256 = vmatpush1.xpose.msra.mxu0 0.0
        %1257 = vmatprep.subr.mxu0 0.0
        %1258 = vmatpush1.xpose.msra.mxu0 0.0
        %1259 = vmatprep.subr.mxu0 0.0
        %1260 = vmatpush1.xpose.msra.mxu0 0.0
        %1261 = vmatprep.subr.mxu0 0.0
        %1262 = vmatpush1.xpose.msra.mxu0 0.0
        %1263 = vmatprep.subr.mxu0 0.0
        %1264 = vmatpush1.xpose.msra.mxu0 0.0
        %1265 = vmatprep.mubr.f32.mxu0 0.0
        %1266 = vmatmul.mubr.f32.gmra.mrb[0].mxu0 %v1197
        %v1267 = vpop.f32.mrb[0].mxu0
        %v1268 = vadd.f32 0.0, %v1267
        %v1269 = vpop.f32.mrb[0].mxu0
        %1270 = vdwg.mxu0
        %v1271 = vmul.f32 %v1040, 0.35355338
        %v1272 = vmul.f32 %v1116, 0.35355338
        %v1273 = vmul.f32 %v1192, 0.35355338
        %v1274 = vmul.f32 %v1268, 0.35355338
        %v1275 = vadd.f32 %v1271, %v890
        %v1276 = vadd.f32 %v1272, %v890
        %v1277 = vadd.f32 %v1273, %v890
        %v1278 = vadd.f32 %v1274, %v890
        %v1279 = vsel %vm968, %v1275, -inf
        %1280 = vmax.xlane.f32.xlu0 %v1279
        %v1281 = vpop.xlane.xlu0 %1280
        %v1282 = vsel %vm968, %v1276, -inf
        %1283 = vmax.xlane.f32.xlu0 %v1282
        %v1284 = vpop.xlane.xlu0 %1283
        %v1285 = vsel %vm968, %v1277, -inf
        %1286 = vmax.xlane.f32.xlu0 %v1285
        %v1287 = vpop.xlane.xlu0 %1286
        %v1288 = vsel %vm968, %v1278, -inf
        %1289 = vmax.xlane.f32.xlu0 %v1288
        %v1290 = vpop.xlane.xlu0 %1289
        %v1291 = vsub.f32 %v1275, %v1281
        %v1292 = vsub.f32 %v1276, %v1284
        %v1293 = vsub.f32 %v1277, %v1287
        %v1294 = vsub.f32 %v1278, %v1290
        %v1295 = vmul.f32 %v1291, 1.442695
        %v1296 = vpow.pop %v1295
        %v1297 = vmul.f32 %v1292, 1.442695
        %v1298 = vpow.pop %v1297
        %v1299 = vmul.f32 %v1293, 1.442695
        %v1300 = vpow.pop %v1299
        %v1301 = vmul.f32 %v1294, 1.442695
        %v1302 = vpow.pop %v1301
        %v1303 = vsel %vm968, %v1296, 0.0
        %1304 = vadd.xlane.f32.xlu0 %v1303
        %v1305 = vpop.xlane.xlu0 %1304
        %v1306 = vsel %vm968, %v1298, 0.0
        %1307 = vadd.xlane.f32.xlu0 %v1306
        %v1308 = vpop.xlane.xlu0 %1307
        %v1309 = vsel %vm968, %v1300, 0.0
        %1310 = vadd.xlane.f32.xlu0 %v1309
        %v1311 = vpop.xlane.xlu0 %1310
        %v1312 = vsel %vm968, %v1302, 0.0
        %1313 = vadd.xlane.f32.xlu0 %v1312
        %v1314 = vpop.xlane.xlu0 %1313
        %v1315 = vrcp.pop %v1305
        %v1316 = vmul.f32 %v1296, %v1315
        %v1317 = vrcp.pop %v1308
        %v1318 = vmul.f32 %v1298, %v1317
        %v1319 = vrcp.pop %v1311
        %v1320 = vmul.f32 %v1300, %v1319
        %v1321 = vrcp.pop %v1314
        %v1322 = vmul.f32 %v1302, %v1321
        %1323 = vrot.lane.b32.xlu0 %v954, 64
        %v1324 = vpop.permute.xlu0 %1323
        %v1327 = vsel %vm968, %v1316, 0
        %1329 = vmatprep.subr.mxu0 0.0
        %1330 = vmatpush1.msra.mxu0 %v1324
        %1331 = vmatprep.subr.mxu0 0.0
        %1332 = vmatpush1.msra.mxu0 0.0
        %1333 = vmatprep.subr.mxu0 0.0
        %1334 = vmatpush1.msra.mxu0 0.0
        %1335 = vmatprep.subr.mxu0 0.0
        %1336 = vmatpush1.msra.mxu0 0.0
        %1337 = vmatprep.subr.mxu0 0.0
        %1338 = vmatpush1.msra.mxu0 0.0
        %1339 = vmatprep.subr.mxu0 0.0
        %1340 = vmatpush1.msra.mxu0 0.0
        %1341 = vmatprep.subr.mxu0 0.0
        %1342 = vmatpush1.msra.mxu0 0.0
        %1343 = vmatprep.subr.mxu0 0.0
        %1344 = vmatpush1.msra.mxu0 0.0
        %1345 = vmatprep.subr.mxu0 0.0
        %1346 = vmatpush1.msra.mxu0 0.0
        %1347 = vmatprep.subr.mxu0 0.0
        %1348 = vmatpush1.msra.mxu0 0.0
        %1349 = vmatprep.subr.mxu0 0.0
        %1350 = vmatpush1.msra.mxu0 0.0
        %1351 = vmatprep.subr.mxu0 0.0
        %1352 = vmatpush1.msra.mxu0 0.0
        %1353 = vmatprep.subr.mxu0 0.0
        %1354 = vmatpush1.msra.mxu0 0.0
        %1355 = vmatprep.subr.mxu0 0.0
        %1356 = vmatpush1.msra.mxu0 0.0
        %1357 = vmatprep.subr.mxu0 0.0
        %1358 = vmatpush1.msra.mxu0 0.0
        %1359 = vmatprep.subr.mxu0 0.0
        %1360 = vmatpush1.msra.mxu0 0.0
        %1361 = vmatprep.subr.mxu0 0.0
        %1362 = vmatpush1.msra.mxu0 0.0
        %1363 = vmatprep.subr.mxu0 0.0
        %1364 = vmatpush1.msra.mxu0 0.0
        %1365 = vmatprep.subr.mxu0 0.0
        %1366 = vmatpush1.msra.mxu0 0.0
        %1367 = vmatprep.subr.mxu0 0.0
        %1368 = vmatpush1.msra.mxu0 0.0
        %1369 = vmatprep.subr.mxu0 0.0
        %1370 = vmatpush1.msra.mxu0 0.0
        %1371 = vmatprep.subr.mxu0 0.0
        %1372 = vmatpush1.msra.mxu0 0.0
        %1373 = vmatprep.subr.mxu0 0.0
        %1374 = vmatpush1.msra.mxu0 0.0
        %1375 = vmatprep.subr.mxu0 0.0
        %1376 = vmatpush1.msra.mxu0 0.0
        %1377 = vmatprep.subr.mxu0 0.0
        %1378 = vmatpush1.msra.mxu0 0.0
        %1379 = vmatprep.subr.mxu0 0.0
        %1380 = vmatpush1.msra.mxu0 0.0
        %1381 = vmatprep.subr.mxu0 0.0
        %1382 = vmatpush1.msra.mxu0 0.0
        %1383 = vmatprep.subr.mxu0 0.0
        %1384 = vmatpush1.msra.mxu0 0.0
        %1385 = vmatprep.subr.mxu0 0.0
        %1386 = vmatpush1.msra.mxu0 0.0
        %1387 = vmatprep.subr.mxu0 0.0
        %1388 = vmatpush1.msra.mxu0 0.0
        %1389 = vmatprep.subr.mxu0 0.0
        %1390 = vmatpush1.msra.mxu0 0.0
        %1391 = vmatprep.subr.mxu0 0.0
        %1392 = vmatpush1.msra.mxu0 0.0
        %1393 = vmatprep.mubr.f32.mxu0 0.0
        %1394 = vmatmul.mubr.f32.gmra.mrb[0].mxu0 %v1327
        %v1395 = vpop.f32.mrb[0].mxu0
        %v1396 = vadd.f32 0.0, %v1395
        %v1397 = vpop.f32.mrb[0].mxu0
        %1398 = vdwg.mxu0
        %1399 = vrot.lane.b32.xlu0 %v961, 64
        %v1400 = vpop.permute.xlu0 %1399
        %v1403 = vsel %vm968, %v1318, 0
        %1405 = vmatprep.subr.mxu0 0.0
        %1406 = vmatpush1.msra.mxu0 %v1400
        %1407 = vmatprep.subr.mxu0 0.0
        %1408 = vmatpush1.msra.mxu0 0.0
        %1409 = vmatprep.subr.mxu0 0.0
        %1410 = vmatpush1.msra.mxu0 0.0
        %1411 = vmatprep.subr.mxu0 0.0
        %1412 = vmatpush1.msra.mxu0 0.0
        %1413 = vmatprep.subr.mxu0 0.0
        %1414 = vmatpush1.msra.mxu0 0.0
        %1415 = vmatprep.subr.mxu0 0.0
        %1416 = vmatpush1.msra.mxu0 0.0
        %1417 = vmatprep.subr.mxu0 0.0
        %1418 = vmatpush1.msra.mxu0 0.0
        %1419 = vmatprep.subr.mxu0 0.0
        %1420 = vmatpush1.msra.mxu0 0.0
        %1421 = vmatprep.subr.mxu0 0.0
        %1422 = vmatpush1.msra.mxu0 0.0
        %1423 = vmatprep.subr.mxu0 0.0
        %1424 = vmatpush1.msra.mxu0 0.0
        %1425 = vmatprep.subr.mxu0 0.0
        %1426 = vmatpush1.msra.mxu0 0.0
        %1427 = vmatprep.subr.mxu0 0.0
        %1428 = vmatpush1.msra.mxu0 0.0
        %1429 = vmatprep.subr.mxu0 0.0
        %1430 = vmatpush1.msra.mxu0 0.0
        %1431 = vmatprep.subr.mxu0 0.0
        %1432 = vmatpush1.msra.mxu0 0.0
        %1433 = vmatprep.subr.mxu0 0.0
        %1434 = vmatpush1.msra.mxu0 0.0
        %1435 = vmatprep.subr.mxu0 0.0
        %1436 = vmatpush1.msra.mxu0 0.0
        %1437 = vmatprep.subr.mxu0 0.0
        %1438 = vmatpush1.msra.mxu0 0.0
        %1439 = vmatprep.subr.mxu0 0.0
        %1440 = vmatpush1.msra.mxu0 0.0
        %1441 = vmatprep.subr.mxu0 0.0
        %1442 = vmatpush1.msra.mxu0 0.0
        %1443 = vmatprep.subr.mxu0 0.0
        %1444 = vmatpush1.msra.mxu0 0.0
        %1445 = vmatprep.subr.mxu0 0.0
        %1446 = vmatpush1.msra.mxu0 0.0
        %1447 = vmatprep.subr.mxu0 0.0
        %1448 = vmatpush1.msra.mxu0 0.0
        %1449 = vmatprep.subr.mxu0 0.0
        %1450 = vmatpush1.msra.mxu0 0.0
        %1451 = vmatprep.subr.mxu0 0.0
        %1452 = vmatpush1.msra.mxu0 0.0
        %1453 = vmatprep.subr.mxu0 0.0
        %1454 = vmatpush1.msra.mxu0 0.0
        %1455 = vmatprep.subr.mxu0 0.0
        %1456 = vmatpush1.msra.mxu0 0.0
        %1457 = vmatprep.subr.mxu0 0.0
        %1458 = vmatpush1.msra.mxu0 0.0
        %1459 = vmatprep.subr.mxu0 0.0
        %1460 = vmatpush1.msra.mxu0 0.0
        %1461 = vmatprep.subr.mxu0 0.0
        %1462 = vmatpush1.msra.mxu0 0.0
        %1463 = vmatprep.subr.mxu0 0.0
        %1464 = vmatpush1.msra.mxu0 0.0
        %1465 = vmatprep.subr.mxu0 0.0
        %1466 = vmatpush1.msra.mxu0 0.0
        %1467 = vmatprep.subr.mxu0 0.0
        %1468 = vmatpush1.msra.mxu0 0.0
        %1469 = vmatprep.mubr.f32.mxu0 0.0
        %1470 = vmatmul.mubr.f32.gmra.mrb[0].mxu0 %v1403
        %v1471 = vpop.f32.mrb[0].mxu0
        %v1472 = vadd.f32 0.0, %v1471
        %v1473 = vpop.f32.mrb[0].mxu0
        %1474 = vdwg.mxu0
        %1475 = vrot.lane.b32.xlu0 %v963, 64
        %v1476 = vpop.permute.xlu0 %1475
        %v1479 = vsel %vm968, %v1320, 0
        %1481 = vmatprep.subr.mxu0 0.0
        %1482 = vmatpush1.msra.mxu0 %v1476
        %1483 = vmatprep.subr.mxu0 0.0
        %1484 = vmatpush1.msra.mxu0 0.0
        %1485 = vmatprep.subr.mxu0 0.0
        %1486 = vmatpush1.msra.mxu0 0.0
        %1487 = vmatprep.subr.mxu0 0.0
        %1488 = vmatpush1.msra.mxu0 0.0
        %1489 = vmatprep.subr.mxu0 0.0
        %1490 = vmatpush1.msra.mxu0 0.0
        %1491 = vmatprep.subr.mxu0 0.0
        %1492 = vmatpush1.msra.mxu0 0.0
        %1493 = vmatprep.subr.mxu0 0.0
        %1494 = vmatpush1.msra.mxu0 0.0
        %1495 = vmatprep.subr.mxu0 0.0
        %1496 = vmatpush1.msra.mxu0 0.0
        %1497 = vmatprep.subr.mxu0 0.0
        %1498 = vmatpush1.msra.mxu0 0.0
        %1499 = vmatprep.subr.mxu0 0.0
        %1500 = vmatpush1.msra.mxu0 0.0
        %1501 = vmatprep.subr.mxu0 0.0
        %1502 = vmatpush1.msra.mxu0 0.0
        %1503 = vmatprep.subr.mxu0 0.0
        %1504 = vmatpush1.msra.mxu0 0.0
        %1505 = vmatprep.subr.mxu0 0.0
        %1506 = vmatpush1.msra.mxu0 0.0
        %1507 = vmatprep.subr.mxu0 0.0
        %1508 = vmatpush1.msra.mxu0 0.0
        %1509 = vmatprep.subr.mxu0 0.0
        %1510 = vmatpush1.msra.mxu0 0.0
        %1511 = vmatprep.subr.mxu0 0.0
        %1512 = vmatpush1.msra.mxu0 0.0
        %1513 = vmatprep.subr.mxu0 0.0
        %1514 = vmatpush1.msra.mxu0 0.0
        %1515 = vmatprep.subr.mxu0 0.0
        %1516 = vmatpush1.msra.mxu0 0.0
        %1517 = vmatprep.subr.mxu0 0.0
        %1518 = vmatpush1.msra.mxu0 0.0
        %1519 = vmatprep.subr.mxu0 0.0
        %1520 = vmatpush1.msra.mxu0 0.0
        %1521 = vmatprep.subr.mxu0 0.0
        %1522 = vmatpush1.msra.mxu0 0.0
        %1523 = vmatprep.subr.mxu0 0.0
        %1524 = vmatpush1.msra.mxu0 0.0
        %1525 = vmatprep.subr.mxu0 0.0
        %1526 = vmatpush1.msra.mxu0 0.0
        %1527 = vmatprep.subr.mxu0 0.0
        %1528 = vmatpush1.msra.mxu0 0.0
        %1529 = vmatprep.subr.mxu0 0.0
        %1530 = vmatpush1.msra.mxu0 0.0
        %1531 = vmatprep.subr.mxu0 0.0
        %1532 = vmatpush1.msra.mxu0 0.0
        %1533 = vmatprep.subr.mxu0 0.0
        %1534 = vmatpush1.msra.mxu0 0.0
        %1535 = vmatprep.subr.mxu0 0.0
        %1536 = vmatpush1.msra.mxu0 0.0
        %1537 = vmatprep.subr.mxu0 0.0
        %1538 = vmatpush1.msra.mxu0 0.0
        %1539 = vmatprep.subr.mxu0 0.0
        %1540 = vmatpush1.msra.mxu0 0.0
        %1541 = vmatprep.subr.mxu0 0.0
        %1542 = vmatpush1.msra.mxu0 0.0
        %1543 = vmatprep.subr.mxu0 0.0
        %1544 = vmatpush1.msra.mxu0 0.0
        %1545 = vmatprep.mubr.f32.mxu0 0.0
        %1546 = vmatmul.mubr.f32.gmra.mrb[0].mxu0 %v1479
        %v1547 = vpop.f32.mrb[0].mxu0
        %v1548 = vadd.f32 0.0, %v1547
        %v1549 = vpop.f32.mrb[0].mxu0
        %1550 = vdwg.mxu0
        %1551 = vrot.lane.b32.xlu0 %v965, 64
        %v1552 = vpop.permute.xlu0 %1551
        %v1555 = vsel %vm968, %v1322, 0
        %1557 = vmatprep.subr.mxu0 0.0
        %1558 = vmatpush1.msra.mxu0 %v1552
        %1559 = vmatprep.subr.mxu0 0.0
        %1560 = vmatpush1.msra.mxu0 0.0
        %1561 = vmatprep.subr.mxu0 0.0
        %1562 = vmatpush1.msra.mxu0 0.0
        %1563 = vmatprep.subr.mxu0 0.0
        %1564 = vmatpush1.msra.mxu0 0.0
        %1565 = vmatprep.subr.mxu0 0.0
        %1566 = vmatpush1.msra.mxu0 0.0
        %1567 = vmatprep.subr.mxu0 0.0
        %1568 = vmatpush1.msra.mxu0 0.0
        %1569 = vmatprep.subr.mxu0 0.0
        %1570 = vmatpush1.msra.mxu0 0.0
        %1571 = vmatprep.subr.mxu0 0.0
        %1572 = vmatpush1.msra.mxu0 0.0
        %1573 = vmatprep.subr.mxu0 0.0
        %1574 = vmatpush1.msra.mxu0 0.0
        %1575 = vmatprep.subr.mxu0 0.0
        %1576 = vmatpush1.msra.mxu0 0.0
        %1577 = vmatprep.subr.mxu0 0.0
        %1578 = vmatpush1.msra.mxu0 0.0
        %1579 = vmatprep.subr.mxu0 0.0
        %1580 = vmatpush1.msra.mxu0 0.0
        %1581 = vmatprep.subr.mxu0 0.0
        %1582 = vmatpush1.msra.mxu0 0.0
        %1583 = vmatprep.subr.mxu0 0.0
        %1584 = vmatpush1.msra.mxu0 0.0
        %1585 = vmatprep.subr.mxu0 0.0
        %1586 = vmatpush1.msra.mxu0 0.0
        %1587 = vmatprep.subr.mxu0 0.0
        %1588 = vmatpush1.msra.mxu0 0.0
        %1589 = vmatprep.subr.mxu0 0.0
        %1590 = vmatpush1.msra.mxu0 0.0
        %1591 = vmatprep.subr.mxu0 0.0
        %1592 = vmatpush1.msra.mxu0 0.0
        %1593 = vmatprep.subr.mxu0 0.0
        %1594 = vmatpush1.msra.mxu0 0.0
        %1595 = vmatprep.subr.mxu0 0.0
        %1596 = vmatpush1.msra.mxu0 0.0
        %1597 = vmatprep.subr.mxu0 0.0
        %1598 = vmatpush1.msra.mxu0 0.0
        %1599 = vmatprep.subr.mxu0 0.0
        %1600 = vmatpush1.msra.mxu0 0.0
        %1601 = vmatprep.subr.mxu0 0.0
        %1602 = vmatpush1.msra.mxu0 0.0
        %1603 = vmatprep.subr.mxu0 0.0
        %1604 = vmatpush1.msra.mxu0 0.0
        %1605 = vmatprep.subr.mxu0 0.0
        %1606 = vmatpush1.msra.mxu0 0.0
        %1607 = vmatprep.subr.mxu0 0.0
        %1608 = vmatpush1.msra.mxu0 0.0
        %1609 = vmatprep.subr.mxu0 0.0
        %1610 = vmatpush1.msra.mxu0 0.0
        %1611 = vmatprep.subr.mxu0 0.0
        %1612 = vmatpush1.msra.mxu0 0.0
        %1613 = vmatprep.subr.mxu0 0.0
        %1614 = vmatpush1.msra.mxu0 0.0
        %1615 = vmatprep.subr.mxu0 0.0
        %1616 = vmatpush1.msra.mxu0 0.0
        %1617 = vmatprep.subr.mxu0 0.0
        %1618 = vmatpush1.msra.mxu0 0.0
        %1619 = vmatprep.subr.mxu0 0.0
        %1620 = vmatpush1.msra.mxu0 0.0
        %1621 = vmatprep.mubr.f32.mxu0 0.0
        %1622 = vmatmul.mubr.f32.gmra.mrb[0].mxu0 %v1555
        %v1623 = vpop.f32.mrb[0].mxu0
        %v1624 = vadd.f32 0.0, %v1623
        %v1625 = vpop.f32.mrb[0].mxu0
        %1626 = vdwg.mxu0
        %1628 = vrot.lane.b32.xlu0 %v1472, 8
        %v1629 = vpop.permute.xlu0 %1628
        %1632 = vrot.lane.b32.xlu0 %v1548, 16
        %v1633 = vpop.permute.xlu0 %1632
        %1636 = vrot.lane.b32.xlu0 %v1624, 24
        %v1637 = vpop.permute.xlu0 %1636
        %v1639 = vsel %vm968, %v1396, %v1629
        %vm1640 = vcmask 130048
        %v1641 = vsel %vm1640, %v1639, %v1633
        %vm1642 = vcmask 195584
        %v1643 = vsel %vm1642, %v1641, %v1637
        %v1644 = vpack.c.bf16 %v1643, %v1643
        %v1645 = vld [vmem:[%s10] sm:$0xf]
        %v1646 = vld [vmem:[%s10 + $0x4] sm:$0xf]
        %v1647 = vld [vmem:[%s10 + $0x8] sm:$0xf]
        %v1648 = vld [vmem:[%s10 + $0xc] sm:$0xf]
        %v1649 = vld [vmem:[%s11] sm:$0x1]
        %v1651 = vlaneseq
        %v1652 = vshrl.u32 %v1651, 7
        %v1653 = vsub.s32 0, %v1652
        %v1654 = vrot.slane %v1649, %v1653
        %v1660 = vunpack.c.l.b16 %v1645
        %v1661 = vunpack.c.l.b16 %v1646
        %v1662 = vunpack.c.l.b16 %v1647
        %v1663 = vunpack.c.l.b16 %v1648
        %v1664 = vpack.c.b16 %v1661, %v1660
        %v1665 = vpack.c.b16 %v1663, %v1662
        %v1669 = vsel %vm852, %v1644, 0
        %1671 = vmatprep.subr.bf16.mxu0 0
        %1672 = vmatpush1.bf16.msra.mxu0 %v1664
        %1673 = vmatprep.subr.bf16.mxu0 0
        %1674 = vmatpush1.bf16.msra.mxu0 %v1665
        %1675 = vmatprep.subr.bf16.mxu0 0
        %1676 = vmatpush1.bf16.msra.mxu0 0
        %1677 = vmatprep.subr.bf16.mxu0 0
        %1678 = vmatpush1.bf16.msra.mxu0 0
        %1679 = vmatprep.subr.bf16.mxu0 0
        %1680 = vmatpush1.bf16.msra.mxu0 0
        %1681 = vmatprep.subr.bf16.mxu0 0
        %1682 = vmatpush1.bf16.msra.mxu0 0
        %1683 = vmatprep.subr.bf16.mxu0 0
        %1684 = vmatpush1.bf16.msra.mxu0 0
        %1685 = vmatprep.subr.bf16.mxu0 0
        %1686 = vmatpush1.bf16.msra.mxu0 0
        %1687 = vmatprep.subr.bf16.mxu0 0
        %1688 = vmatpush1.bf16.msra.mxu0 0
        %1689 = vmatprep.subr.bf16.mxu0 0
        %1690 = vmatpush1.bf16.msra.mxu0 0
        %1691 = vmatprep.subr.bf16.mxu0 0
        %1692 = vmatpush1.bf16.msra.mxu0 0
        %1693 = vmatprep.subr.bf16.mxu0 0
        %1694 = vmatpush1.bf16.msra.mxu0 0
        %1695 = vmatprep.subr.bf16.mxu0 0
        %1696 = vmatpush1.bf16.msra.mxu0 0
        %1697 = vmatprep.subr.bf16.mxu0 0
        %1698 = vmatpush1.bf16.msra.mxu0 0
        %1699 = vmatprep.subr.bf16.mxu0 0
        %1700 = vmatpush1.bf16.msra.mxu0 0
        %1701 = vmatprep.subr.bf16.mxu0 0
        %1702 = vmatpush1.bf16.msra.mxu0 0
        %1703 = vmatprep.mubr.bf16.mxu0 0
        %1704 = vmatmul.mubr.bf16.gmra.mrb[0].mxu0 %v1669
        %v1705 = vpop.f32.mrb[0].mxu0
        %v1706 = vadd.f32 %v1654, %v1705
        %v1707 = vpop.f32.mrb[0].mxu0
        %v1708 = vpop.f32.mrb[0].mxu0
        %v1709 = vpop.f32.mrb[0].mxu0
        %1710 = vdwg.mxu0
        %v1711 = vadd.f32 %v1706, %v882
        %v1712 = vld [vmem:[%s12] sm:$0x1]
        %v1713 = vld [vmem:[%s13] sm:$0x1]
        %v1714 = vsel %vm852, %v1711, 0.0
        %1715 = vadd.xlane.f32.xlu0 %v1714
        %v1716 = vpop.xlane.xlu0 %1715
        %v1717 = vmul.f32 %v1716, %v856
        %v1718 = vmul.f32 %v1711, %v1711
        %v1719 = vsel %vm852, %v1718, 0.0
        %1720 = vadd.xlane.f32.xlu0 %v1719
        %v1721 = vpop.xlane.xlu0 %1720
        %v1722 = vmul.f32 %v1721, %v856
        %v1723 = vmul.f32 %v1717, %v1717
        %v1724 = vsub.f32 %v1722, %v1723
        %v1725 = vsub.f32 %v1711, %v1717
        %v1726 = vadd.f32 %v1724, 1e-12
        %v1727 = vrsqrt.pop %v1726
        %v1728 = vmul.f32 %v1725, %v1727
        %v1730 = vlaneseq
        %v1731 = vshrl.u32 %v1730, 7
        %v1732 = vsub.s32 0, %v1731
        %v1733 = vrot.slane %v1712, %v1732
        %v1735 = vmul.f32 %v1728, %v1733
        %v1737 = vlaneseq
        %v1738 = vshrl.u32 %v1737, 7
        %v1739 = vsub.s32 0, %v1738
        %v1740 = vrot.slane %v1713, %v1739
        %v1742 = vadd.f32 %v1735, %v1740
        %v1743 = vpack.c.bf16 %v1742, %v1742
        %v1744 = vld [vmem:[%s14] sm:$0xf]
        %v1745 = vld [vmem:[%s14 + $0x4] sm:$0xf]
        %v1746 = vld [vmem:[%s14 + $0x8] sm:$0xf]
        %v1747 = vld [vmem:[%s14 + $0xc] sm:$0xf]
        %v1748 = vld [vmem:[%s15] sm:$0x1]
        %v1750 = vlaneseq
        %v1751 = vshrl.u32 %v1750, 7
        %v1752 = vsub.s32 0, %v1751
        %v1753 = vrot.slane %v1748, %v1752
        %v1759 = vunpack.c.l.b16 %v1744
        %v1760 = vunpack.c.l.b16 %v1745
        %v1761 = vunpack.c.l.b16 %v1746
        %v1762 = vunpack.c.l.b16 %v1747
        %v1763 = vpack.c.b16 %v1760, %v1759
        %v1764 = vpack.c.b16 %v1762, %v1761
        %v1768 = vsel %vm852, %v1743, 0
        %1770 = vmatprep.subr.bf16.mxu0 0
        %1771 = vmatpush1.bf16.msra.mxu0 %v1763
        %1772 = vmatprep.subr.bf16.mxu0 0
        %1773 = vmatpush1.bf16.msra.mxu0 %v1764
        %1774 = vmatprep.subr.bf16.mxu0 0
        %1775 = vmatpush1.bf16.msra.mxu0 0
        %1776 = vmatprep.subr.bf16.mxu0 0
        %1777 = vmatpush1.bf16.msra.mxu0 0
        %1778 = vmatprep.subr.bf16.mxu0 0
        %1779 = vmatpush1.bf16.msra.mxu0 0
        %1780 = vmatprep.subr.bf16.mxu0 0
        %1781 = vmatpush1.bf16.msra.mxu0 0
        %1782 = vmatprep.subr.bf16.mxu0 0
        %1783 = vmatpush1.bf16.msra.mxu0 0
        %1784 = vmatprep.subr.bf16.mxu0 0
        %1785 = vmatpush1.bf16.msra.mxu0 0
        %1786 = vmatprep.subr.bf16.mxu0 0
        %1787 = vmatpush1.bf16.msra.mxu0 0
        %1788 = vmatprep.subr.bf16.mxu0 0
        %1789 = vmatpush1.bf16.msra.mxu0 0
        %1790 = vmatprep.subr.bf16.mxu0 0
        %1791 = vmatpush1.bf16.msra.mxu0 0
        %1792 = vmatprep.subr.bf16.mxu0 0
        %1793 = vmatpush1.bf16.msra.mxu0 0
        %1794 = vmatprep.subr.bf16.mxu0 0
        %1795 = vmatpush1.bf16.msra.mxu0 0
        %1796 = vmatprep.subr.bf16.mxu0 0
        %1797 = vmatpush1.bf16.msra.mxu0 0
        %1798 = vmatprep.subr.bf16.mxu0 0
        %1799 = vmatpush1.bf16.msra.mxu0 0
        %1800 = vmatprep.subr.bf16.mxu0 0
        %1801 = vmatpush1.bf16.msra.mxu0 0
        %1802 = vmatprep.mubr.bf16.mxu0 0
        %1803 = vmatmul.mubr.bf16.gmra.mrb[0].mxu0 %v1768
        %v1804 = vpop.f32.mrb[0].mxu0
        %v1805 = vadd.f32 %v1753, %v1804
        %v1806 = vpop.f32.mrb[0].mxu0
        %v1807 = vpop.f32.mrb[0].mxu0
        %v1808 = vpop.f32.mrb[0].mxu0
        %1809 = vdwg.mxu0
        %v1810 = vmul.f32 %v1805, 0.5
        %v1811 = vmul.f32 %v1805, 0.70710677
        %v1812 = verf.f32.pop %v1811
        %v1813 = vadd.f32 %v1812, 1.0
        %v1814 = vmul.f32 %v1810, %v1813
        %v1815 = vpack.c.bf16 %v1814, %v1814
        %v1816 = vld [vmem:[%s16] sm:$0xf]
        %v1817 = vld [vmem:[%s16 + $0x4] sm:$0xf]
        %v1818 = vld [vmem:[%s16 + $0x8] sm:$0xf]
        %v1819 = vld [vmem:[%s16 + $0xc] sm:$0xf]
        %v1820 = vld [vmem:[%s16 + $0x10] sm:$0xf]
        %v1821 = vld [vmem:[%s16 + $0x14] sm:$0xf]
        %v1822 = vld [vmem:[%s16 + $0x18] sm:$0xf]
        %v1823 = vld [vmem:[%s16 + $0x1c] sm:$0xf]
        %v1824 = vld [vmem:[%s17] sm:$0x1]
        %v1826 = vlaneseq
        %v1827 = vshrl.u32 %v1826, 7
        %v1828 = vsub.s32 0, %v1827
        %v1829 = vrot.slane %v1824, %v1828
        %v1839 = vunpack.c.l.b16 %v1816
        %v1840 = vunpack.c.l.b16 %v1817
        %v1841 = vunpack.c.l.b16 %v1818
        %v1842 = vunpack.c.l.b16 %v1819
        %v1843 = vunpack.c.l.b16 %v1820
        %v1844 = vunpack.c.l.b16 %v1821
        %v1845 = vunpack.c.l.b16 %v1822
        %v1846 = vunpack.c.l.b16 %v1823
        %v1847 = vpack.c.b16 %v1840, %v1839
        %v1848 = vpack.c.b16 %v1842, %v1841
        %v1849 = vpack.c.b16 %v1844, %v1843
        %v1850 = vpack.c.b16 %v1846, %v1845
        %vm1855 = vcmask 523264
        %v1857 = vsel %vm1855, %v1815, 0
        %1859 = vmatprep.subr.bf16.mxu0 0
        %1860 = vmatpush1.bf16.msra.mxu0 %v1847
        %1861 = vmatprep.subr.bf16.mxu0 0
        %1862 = vmatpush1.bf16.msra.mxu0 %v1848
        %1863 = vmatprep.subr.bf16.mxu0 0
        %1864 = vmatpush1.bf16.msra.mxu0 %v1849
        %1865 = vmatprep.subr.bf16.mxu0 0
        %1866 = vmatpush1.bf16.msra.mxu0 %v1850
        %1867 = vmatprep.subr.bf16.mxu0 0
        %1868 = vmatpush1.bf16.msra.mxu0 0
        %1869 = vmatprep.subr.bf16.mxu0 0
        %1870 = vmatpush1.bf16.msra.mxu0 0
        %1871 = vmatprep.subr.bf16.mxu0 0
        %1872 = vmatpush1.bf16.msra.mxu0 0
        %1873 = vmatprep.subr.bf16.mxu0 0
        %1874 = vmatpush1.bf16.msra.mxu0 0
        %1875 = vmatprep.subr.bf16.mxu0 0
        %1876 = vmatpush1.bf16.msra.mxu0 0
        %1877 = vmatprep.subr.bf16.mxu0 0
        %1878 = vmatpush1.bf16.msra.mxu0 0
        %1879 = vmatprep.subr.bf16.mxu0 0
        %1880 = vmatpush1.bf16.msra.mxu0 0
        %1881 = vmatprep.subr.bf16.mxu0 0
        %1882 = vmatpush1.bf16.msra.mxu0 0
        %1883 = vmatprep.subr.bf16.mxu0 0
        %1884 = vmatpush1.bf16.msra.mxu0 0
        %1885 = vmatprep.subr.bf16.mxu0 0
        %1886 = vmatpush1.bf16.msra.mxu0 0
        %1887 = vmatprep.subr.bf16.mxu0 0
        %1888 = vmatpush1.bf16.msra.mxu0 0
        %1889 = vmatprep.subr.bf16.mxu0 0
        %1890 = vmatpush1.bf16.msra.mxu0 0
        %1891 = vmatprep.mubr.bf16.mxu0 0
        %1892 = vmatmul.mubr.bf16.gmra.mrb[0].mxu0 %v1857
        %v1893 = vpop.f32.mrb[0].mxu0
        %v1894 = vadd.f32 %v1829, %v1893
        %v1895 = vpop.f32.mrb[0].mxu0
        %v1896 = vpop.f32.mrb[0].mxu0
        %v1897 = vpop.f32.mrb[0].mxu0
        %1898 = vdwg.mxu0
        %v1899 = vadd.f32 %v1894, %v1742
        %v1900 = vld [vmem:[%s18] sm:$0x1]
        %v1901 = vld [vmem:[%s19] sm:$0x1]
        %v1902 = vsel %vm852, %v1899, 0.0
        %1903 = vadd.xlane.f32.xlu0 %v1902
        %v1904 = vpop.xlane.xlu0 %1903
        %v1905 = vmul.f32 %v1904, %v856
        %v1906 = vmul.f32 %v1899, %v1899
        %v1907 = vsel %vm852, %v1906, 0.0
        %1908 = vadd.xlane.f32.xlu0 %v1907
        %v1909 = vpop.xlane.xlu0 %1908
        %v1910 = vmul.f32 %v1909, %v856
        %v1911 = vmul.f32 %v1905, %v1905
        %v1912 = vsub.f32 %v1910, %v1911
        %v1913 = vsub.f32 %v1899, %v1905
        %v1914 = vadd.f32 %v1912, 1e-12
        %v1915 = vrsqrt.pop %v1914
        %v1916 = vmul.f32 %v1913, %v1915
        %v1918 = vlaneseq
        %v1919 = vshrl.u32 %v1918, 7
        %v1920 = vsub.s32 0, %v1919
        %v1921 = vrot.slane %v1900, %v1920
        %v1923 = vmul.f32 %v1916, %v1921
        %v1925 = vlaneseq
        %v1926 = vshrl.u32 %v1925, 7
        %v1927 = vsub.s32 0, %v1926
        %v1928 = vrot.slane %v1901, %v1927
        %v1930 = vadd.f32 %v1923, %v1928
        %v1931 = vpack.c.bf16 %v1930, %v1930
        %s1932 = scalar_lea.vmem %s8, 16
        %v1933 = vld [vmem:[%s1932] sm:$0xf]
        %v1934 = vld [vmem:[%s1932 + $0x4] sm:$0xf]
        %v1935 = vld [vmem:[%s1932 + $0x8] sm:$0xf]
        %v1936 = vld [vmem:[%s1932 + $0xc] sm:$0xf]
        %s1937 = scalar_lea.vmem %s9, 1
        %v1938 = vld [vmem:[%s1937] sm:$0x1]
        %v1940 = vlaneseq
        %v1941 = vshrl.u32 %v1940, 7
        %v1942 = vsub.s32 0, %v1941
        %v1943 = vrot.slane %v1938, %v1942
        %v1949 = vunpack.c.l.b16 %v1933
        %v1950 = vunpack.c.l.b16 %v1934
        %v1951 = vunpack.c.l.b16 %v1935
        %v1952 = vunpack.c.l.b16 %v1936
        %v1953 = vpack.c.b16 %v1950, %v1949
        %v1954 = vpack.c.b16 %v1952, %v1951
        %v1958 = vsel %vm852, %v1931, 0
        %1960 = vmatprep.subr.bf16.mxu0 0
        %1961 = vmatpush1.bf16.msra.mxu0 %v1953
        %1962 = vmatprep.subr.bf16.mxu0 0
        %1963 = vmatpush1.bf16.msra.mxu0 %v1954
        %1964 = vmatprep.subr.bf16.mxu0 0
        %1965 = vmatpush1.bf16.msra.mxu0 0
        %1966 = vmatprep.subr.bf16.mxu0 0
        %1967 = vmatpush1.bf16.msra.mxu0 0
        %1968 = vmatprep.subr.bf16.mxu0 0
        %1969 = vmatpush1.bf16.msra.mxu0 0
        %1970 = vmatprep.subr.bf16.mxu0 0
        %1971 = vmatpush1.bf16.msra.mxu0 0
        %1972 = vmatprep.subr.bf16.mxu0 0
        %1973 = vmatpush1.bf16.msra.mxu0 0
        %1974 = vmatprep.subr.bf16.mxu0 0
        %1975 = vmatpush1.bf16.msra.mxu0 0
        %1976 = vmatprep.subr.bf16.mxu0 0
        %1977 = vmatpush1.bf16.msra.mxu0 0
        %1978 = vmatprep.subr.bf16.mxu0 0
        %1979 = vmatpush1.bf16.msra.mxu0 0
        %1980 = vmatprep.subr.bf16.mxu0 0
        %1981 = vmatpush1.bf16.msra.mxu0 0
        %1982 = vmatprep.subr.bf16.mxu0 0
        %1983 = vmatpush1.bf16.msra.mxu0 0
        %1984 = vmatprep.subr.bf16.mxu0 0
        %1985 = vmatpush1.bf16.msra.mxu0 0
        %1986 = vmatprep.subr.bf16.mxu0 0
        %1987 = vmatpush1.bf16.msra.mxu0 0
        %1988 = vmatprep.subr.bf16.mxu0 0
        %1989 = vmatpush1.bf16.msra.mxu0 0
        %1990 = vmatprep.subr.bf16.mxu0 0
        %1991 = vmatpush1.bf16.msra.mxu0 0
        %1992 = vmatprep.mubr.bf16.mxu0 0
        %1993 = vmatmul.mubr.bf16.gmra.mrb[0].mxu0 %v1958
        %v1994 = vpop.f32.mrb[0].mxu0
        %v1995 = vadd.f32 %v1943, %v1994
        %v1996 = vpop.f32.mrb[0].mxu0
        %v1997 = vpop.f32.mrb[0].mxu0
        %v1998 = vpop.f32.mrb[0].mxu0
        %1999 = vdwg.mxu0
        %2001 = vrot.lane.b32.xlu0 %v1995, 120
        %v2002 = vpop.permute.xlu0 %2001
        %2003 = vrot.lane.b32.xlu0 %v1995, 112
        %v2004 = vpop.permute.xlu0 %2003
        %2005 = vrot.lane.b32.xlu0 %v1995, 104
        %v2006 = vpop.permute.xlu0 %2005
        %2007 = vrot.lane.b32.xlu0 %v1995, 96
        %v2008 = vpop.permute.xlu0 %2007
        %v2009 = vsel %vm968, %v1995, 0
        %v2011 = vsel %vm968, %v2008, 0
        %2013 = vmatprep.subr.mxu0 0.0
        %2014 = vmatpush1.xpose.msra.mxu0 %v2011
        %2015 = vmatprep.subr.mxu0 0.0
        %2016 = vmatpush1.xpose.msra.mxu0 0.0
        %2017 = vmatprep.subr.mxu0 0.0
        %2018 = vmatpush1.xpose.msra.mxu0 0.0
        %2019 = vmatprep.subr.mxu0 0.0
        %2020 = vmatpush1.xpose.msra.mxu0 0.0
        %2021 = vmatprep.subr.mxu0 0.0
        %2022 = vmatpush1.xpose.msra.mxu0 0.0
        %2023 = vmatprep.subr.mxu0 0.0
        %2024 = vmatpush1.xpose.msra.mxu0 0.0
        %2025 = vmatprep.subr.mxu0 0.0
        %2026 = vmatpush1.xpose.msra.mxu0 0.0
        %2027 = vmatprep.subr.mxu0 0.0
        %2028 = vmatpush1.xpose.msra.mxu0 0.0
        %2029 = vmatprep.subr.mxu0 0.0
        %2030 = vmatpush1.xpose.msra.mxu0 0.0
        %2031 = vmatprep.subr.mxu0 0.0
        %2032 = vmatpush1.xpose.msra.mxu0 0.0
        %2033 = vmatprep.subr.mxu0 0.0
        %2034 = vmatpush1.xpose.msra.mxu0 0.0
        %2035 = vmatprep.subr.mxu0 0.0
        %2036 = vmatpush1.xpose.msra.mxu0 0.0
        %2037 = vmatprep.subr.mxu0 0.0
        %2038 = vmatpush1.xpose.msra.mxu0 0.0
        %2039 = vmatprep.subr.mxu0 0.0
        %2040 = vmatpush1.xpose.msra.mxu0 0.0
        %2041 = vmatprep.subr.mxu0 0.0
        %2042 = vmatpush1.xpose.msra.mxu0 0.0
        %2043 = vmatprep.subr.mxu0 0.0
        %2044 = vmatpush1.xpose.msra.mxu0 0.0
        %2045 = vmatprep.subr.mxu0 0.0
        %2046 = vmatpush1.xpose.msra.mxu0 0.0
        %2047 = vmatprep.subr.mxu0 0.0
        %2048 = vmatpush1.xpose.msra.mxu0 0.0
        %2049 = vmatprep.subr.mxu0 0.0
        %2050 = vmatpush1.xpose.msra.mxu0 0.0
        %2051 = vmatprep.subr.mxu0 0.0
        %2052 = vmatpush1.xpose.msra.mxu0 0.0
        %2053 = vmatprep.subr.mxu0 0.0
        %2054 = vmatpush1.xpose.msra.mxu0 0.0
        %2055 = vmatprep.subr.mxu0 0.0
        %2056 = vmatpush1.xpose.msra.mxu0 0.0
        %2057 = vmatprep.subr.mxu0 0.0
        %2058 = vmatpush1.xpose.msra.mxu0 0.0
        %2059 = vmatprep.subr.mxu0 0.0
        %2060 = vmatpush1.xpose.msra.mxu0 0.0
        %2061 = vmatprep.subr.mxu0 0.0
        %2062 = vmatpush1.xpose.msra.mxu0 0.0
        %2063 = vmatprep.subr.mxu0 0.0
        %2064 = vmatpush1.xpose.msra.mxu0 0.0
        %2065 = vmatprep.subr.mxu0 0.0
        %2066 = vmatpush1.xpose.msra.mxu0 0.0
        %2067 = vmatprep.subr.mxu0 0.0
        %2068 = vmatpush1.xpose.msra.mxu0 0.0
        %2069 = vmatprep.subr.mxu0 0.0
        %2070 = vmatpush1.xpose.msra.mxu0 0.0
        %2071 = vmatprep.subr.mxu0 0.0
        %2072 = vmatpush1.xpose.msra.mxu0 0.0
        %2073 = vmatprep.subr.mxu0 0.0
        %2074 = vmatpush1.xpose.msra.mxu0 0.0
        %2075 = vmatprep.subr.mxu0 0.0
        %2076 = vmatpush1.xpose.msra.mxu0 0.0
        %2077 = vmatprep.mubr.f32.mxu0 0.0
        %2078 = vmatmul.mubr.f32.gmra.mrb[0].mxu0 %v2009
        %v2079 = vpop.f32.mrb[0].mxu0
        %v2080 = vadd.f32 0.0, %v2079
        %v2081 = vpop.f32.mrb[0].mxu0
        %2082 = vdwg.mxu0
        %2083 = vrot.lane.b32.xlu0 %v2002, 96
        %v2084 = vpop.permute.xlu0 %2083
        %v2085 = vsel %vm968, %v2002, 0
        %v2087 = vsel %vm968, %v2084, 0
        %2089 = vmatprep.subr.mxu0 0.0
        %2090 = vmatpush1.xpose.msra.mxu0 %v2087
        %2091 = vmatprep.subr.mxu0 0.0
        %2092 = vmatpush1.xpose.msra.mxu0 0.0
        %2093 = vmatprep.subr.mxu0 0.0
        %2094 = vmatpush1.xpose.msra.mxu0 0.0
        %2095 = vmatprep.subr.mxu0 0.0
        %2096 = vmatpush1.xpose.msra.mxu0 0.0
        %2097 = vmatprep.subr.mxu0 0.0
        %2098 = vmatpush1.xpose.msra.mxu0 0.0
        %2099 = vmatprep.subr.mxu0 0.0
        %2100 = vmatpush1.xpose.msra.mxu0 0.0
        %2101 = vmatprep.subr.mxu0 0.0
        %2102 = vmatpush1.xpose.msra.mxu0 0.0
        %2103 = vmatprep.subr.mxu0 0.0
        %2104 = vmatpush1.xpose.msra.mxu0 0.0
        %2105 = vmatprep.subr.mxu0 0.0
        %2106 = vmatpush1.xpose.msra.mxu0 0.0
        %2107 = vmatprep.subr.mxu0 0.0
        %2108 = vmatpush1.xpose.msra.mxu0 0.0
        %2109 = vmatprep.subr.mxu0 0.0
        %2110 = vmatpush1.xpose.msra.mxu0 0.0
        %2111 = vmatprep.subr.mxu0 0.0
        %2112 = vmatpush1.xpose.msra.mxu0 0.0
        %2113 = vmatprep.subr.mxu0 0.0
        %2114 = vmatpush1.xpose.msra.mxu0 0.0
        %2115 = vmatprep.subr.mxu0 0.0
        %2116 = vmatpush1.xpose.msra.mxu0 0.0
        %2117 = vmatprep.subr.mxu0 0.0
        %2118 = vmatpush1.xpose.msra.mxu0 0.0
        %2119 = vmatprep.subr.mxu0 0.0
        %2120 = vmatpush1.xpose.msra.mxu0 0.0
        %2121 = vmatprep.subr.mxu0 0.0
        %2122 = vmatpush1.xpose.msra.mxu0 0.0
        %2123 = vmatprep.subr.mxu0 0.0
        %2124 = vmatpush1.xpose.msra.mxu0 0.0
        %2125 = vmatprep.subr.mxu0 0.0
        %2126 = vmatpush1.xpose.msra.mxu0 0.0
        %2127 = vmatprep.subr.mxu0 0.0
        %2128 = vmatpush1.xpose.msra.mxu0 0.0
        %2129 = vmatprep.subr.mxu0 0.0
        %2130 = vmatpush1.xpose.msra.mxu0 0.0
        %2131 = vmatprep.subr.mxu0 0.0
        %2132 = vmatpush1.xpose.msra.mxu0 0.0
        %2133 = vmatprep.subr.mxu0 0.0
        %2134 = vmatpush1.xpose.msra.mxu0 0.0
        %2135 = vmatprep.subr.mxu0 0.0
        %2136 = vmatpush1.xpose.msra.mxu0 0.0
        %2137 = vmatprep.subr.mxu0 0.0
        %2138 = vmatpush1.xpose.msra.mxu0 0.0
        %2139 = vmatprep.subr.mxu0 0.0
        %2140 = vmatpush1.xpose.msra.mxu0 0.0
        %2141 = vmatprep.subr.mxu0 0.0
        %2142 = vmatpush1.xpose.msra.mxu0 0.0
        %2143 = vmatprep.subr.mxu0 0.0
        %2144 = vmatpush1.xpose.msra.mxu0 0.0
        %2145 = vmatprep.subr.mxu0 0.0
        %2146 = vmatpush1.xpose.msra.mxu0 0.0
        %2147 = vmatprep.subr.mxu0 0.0
        %2148 = vmatpush1.xpose.msra.mxu0 0.0
        %2149 = vmatprep.subr.mxu0 0.0
        %2150 = vmatpush1.xpose.msra.mxu0 0.0
        %2151 = vmatprep.subr.mxu0 0.0
        %2152 = vmatpush1.xpose.msra.mxu0 0.0
        %2153 = vmatprep.mubr.f32.mxu0 0.0
        %2154 = vmatmul.mubr.f32.gmra.mrb[0].mxu0 %v2085
        %v2155 = vpop.f32.mrb[0].mxu0
        %v2156 = vadd.f32 0.0, %v2155
        %v2157 = vpop.f32.mrb[0].mxu0
        %2158 = vdwg.mxu0
        %2159 = vrot.lane.b32.xlu0 %v2004, 96
        %v2160 = vpop.permute.xlu0 %2159
        %v2161 = vsel %vm968, %v2004, 0
        %v2163 = vsel %vm968, %v2160, 0
        %2165 = vmatprep.subr.mxu0 0.0
        %2166 = vmatpush1.xpose.msra.mxu0 %v2163
        %2167 = vmatprep.subr.mxu0 0.0
        %2168 = vmatpush1.xpose.msra.mxu0 0.0
        %2169 = vmatprep.subr.mxu0 0.0
        %2170 = vmatpush1.xpose.msra.mxu0 0.0
        %2171 = vmatprep.subr.mxu0 0.0
        %2172 = vmatpush1.xpose.msra.mxu0 0.0
        %2173 = vmatprep.subr.mxu0 0.0
        %2174 = vmatpush1.xpose.msra.mxu0 0.0
        %2175 = vmatprep.subr.mxu0 0.0
        %2176 = vmatpush1.xpose.msra.mxu0 0.0
        %2177 = vmatprep.subr.mxu0 0.0
        %2178 = vmatpush1.xpose.msra.mxu0 0.0
        %2179 = vmatprep.subr.mxu0 0.0
        %2180 = vmatpush1.xpose.msra.mxu0 0.0
        %2181 = vmatprep.subr.mxu0 0.0
        %2182 = vmatpush1.xpose.msra.mxu0 0.0
        %2183 = vmatprep.subr.mxu0 0.0
        %2184 = vmatpush1.xpose.msra.mxu0 0.0
        %2185 = vmatprep.subr.mxu0 0.0
        %2186 = vmatpush1.xpose.msra.mxu0 0.0
        %2187 = vmatprep.subr.mxu0 0.0
        %2188 = vmatpush1.xpose.msra.mxu0 0.0
        %2189 = vmatprep.subr.mxu0 0.0
        %2190 = vmatpush1.xpose.msra.mxu0 0.0
        %2191 = vmatprep.subr.mxu0 0.0
        %2192 = vmatpush1.xpose.msra.mxu0 0.0
        %2193 = vmatprep.subr.mxu0 0.0
        %2194 = vmatpush1.xpose.msra.mxu0 0.0
        %2195 = vmatprep.subr.mxu0 0.0
        %2196 = vmatpush1.xpose.msra.mxu0 0.0
        %2197 = vmatprep.subr.mxu0 0.0
        %2198 = vmatpush1.xpose.msra.mxu0 0.0
        %2199 = vmatprep.subr.mxu0 0.0
        %2200 = vmatpush1.xpose.msra.mxu0 0.0
        %2201 = vmatprep.subr.mxu0 0.0
        %2202 = vmatpush1.xpose.msra.mxu0 0.0
        %2203 = vmatprep.subr.mxu0 0.0
        %2204 = vmatpush1.xpose.msra.mxu0 0.0
        %2205 = vmatprep.subr.mxu0 0.0
        %2206 = vmatpush1.xpose.msra.mxu0 0.0
        %2207 = vmatprep.subr.mxu0 0.0
        %2208 = vmatpush1.xpose.msra.mxu0 0.0
        %2209 = vmatprep.subr.mxu0 0.0
        %2210 = vmatpush1.xpose.msra.mxu0 0.0
        %2211 = vmatprep.subr.mxu0 0.0
        %2212 = vmatpush1.xpose.msra.mxu0 0.0
        %2213 = vmatprep.subr.mxu0 0.0
        %2214 = vmatpush1.xpose.msra.mxu0 0.0
        %2215 = vmatprep.subr.mxu0 0.0
        %2216 = vmatpush1.xpose.msra.mxu0 0.0
        %2217 = vmatprep.subr.mxu0 0.0
        %2218 = vmatpush1.xpose.msra.mxu0 0.0
        %2219 = vmatprep.subr.mxu0 0.0
        %2220 = vmatpush1.xpose.msra.mxu0 0.0
        %2221 = vmatprep.subr.mxu0 0.0
        %2222 = vmatpush1.xpose.msra.mxu0 0.0
        %2223 = vmatprep.subr.mxu0 0.0
        %2224 = vmatpush1.xpose.msra.mxu0 0.0
        %2225 = vmatprep.subr.mxu0 0.0
        %2226 = vmatpush1.xpose.msra.mxu0 0.0
        %2227 = vmatprep.subr.mxu0 0.0
        %2228 = vmatpush1.xpose.msra.mxu0 0.0
        %2229 = vmatprep.mubr.f32.mxu0 0.0
        %2230 = vmatmul.mubr.f32.gmra.mrb[0].mxu0 %v2161
        %v2231 = vpop.f32.mrb[0].mxu0
        %v2232 = vadd.f32 0.0, %v2231
        %v2233 = vpop.f32.mrb[0].mxu0
        %2234 = vdwg.mxu0
        %2235 = vrot.lane.b32.xlu0 %v2006, 96
        %v2236 = vpop.permute.xlu0 %2235
        %v2237 = vsel %vm968, %v2006, 0
        %v2239 = vsel %vm968, %v2236, 0
        %2241 = vmatprep.subr.mxu0 0.0
        %2242 = vmatpush1.xpose.msra.mxu0 %v2239
        %2243 = vmatprep.subr.mxu0 0.0
        %2244 = vmatpush1.xpose.msra.mxu0 0.0
        %2245 = vmatprep.subr.mxu0 0.0
        %2246 = vmatpush1.xpose.msra.mxu0 0.0
        %2247 = vmatprep.subr.mxu0 0.0
        %2248 = vmatpush1.xpose.msra.mxu0 0.0
        %2249 = vmatprep.subr.mxu0 0.0
        %2250 = vmatpush1.xpose.msra.mxu0 0.0
        %2251 = vmatprep.subr.mxu0 0.0
        %2252 = vmatpush1.xpose.msra.mxu0 0.0
        %2253 = vmatprep.subr.mxu0 0.0
        %2254 = vmatpush1.xpose.msra.mxu0 0.0
        %2255 = vmatprep.subr.mxu0 0.0
        %2256 = vmatpush1.xpose.msra.mxu0 0.0
        %2257 = vmatprep.subr.mxu0 0.0
        %2258 = vmatpush1.xpose.msra.mxu0 0.0
        %2259 = vmatprep.subr.mxu0 0.0
        %2260 = vmatpush1.xpose.msra.mxu0 0.0
        %2261 = vmatprep.subr.mxu0 0.0
        %2262 = vmatpush1.xpose.msra.mxu0 0.0
        %2263 = vmatprep.subr.mxu0 0.0
        %2264 = vmatpush1.xpose.msra.mxu0 0.0
        %2265 = vmatprep.subr.mxu0 0.0
        %2266 = vmatpush1.xpose.msra.mxu0 0.0
        %2267 = vmatprep.subr.mxu0 0.0
        %2268 = vmatpush1.xpose.msra.mxu0 0.0
        %2269 = vmatprep.subr.mxu0 0.0
        %2270 = vmatpush1.xpose.msra.mxu0 0.0
        %2271 = vmatprep.subr.mxu0 0.0
        %2272 = vmatpush1.xpose.msra.mxu0 0.0
        %2273 = vmatprep.subr.mxu0 0.0
        %2274 = vmatpush1.xpose.msra.mxu0 0.0
        %2275 = vmatprep.subr.mxu0 0.0
        %2276 = vmatpush1.xpose.msra.mxu0 0.0
        %2277 = vmatprep.subr.mxu0 0.0
        %2278 = vmatpush1.xpose.msra.mxu0 0.0
        %2279 = vmatprep.subr.mxu0 0.0
        %2280 = vmatpush1.xpose.msra.mxu0 0.0
        %2281 = vmatprep.subr.mxu0 0.0
        %2282 = vmatpush1.xpose.msra.mxu0 0.0
        %2283 = vmatprep.subr.mxu0 0.0
        %2284 = vmatpush1.xpose.msra.mxu0 0.0
        %2285 = vmatprep.subr.mxu0 0.0
        %2286 = vmatpush1.xpose.msra.mxu0 0.0
        %2287 = vmatprep.subr.mxu0 0.0
        %2288 = vmatpush1.xpose.msra.mxu0 0.0
        %2289 = vmatprep.subr.mxu0 0.0
        %2290 = vmatpush1.xpose.msra.mxu0 0.0
        %2291 = vmatprep.subr.mxu0 0.0
        %2292 = vmatpush1.xpose.msra.mxu0 0.0
        %2293 = vmatprep.subr.mxu0 0.0
        %2294 = vmatpush1.xpose.msra.mxu0 0.0
        %2295 = vmatprep.subr.mxu0 0.0
        %2296 = vmatpush1.xpose.msra.mxu0 0.0
        %2297 = vmatprep.subr.mxu0 0.0
        %2298 = vmatpush1.xpose.msra.mxu0 0.0
        %2299 = vmatprep.subr.mxu0 0.0
        %2300 = vmatpush1.xpose.msra.mxu0 0.0
        %2301 = vmatprep.subr.mxu0 0.0
        %2302 = vmatpush1.xpose.msra.mxu0 0.0
        %2303 = vmatprep.subr.mxu0 0.0
        %2304 = vmatpush1.xpose.msra.mxu0 0.0
        %2305 = vmatprep.mubr.f32.mxu0 0.0
        %2306 = vmatmul.mubr.f32.gmra.mrb[0].mxu0 %v2237
        %v2307 = vpop.f32.mrb[0].mxu0
        %v2308 = vadd.f32 0.0, %v2307
        %v2309 = vpop.f32.mrb[0].mxu0
        %2310 = vdwg.mxu0
        %v2311 = vmul.f32 %v2080, 0.35355338
        %v2312 = vmul.f32 %v2156, 0.35355338
        %v2313 = vmul.f32 %v2232, 0.35355338
        %v2314 = vmul.f32 %v2308, 0.35355338
        %v2315 = vadd.f32 %v2311, %v890
        %v2316 = vadd.f32 %v2312, %v890
        %v2317 = vadd.f32 %v2313, %v890
        %v2318 = vadd.f32 %v2314, %v890
        %v2319 = vsel %vm968, %v2315, -inf
        %2320 = vmax.xlane.f32.xlu0 %v2319
        %v2321 = vpop.xlane.xlu0 %2320
        %v2322 = vsel %vm968, %v2316, -inf
        %2323 = vmax.xlane.f32.xlu0 %v2322
        %v2324 = vpop.xlane.xlu0 %2323
        %v2325 = vsel %vm968, %v2317, -inf
        %2326 = vmax.xlane.f32.xlu0 %v2325
        %v2327 = vpop.xlane.xlu0 %2326
        %v2328 = vsel %vm968, %v2318, -inf
        %2329 = vmax.xlane.f32.xlu0 %v2328
        %v2330 = vpop.xlane.xlu0 %2329
        %v2331 = vsub.f32 %v2315, %v2321
        %v2332 = vsub.f32 %v2316, %v2324
        %v2333 = vsub.f32 %v2317, %v2327
        %v2334 = vsub.f32 %v2318, %v2330
        %v2335 = vmul.f32 %v2331, 1.442695
        %v2336 = vpow.pop %v2335
        %v2337 = vmul.f32 %v2332, 1.442695
        %v2338 = vpow.pop %v2337
        %v2339 = vmul.f32 %v2333, 1.442695
        %v2340 = vpow.pop %v2339
        %v2341 = vmul.f32 %v2334, 1.442695
        %v2342 = vpow.pop %v2341
        %v2343 = vsel %vm968, %v2336, 0.0
        %2344 = vadd.xlane.f32.xlu0 %v2343
        %v2345 = vpop.xlane.xlu0 %2344
        %v2346 = vsel %vm968, %v2338, 0.0
        %2347 = vadd.xlane.f32.xlu0 %v2346
        %v2348 = vpop.xlane.xlu0 %2347
        %v2349 = vsel %vm968, %v2340, 0.0
        %2350 = vadd.xlane.f32.xlu0 %v2349
        %v2351 = vpop.xlane.xlu0 %2350
        %v2352 = vsel %vm968, %v2342, 0.0
        %2353 = vadd.xlane.f32.xlu0 %v2352
        %v2354 = vpop.xlane.xlu0 %2353
        %v2355 = vrcp.pop %v2345
        %v2356 = vmul.f32 %v2336, %v2355
        %v2357 = vrcp.pop %v2348
        %v2358 = vmul.f32 %v2338, %v2357
        %v2359 = vrcp.pop %v2351
        %v2360 = vmul.f32 %v2340, %v2359
        %v2361 = vrcp.pop %v2354
        %v2362 = vmul.f32 %v2342, %v2361
        %2363 = vrot.lane.b32.xlu0 %v1995, 64
        %v2364 = vpop.permute.xlu0 %2363
        %v2367 = vsel %vm968, %v2356, 0
        %2369 = vmatprep.subr.mxu0 0.0
        %2370 = vmatpush1.msra.mxu0 %v2364
        %2371 = vmatprep.subr.mxu0 0.0
        %2372 = vmatpush1.msra.mxu0 0.0
        %2373 = vmatprep.subr.mxu0 0.0
        %2374 = vmatpush1.msra.mxu0 0.0
        %2375 = vmatprep.subr.mxu0 0.0
        %2376 = vmatpush1.msra.mxu0 0.0
        %2377 = vmatprep.subr.mxu0 0.0
        %2378 = vmatpush1.msra.mxu0 0.0
        %2379 = vmatprep.subr.mxu0 0.0
        %2380 = vmatpush1.msra.mxu0 0.0
        %2381 = vmatprep.subr.mxu0 0.0
        %2382 = vmatpush1.msra.mxu0 0.0
        %2383 = vmatprep.subr.mxu0 0.0
        %2384 = vmatpush1.msra.mxu0 0.0
        %2385 = vmatprep.subr.mxu0 0.0
        %2386 = vmatpush1.msra.mxu0 0.0
        %2387 = vmatprep.subr.mxu0 0.0
        %2388 = vmatpush1.msra.mxu0 0.0
        %2389 = vmatprep.subr.mxu0 0.0
        %2390 = vmatpush1.msra.mxu0 0.0
        %2391 = vmatprep.subr.mxu0 0.0
        %2392 = vmatpush1.msra.mxu0 0.0
        %2393 = vmatprep.subr.mxu0 0.0
        %2394 = vmatpush1.msra.mxu0 0.0
        %2395 = vmatprep.subr.mxu0 0.0
        %2396 = vmatpush1.msra.mxu0 0.0
        %2397 = vmatprep.subr.mxu0 0.0
        %2398 = vmatpush1.msra.mxu0 0.0
        %2399 = vmatprep.subr.mxu0 0.0
        %2400 = vmatpush1.msra.mxu0 0.0
        %2401 = vmatprep.subr.mxu0 0.0
        %2402 = vmatpush1.msra.mxu0 0.0
        %2403 = vmatprep.subr.mxu0 0.0
        %2404 = vmatpush1.msra.mxu0 0.0
        %2405 = vmatprep.subr.mxu0 0.0
        %2406 = vmatpush1.msra.mxu0 0.0
        %2407 = vmatprep.subr.mxu0 0.0
        %2408 = vmatpush1.msra.mxu0 0.0
        %2409 = vmatprep.subr.mxu0 0.0
        %2410 = vmatpush1.msra.mxu0 0.0
        %2411 = vmatprep.subr.mxu0 0.0
        %2412 = vmatpush1.msra.mxu0 0.0
        %2413 = vmatprep.subr.mxu0 0.0
        %2414 = vmatpush1.msra.mxu0 0.0
        %2415 = vmatprep.subr.mxu0 0.0
        %2416 = vmatpush1.msra.mxu0 0.0
        %2417 = vmatprep.subr.mxu0 0.0
        %2418 = vmatpush1.msra.mxu0 0.0
        %2419 = vmatprep.subr.mxu0 0.0
        %2420 = vmatpush1.msra.mxu0 0.0
        %2421 = vmatprep.subr.mxu0 0.0
        %2422 = vmatpush1.msra.mxu0 0.0
        %2423 = vmatprep.subr.mxu0 0.0
        %2424 = vmatpush1.msra.mxu0 0.0
        %2425 = vmatprep.subr.mxu0 0.0
        %2426 = vmatpush1.msra.mxu0 0.0
        %2427 = vmatprep.subr.mxu0 0.0
        %2428 = vmatpush1.msra.mxu0 0.0
        %2429 = vmatprep.subr.mxu0 0.0
        %2430 = vmatpush1.msra.mxu0 0.0
        %2431 = vmatprep.subr.mxu0 0.0
        %2432 = vmatpush1.msra.mxu0 0.0
        %2433 = vmatprep.mubr.f32.mxu0 0.0
        %2434 = vmatmul.mubr.f32.gmra.mrb[0].mxu0 %v2367
        %v2435 = vpop.f32.mrb[0].mxu0
        %v2436 = vadd.f32 0.0, %v2435
        %v2437 = vpop.f32.mrb[0].mxu0
        %2438 = vdwg.mxu0
        %2439 = vrot.lane.b32.xlu0 %v2002, 64
        %v2440 = vpop.permute.xlu0 %2439
        %v2443 = vsel %vm968, %v2358, 0
        %2445 = vmatprep.subr.mxu0 0.0
        %2446 = vmatpush1.msra.mxu0 %v2440
        %2447 = vmatprep.subr.mxu0 0.0
        %2448 = vmatpush1.msra.mxu0 0.0
        %2449 = vmatprep.subr.mxu0 0.0
        %2450 = vmatpush1.msra.mxu0 0.0
        %2451 = vmatprep.subr.mxu0 0.0
        %2452 = vmatpush1.msra.mxu0 0.0
        %2453 = vmatprep.subr.mxu0 0.0
        %2454 = vmatpush1.msra.mxu0 0.0
        %2455 = vmatprep.subr.mxu0 0.0
        %2456 = vmatpush1.msra.mxu0 0.0
        %2457 = vmatprep.subr.mxu0 0.0
        %2458 = vmatpush1.msra.mxu0 0.0
        %2459 = vmatprep.subr.mxu0 0.0
        %2460 = vmatpush1.msra.mxu0 0.0
        %2461 = vmatprep.subr.mxu0 0.0
        %2462 = vmatpush1.msra.mxu0 0.0
        %2463 = vmatprep.subr.mxu0 0.0
        %2464 = vmatpush1.msra.mxu0 0.0
        %2465 = vmatprep.subr.mxu0 0.0
        %2466 = vmatpush1.msra.mxu0 0.0
        %2467 = vmatprep.subr.mxu0 0.0
        %2468 = vmatpush1.msra.mxu0 0.0
        %2469 = vmatprep.subr.mxu0 0.0
        %2470 = vmatpush1.msra.mxu0 0.0
        %2471 = vmatprep.subr.mxu0 0.0
        %2472 = vmatpush1.msra.mxu0 0.0
        %2473 = vmatprep.subr.mxu0 0.0
        %2474 = vmatpush1.msra.mxu0 0.0
        %2475 = vmatprep.subr.mxu0 0.0
        %2476 = vmatpush1.msra.mxu0 0.0
        %2477 = vmatprep.subr.mxu0 0.0
        %2478 = vmatpush1.msra.mxu0 0.0
        %2479 = vmatprep.subr.mxu0 0.0
        %2480 = vmatpush1.msra.mxu0 0.0
        %2481 = vmatprep.subr.mxu0 0.0
        %2482 = vmatpush1.msra.mxu0 0.0
        %2483 = vmatprep.subr.mxu0 0.0
        %2484 = vmatpush1.msra.mxu0 0.0
        %2485 = vmatprep.subr.mxu0 0.0
        %2486 = vmatpush1.msra.mxu0 0.0
        %2487 = vmatprep.subr.mxu0 0.0
        %2488 = vmatpush1.msra.mxu0 0.0
        %2489 = vmatprep.subr.mxu0 0.0
        %2490 = vmatpush1.msra.mxu0 0.0
        %2491 = vmatprep.subr.mxu0 0.0
        %2492 = vmatpush1.msra.mxu0 0.0
        %2493 = vmatprep.subr.mxu0 0.0
        %2494 = vmatpush1.msra.mxu0 0.0
        %2495 = vmatprep.subr.mxu0 0.0
        %2496 = vmatpush1.msra.mxu0 0.0
        %2497 = vmatprep.subr.mxu0 0.0
        %2498 = vmatpush1.msra.mxu0 0.0
        %2499 = vmatprep.subr.mxu0 0.0
        %2500 = vmatpush1.msra.mxu0 0.0
        %2501 = vmatprep.subr.mxu0 0.0
        %2502 = vmatpush1.msra.mxu0 0.0
        %2503 = vmatprep.subr.mxu0 0.0
        %2504 = vmatpush1.msra.mxu0 0.0
        %2505 = vmatprep.subr.mxu0 0.0
        %2506 = vmatpush1.msra.mxu0 0.0
        %2507 = vmatprep.subr.mxu0 0.0
        %2508 = vmatpush1.msra.mxu0 0.0
        %2509 = vmatprep.mubr.f32.mxu0 0.0
        %2510 = vmatmul.mubr.f32.gmra.mrb[0].mxu0 %v2443
        %v2511 = vpop.f32.mrb[0].mxu0
        %v2512 = vadd.f32 0.0, %v2511
        %v2513 = vpop.f32.mrb[0].mxu0
        %2514 = vdwg.mxu0
        %2515 = vrot.lane.b32.xlu0 %v2004, 64
        %v2516 = vpop.permute.xlu0 %2515
        %v2519 = vsel %vm968, %v2360, 0
        %2521 = vmatprep.subr.mxu0 0.0
        %2522 = vmatpush1.msra.mxu0 %v2516
        %2523 = vmatprep.subr.mxu0 0.0
        %2524 = vmatpush1.msra.mxu0 0.0
        %2525 = vmatprep.subr.mxu0 0.0
        %2526 = vmatpush1.msra.mxu0 0.0
        %2527 = vmatprep.subr.mxu0 0.0
        %2528 = vmatpush1.msra.mxu0 0.0
        %2529 = vmatprep.subr.mxu0 0.0
        %2530 = vmatpush1.msra.mxu0 0.0
        %2531 = vmatprep.subr.mxu0 0.0
        %2532 = vmatpush1.msra.mxu0 0.0
        %2533 = vmatprep.subr.mxu0 0.0
        %2534 = vmatpush1.msra.mxu0 0.0
        %2535 = vmatprep.subr.mxu0 0.0
        %2536 = vmatpush1.msra.mxu0 0.0
        %2537 = vmatprep.subr.mxu0 0.0
        %2538 = vmatpush1.msra.mxu0 0.0
        %2539 = vmatprep.subr.mxu0 0.0
        %2540 = vmatpush1.msra.mxu0 0.0
        %2541 = vmatprep.subr.mxu0 0.0
        %2542 = vmatpush1.msra.mxu0 0.0
        %2543 = vmatprep.subr.mxu0 0.0
        %2544 = vmatpush1.msra.mxu0 0.0
        %2545 = vmatprep.subr.mxu0 0.0
        %2546 = vmatpush1.msra.mxu0 0.0
        %2547 = vmatprep.subr.mxu0 0.0
        %2548 = vmatpush1.msra.mxu0 0.0
        %2549 = vmatprep.subr.mxu0 0.0
        %2550 = vmatpush1.msra.mxu0 0.0
        %2551 = vmatprep.subr.mxu0 0.0
        %2552 = vmatpush1.msra.mxu0 0.0
        %2553 = vmatprep.subr.mxu0 0.0
        %2554 = vmatpush1.msra.mxu0 0.0
        %2555 = vmatprep.subr.mxu0 0.0
        %2556 = vmatpush1.msra.mxu0 0.0
        %2557 = vmatprep.subr.mxu0 0.0
        %2558 = vmatpush1.msra.mxu0 0.0
        %2559 = vmatprep.subr.mxu0 0.0
        %2560 = vmatpush1.msra.mxu0 0.0
        %2561 = vmatprep.subr.mxu0 0.0
        %2562 = vmatpush1.msra.mxu0 0.0
        %2563 = vmatprep.subr.mxu0 0.0
        %2564 = vmatpush1.msra.mxu0 0.0
        %2565 = vmatprep.subr.mxu0 0.0
        %2566 = vmatpush1.msra.mxu0 0.0
        %2567 = vmatprep.subr.mxu0 0.0
        %2568 = vmatpush1.msra.mxu0 0.0
        %2569 = vmatprep.subr.mxu0 0.0
        %2570 = vmatpush1.msra.mxu0 0.0
        %2571 = vmatprep.subr.mxu0 0.0
        %2572 = vmatpush1.msra.mxu0 0.0
        %2573 = vmatprep.subr.mxu0 0.0
        %2574 = vmatpush1.msra.mxu0 0.0
        %2575 = vmatprep.subr.mxu0 0.0
        %2576 = vmatpush1.msra.mxu0 0.0
        %2577 = vmatprep.subr.mxu0 0.0
        %2578 = vmatpush1.msra.mxu0 0.0
        %2579 = vmatprep.subr.mxu0 0.0
        %2580 = vmatpush1.msra.mxu0 0.0
        %2581 = vmatprep.subr.mxu0 0.0
        %2582 = vmatpush1.msra.mxu0 0.0
        %2583 = vmatprep.subr.mxu0 0.0
        %2584 = vmatpush1.msra.mxu0 0.0
        %2585 = vmatprep.mubr.f32.mxu0 0.0
        %2586 = vmatmul.mubr.f32.gmra.mrb[0].mxu0 %v2519
        %v2587 = vpop.f32.mrb[0].mxu0
        %v2588 = vadd.f32 0.0, %v2587
        %v2589 = vpop.f32.mrb[0].mxu0
        %2590 = vdwg.mxu0
        %2591 = vrot.lane.b32.xlu0 %v2006, 64
        %v2592 = vpop.permute.xlu0 %2591
        %v2595 = vsel %vm968, %v2362, 0
        %2597 = vmatprep.subr.mxu0 0.0
        %2598 = vmatpush1.msra.mxu0 %v2592
        %2599 = vmatprep.subr.mxu0 0.0
        %2600 = vmatpush1.msra.mxu0 0.0
        %2601 = vmatprep.subr.mxu0 0.0
        %2602 = vmatpush1.msra.mxu0 0.0
        %2603 = vmatprep.subr.mxu0 0.0
        %2604 = vmatpush1.msra.mxu0 0.0
        %2605 = vmatprep.subr.mxu0 0.0
        %2606 = vmatpush1.msra.mxu0 0.0
        %2607 = vmatprep.subr.mxu0 0.0
        %2608 = vmatpush1.msra.mxu0 0.0
        %2609 = vmatprep.subr.mxu0 0.0
        %2610 = vmatpush1.msra.mxu0 0.0
        %2611 = vmatprep.subr.mxu0 0.0
        %2612 = vmatpush1.msra.mxu0 0.0
        %2613 = vmatprep.subr.mxu0 0.0
        %2614 = vmatpush1.msra.mxu0 0.0
        %2615 = vmatprep.subr.mxu0 0.0
        %2616 = vmatpush1.msra.mxu0 0.0
        %2617 = vmatprep.subr.mxu0 0.0
        %2618 = vmatpush1.msra.mxu0 0.0
        %2619 = vmatprep.subr.mxu0 0.0
        %2620 = vmatpush1.msra.mxu0 0.0
        %2621 = vmatprep.subr.mxu0 0.0
        %2622 = vmatpush1.msra.mxu0 0.0
        %2623 = vmatprep.subr.mxu0 0.0
        %2624 = vmatpush1.msra.mxu0 0.0
        %2625 = vmatprep.subr.mxu0 0.0
        %2626 = vmatpush1.msra.mxu0 0.0
        %2627 = vmatprep.subr.mxu0 0.0
        %2628 = vmatpush1.msra.mxu0 0.0
        %2629 = vmatprep.subr.mxu0 0.0
        %2630 = vmatpush1.msra.mxu0 0.0
        %2631 = vmatprep.subr.mxu0 0.0
        %2632 = vmatpush1.msra.mxu0 0.0
        %2633 = vmatprep.subr.mxu0 0.0
        %2634 = vmatpush1.msra.mxu0 0.0
        %2635 = vmatprep.subr.mxu0 0.0
        %2636 = vmatpush1.msra.mxu0 0.0
        %2637 = vmatprep.subr.mxu0 0.0
        %2638 = vmatpush1.msra.mxu0 0.0
        %2639 = vmatprep.subr.mxu0 0.0
        %2640 = vmatpush1.msra.mxu0 0.0
        %2641 = vmatprep.subr.mxu0 0.0
        %2642 = vmatpush1.msra.mxu0 0.0
        %2643 = vmatprep.subr.mxu0 0.0
        %2644 = vmatpush1.msra.mxu0 0.0
        %2645 = vmatprep.subr.mxu0 0.0
        %2646 = vmatpush1.msra.mxu0 0.0
        %2647 = vmatprep.subr.mxu0 0.0
        %2648 = vmatpush1.msra.mxu0 0.0
        %2649 = vmatprep.subr.mxu0 0.0
        %2650 = vmatpush1.msra.mxu0 0.0
        %2651 = vmatprep.subr.mxu0 0.0
        %2652 = vmatpush1.msra.mxu0 0.0
        %2653 = vmatprep.subr.mxu0 0.0
        %2654 = vmatpush1.msra.mxu0 0.0
        %2655 = vmatprep.subr.mxu0 0.0
        %2656 = vmatpush1.msra.mxu0 0.0
        %2657 = vmatprep.subr.mxu0 0.0
        %2658 = vmatpush1.msra.mxu0 0.0
        %2659 = vmatprep.subr.mxu0 0.0
        %2660 = vmatpush1.msra.mxu0 0.0
        %2661 = vmatprep.mubr.f32.mxu0 0.0
        %2662 = vmatmul.mubr.f32.gmra.mrb[0].mxu0 %v2595
        %v2663 = vpop.f32.mrb[0].mxu0
        %v2664 = vadd.f32 0.0, %v2663
        %v2665 = vpop.f32.mrb[0].mxu0
        %2666 = vdwg.mxu0
        %2668 = vrot.lane.b32.xlu0 %v2512, 8
        %v2669 = vpop.permute.xlu0 %2668
        %2672 = vrot.lane.b32.xlu0 %v2588, 16
        %v2673 = vpop.permute.xlu0 %2672
        %2676 = vrot.lane.b32.xlu0 %v2664, 24
        %v2677 = vpop.permute.xlu0 %2676
        %v2679 = vsel %vm968, %v2436, %v2669
        %v2680 = vsel %vm1640, %v2679, %v2673
        %v2681 = vsel %vm1642, %v2680, %v2677
        %v2682 = vpack.c.bf16 %v2681, %v2681
        %s2683 = scalar_lea.vmem %s10, 16
        %v2684 = vld [vmem:[%s2683] sm:$0xf]
        %v2685 = vld [vmem:[%s2683 + $0x4] sm:$0xf]
        %v2686 = vld [vmem:[%s2683 + $0x8] sm:$0xf]
        %v2687 = vld [vmem:[%s2683 + $0xc] sm:$0xf]
        %s2688 = scalar_lea.vmem %s11, 1
        %v2689 = vld [vmem:[%s2688] sm:$0x1]
        %v2691 = vlaneseq
        %v2692 = vshrl.u32 %v2691, 7
        %v2693 = vsub.s32 0, %v2692
        %v2694 = vrot.slane %v2689, %v2693
        %v2700 = vunpack.c.l.b16 %v2684
        %v2701 = vunpack.c.l.b16 %v2685
        %v2702 = vunpack.c.l.b16 %v2686
        %v2703 = vunpack.c.l.b16 %v2687
        %v2704 = vpack.c.b16 %v2701, %v2700
        %v2705 = vpack.c.b16 %v2703, %v2702
        %v2709 = vsel %vm852, %v2682, 0
        %2711 = vmatprep.subr.bf16.mxu0 0
        %2712 = vmatpush1.bf16.msra.mxu0 %v2704
        %2713 = vmatprep.subr.bf16.mxu0 0
        %2714 = vmatpush1.bf16.msra.mxu0 %v2705
        %2715 = vmatprep.subr.bf16.mxu0 0
        %2716 = vmatpush1.bf16.msra.mxu0 0
        %2717 = vmatprep.subr.bf16.mxu0 0
        %2718 = vmatpush1.bf16.msra.mxu0 0
        %2719 = vmatprep.subr.bf16.mxu0 0
        %2720 = vmatpush1.bf16.msra.mxu0 0
        %2721 = vmatprep.subr.bf16.mxu0 0
        %2722 = vmatpush1.bf16.msra.mxu0 0
        %2723 = vmatprep.subr.bf16.mxu0 0
        %2724 = vmatpush1.bf16.msra.mxu0 0
        %2725 = vmatprep.subr.bf16.mxu0 0
        %2726 = vmatpush1.bf16.msra.mxu0 0
        %2727 = vmatprep.subr.bf16.mxu0 0
        %2728 = vmatpush1.bf16.msra.mxu0 0
        %2729 = vmatprep.subr.bf16.mxu0 0
        %2730 = vmatpush1.bf16.msra.mxu0 0
        %2731 = vmatprep.subr.bf16.mxu0 0
        %2732 = vmatpush1.bf16.msra.mxu0 0
        %2733 = vmatprep.subr.bf16.mxu0 0
        %2734 = vmatpush1.bf16.msra.mxu0 0
        %2735 = vmatprep.subr.bf16.mxu0 0
        %2736 = vmatpush1.bf16.msra.mxu0 0
        %2737 = vmatprep.subr.bf16.mxu0 0
        %2738 = vmatpush1.bf16.msra.mxu0 0
        %2739 = vmatprep.subr.bf16.mxu0 0
        %2740 = vmatpush1.bf16.msra.mxu0 0
        %2741 = vmatprep.subr.bf16.mxu0 0
        %2742 = vmatpush1.bf16.msra.mxu0 0
        %2743 = vmatprep.mubr.bf16.mxu0 0
        %2744 = vmatmul.mubr.bf16.gmra.mrb[0].mxu0 %v2709
        %v2745 = vpop.f32.mrb[0].mxu0
        %v2746 = vadd.f32 %v2694, %v2745
        %v2747 = vpop.f32.mrb[0].mxu0
        %v2748 = vpop.f32.mrb[0].mxu0
        %v2749 = vpop.f32.mrb[0].mxu0
        %2750 = vdwg.mxu0
        %v2751 = vadd.f32 %v2746, %v1930
        %s2752 = scalar_lea.vmem %s12, 1
        %v2753 = vld [vmem:[%s2752] sm:$0x1]
        %s2754 = scalar_lea.vmem %s13, 1
        %v2755 = vld [vmem:[%s2754] sm:$0x1]
        %v2756 = vsel %vm852, %v2751, 0.0
        %2757 = vadd.xlane.f32.xlu0 %v2756
        %v2758 = vpop.xlane.xlu0 %2757
        %v2759 = vmul.f32 %v2758, %v856
        %v2760 = vmul.f32 %v2751, %v2751
        %v2761 = vsel %vm852, %v2760, 0.0
        %2762 = vadd.xlane.f32.xlu0 %v2761
        %v2763 = vpop.xlane.xlu0 %2762
        %v2764 = vmul.f32 %v2763, %v856
        %v2765 = vmul.f32 %v2759, %v2759
        %v2766 = vsub.f32 %v2764, %v2765
        %v2767 = vsub.f32 %v2751, %v2759
        %v2768 = vadd.f32 %v2766, 1e-12
        %v2769 = vrsqrt.pop %v2768
        %v2770 = vmul.f32 %v2767, %v2769
        %v2772 = vlaneseq
        %v2773 = vshrl.u32 %v2772, 7
        %v2774 = vsub.s32 0, %v2773
        %v2775 = vrot.slane %v2753, %v2774
        %v2777 = vmul.f32 %v2770, %v2775
        %v2779 = vlaneseq
        %v2780 = vshrl.u32 %v2779, 7
        %v2781 = vsub.s32 0, %v2780
        %v2782 = vrot.slane %v2755, %v2781
        %v2784 = vadd.f32 %v2777, %v2782
        %v2785 = vpack.c.bf16 %v2784, %v2784
        %s2786 = scalar_lea.vmem %s14, 16
        %v2787 = vld [vmem:[%s2786] sm:$0xf]
        %v2788 = vld [vmem:[%s2786 + $0x4] sm:$0xf]
        %v2789 = vld [vmem:[%s2786 + $0x8] sm:$0xf]
        %v2790 = vld [vmem:[%s2786 + $0xc] sm:$0xf]
        %s2791 = scalar_lea.vmem %s15, 1
        %v2792 = vld [vmem:[%s2791] sm:$0x1]
        %v2794 = vlaneseq
        %v2795 = vshrl.u32 %v2794, 7
        %v2796 = vsub.s32 0, %v2795
        %v2797 = vrot.slane %v2792, %v2796
        %v2803 = vunpack.c.l.b16 %v2787
        %v2804 = vunpack.c.l.b16 %v2788
        %v2805 = vunpack.c.l.b16 %v2789
        %v2806 = vunpack.c.l.b16 %v2790
        %v2807 = vpack.c.b16 %v2804, %v2803
        %v2808 = vpack.c.b16 %v2806, %v2805
        %v2812 = vsel %vm852, %v2785, 0
        %2814 = vmatprep.subr.bf16.mxu0 0
        %2815 = vmatpush1.bf16.msra.mxu0 %v2807
        %2816 = vmatprep.subr.bf16.mxu0 0
        %2817 = vmatpush1.bf16.msra.mxu0 %v2808
        %2818 = vmatprep.subr.bf16.mxu0 0
        %2819 = vmatpush1.bf16.msra.mxu0 0
        %2820 = vmatprep.subr.bf16.mxu0 0
        %2821 = vmatpush1.bf16.msra.mxu0 0
        %2822 = vmatprep.subr.bf16.mxu0 0
        %2823 = vmatpush1.bf16.msra.mxu0 0
        %2824 = vmatprep.subr.bf16.mxu0 0
        %2825 = vmatpush1.bf16.msra.mxu0 0
        %2826 = vmatprep.subr.bf16.mxu0 0
        %2827 = vmatpush1.bf16.msra.mxu0 0
        %2828 = vmatprep.subr.bf16.mxu0 0
        %2829 = vmatpush1.bf16.msra.mxu0 0
        %2830 = vmatprep.subr.bf16.mxu0 0
        %2831 = vmatpush1.bf16.msra.mxu0 0
        %2832 = vmatprep.subr.bf16.mxu0 0
        %2833 = vmatpush1.bf16.msra.mxu0 0
        %2834 = vmatprep.subr.bf16.mxu0 0
        %2835 = vmatpush1.bf16.msra.mxu0 0
        %2836 = vmatprep.subr.bf16.mxu0 0
        %2837 = vmatpush1.bf16.msra.mxu0 0
        %2838 = vmatprep.subr.bf16.mxu0 0
        %2839 = vmatpush1.bf16.msra.mxu0 0
        %2840 = vmatprep.subr.bf16.mxu0 0
        %2841 = vmatpush1.bf16.msra.mxu0 0
        %2842 = vmatprep.subr.bf16.mxu0 0
        %2843 = vmatpush1.bf16.msra.mxu0 0
        %2844 = vmatprep.subr.bf16.mxu0 0
        %2845 = vmatpush1.bf16.msra.mxu0 0
        %2846 = vmatprep.mubr.bf16.mxu0 0
        %2847 = vmatmul.mubr.bf16.gmra.mrb[0].mxu0 %v2812
        %v2848 = vpop.f32.mrb[0].mxu0
        %v2849 = vadd.f32 %v2797, %v2848
        %v2850 = vpop.f32.mrb[0].mxu0
        %v2851 = vpop.f32.mrb[0].mxu0
        %v2852 = vpop.f32.mrb[0].mxu0
        %2853 = vdwg.mxu0
        %v2854 = vmul.f32 %v2849, 0.5
        %v2855 = vmul.f32 %v2849, 0.70710677
        %v2856 = verf.f32.pop %v2855
        %v2857 = vadd.f32 %v2856, 1.0
        %v2858 = vmul.f32 %v2854, %v2857
        %v2859 = vpack.c.bf16 %v2858, %v2858
        %s2860 = scalar_lea.vmem %s16, 32
        %v2861 = vld [vmem:[%s2860] sm:$0xf]
        %v2862 = vld [vmem:[%s2860 + $0x4] sm:$0xf]
        %v2863 = vld [vmem:[%s2860 + $0x8] sm:$0xf]
        %v2864 = vld [vmem:[%s2860 + $0xc] sm:$0xf]
        %v2865 = vld [vmem:[%s2860 + $0x10] sm:$0xf]
        %v2866 = vld [vmem:[%s2860 + $0x14] sm:$0xf]
        %v2867 = vld [vmem:[%s2860 + $0x18] sm:$0xf]
        %v2868 = vld [vmem:[%s2860 + $0x1c] sm:$0xf]
        %s2869 = scalar_lea.vmem %s17, 1
        %v2870 = vld [vmem:[%s2869] sm:$0x1]
        %v2872 = vlaneseq
        %v2873 = vshrl.u32 %v2872, 7
        %v2874 = vsub.s32 0, %v2873
        %v2875 = vrot.slane %v2870, %v2874
        %v2885 = vunpack.c.l.b16 %v2861
        %v2886 = vunpack.c.l.b16 %v2862
        %v2887 = vunpack.c.l.b16 %v2863
        %v2888 = vunpack.c.l.b16 %v2864
        %v2889 = vunpack.c.l.b16 %v2865
        %v2890 = vunpack.c.l.b16 %v2866
        %v2891 = vunpack.c.l.b16 %v2867
        %v2892 = vunpack.c.l.b16 %v2868
        %v2893 = vpack.c.b16 %v2886, %v2885
        %v2894 = vpack.c.b16 %v2888, %v2887
        %v2895 = vpack.c.b16 %v2890, %v2889
        %v2896 = vpack.c.b16 %v2892, %v2891
        %v2902 = vsel %vm1855, %v2859, 0
        %2904 = vmatprep.subr.bf16.mxu0 0
        %2905 = vmatpush1.bf16.msra.mxu0 %v2893
        %2906 = vmatprep.subr.bf16.mxu0 0
        %2907 = vmatpush1.bf16.msra.mxu0 %v2894
        %2908 = vmatprep.subr.bf16.mxu0 0
        %2909 = vmatpush1.bf16.msra.mxu0 %v2895
        %2910 = vmatprep.subr.bf16.mxu0 0
        %2911 = vmatpush1.bf16.msra.mxu0 %v2896
        %2912 = vmatprep.subr.bf16.mxu0 0
        %2913 = vmatpush1.bf16.msra.mxu0 0
        %2914 = vmatprep.subr.bf16.mxu0 0
        %2915 = vmatpush1.bf16.msra.mxu0 0
        %2916 = vmatprep.subr.bf16.mxu0 0
        %2917 = vmatpush1.bf16.msra.mxu0 0
        %2918 = vmatprep.subr.bf16.mxu0 0
        %2919 = vmatpush1.bf16.msra.mxu0 0
        %2920 = vmatprep.subr.bf16.mxu0 0
        %2921 = vmatpush1.bf16.msra.mxu0 0
        %2922 = vmatprep.subr.bf16.mxu0 0
        %2923 = vmatpush1.bf16.msra.mxu0 0
        %2924 = vmatprep.subr.bf16.mxu0 0
        %2925 = vmatpush1.bf16.msra.mxu0 0
        %2926 = vmatprep.subr.bf16.mxu0 0
        %2927 = vmatpush1.bf16.msra.mxu0 0
        %2928 = vmatprep.subr.bf16.mxu0 0
        %2929 = vmatpush1.bf16.msra.mxu0 0
        %2930 = vmatprep.subr.bf16.mxu0 0
        %2931 = vmatpush1.bf16.msra.mxu0 0
        %2932 = vmatprep.subr.bf16.mxu0 0
        %2933 = vmatpush1.bf16.msra.mxu0 0
        %2934 = vmatprep.subr.bf16.mxu0 0
        %2935 = vmatpush1.bf16.msra.mxu0 0
        %2936 = vmatprep.mubr.bf16.mxu0 0
        %2937 = vmatmul.mubr.bf16.gmra.mrb[0].mxu0 %v2902
        %v2938 = vpop.f32.mrb[0].mxu0
        %v2939 = vadd.f32 %v2875, %v2938
        %v2940 = vpop.f32.mrb[0].mxu0
        %v2941 = vpop.f32.mrb[0].mxu0
        %v2942 = vpop.f32.mrb[0].mxu0
        %2943 = vdwg.mxu0
        %v2944 = vadd.f32 %v2939, %v2784
        %s2945 = scalar_lea.vmem %s18, 1
        %v2946 = vld [vmem:[%s2945] sm:$0x1]
        %s2947 = scalar_lea.vmem %s19, 1
        %v2948 = vld [vmem:[%s2947] sm:$0x1]
        %v2949 = vsel %vm852, %v2944, 0.0
        %2950 = vadd.xlane.f32.xlu0 %v2949
        %v2951 = vpop.xlane.xlu0 %2950
        %v2952 = vmul.f32 %v2951, %v856
        %v2953 = vmul.f32 %v2944, %v2944
        %v2954 = vsel %vm852, %v2953, 0.0
        %2955 = vadd.xlane.f32.xlu0 %v2954
        %v2956 = vpop.xlane.xlu0 %2955
        %v2957 = vmul.f32 %v2956, %v856
        %v2958 = vmul.f32 %v2952, %v2952
        %v2959 = vsub.f32 %v2957, %v2958
        %v2960 = vsub.f32 %v2944, %v2952
        %v2961 = vadd.f32 %v2959, 1e-12
        %v2962 = vrsqrt.pop %v2961
        %v2963 = vmul.f32 %v2960, %v2962
        %v2965 = vlaneseq
        %v2966 = vshrl.u32 %v2965, 7
        %v2967 = vsub.s32 0, %v2966
        %v2968 = vrot.slane %v2946, %v2967
        %v2970 = vmul.f32 %v2963, %v2968
        %v2972 = vlaneseq
        %v2973 = vshrl.u32 %v2972, 7
        %v2974 = vsub.s32 0, %v2973
        %v2975 = vrot.slane %v2948, %v2974
        %v2977 = vadd.f32 %v2970, %v2975
        %v2978 = vpack.c.bf16 %v2977, %v2977
        %v2979 = vld [vmem:[%s20] sm:$0xf]
        %v2980 = vld [vmem:[%s20 + $0x4] sm:$0xf]
        %v2981 = vld [vmem:[%s20 + $0x8] sm:$0xf]
        %v2982 = vld [vmem:[%s20 + $0xc] sm:$0xf]
        %v2983 = vld [vmem:[%s21] sm:$0x1]
        %v2988 = vunpack.c.l.b16 %v2979
        %v2989 = vunpack.c.l.b16 %v2980
        %v2990 = vunpack.c.l.b16 %v2981
        %v2991 = vunpack.c.l.b16 %v2982
        %v2992 = vpack.c.b16 %v2989, %v2988
        %v2993 = vpack.c.b16 %v2991, %v2990
        %v2997 = vsel %vm852, %v2978, 0
        %2999 = vmatprep.subr.bf16.mxu0 0
        %3000 = vmatpush1.bf16.msra.mxu0 %v2992
        %3001 = vmatprep.subr.bf16.mxu0 0
        %3002 = vmatpush1.bf16.msra.mxu0 %v2993
        %3003 = vmatprep.subr.bf16.mxu0 0
        %3004 = vmatpush1.bf16.msra.mxu0 0
        %3005 = vmatprep.subr.bf16.mxu0 0
        %3006 = vmatpush1.bf16.msra.mxu0 0
        %3007 = vmatprep.subr.bf16.mxu0 0
        %3008 = vmatpush1.bf16.msra.mxu0 0
        %3009 = vmatprep.subr.bf16.mxu0 0
        %3010 = vmatpush1.bf16.msra.mxu0 0
        %3011 = vmatprep.subr.bf16.mxu0 0
        %3012 = vmatpush1.bf16.msra.mxu0 0
        %3013 = vmatprep.subr.bf16.mxu0 0
        %3014 = vmatpush1.bf16.msra.mxu0 0
        %3015 = vmatprep.subr.bf16.mxu0 0
        %3016 = vmatpush1.bf16.msra.mxu0 0
        %3017 = vmatprep.subr.bf16.mxu0 0
        %3018 = vmatpush1.bf16.msra.mxu0 0
        %3019 = vmatprep.subr.bf16.mxu0 0
        %3020 = vmatpush1.bf16.msra.mxu0 0
        %3021 = vmatprep.subr.bf16.mxu0 0
        %3022 = vmatpush1.bf16.msra.mxu0 0
        %3023 = vmatprep.subr.bf16.mxu0 0
        %3024 = vmatpush1.bf16.msra.mxu0 0
        %3025 = vmatprep.subr.bf16.mxu0 0
        %3026 = vmatpush1.bf16.msra.mxu0 0
        %3027 = vmatprep.subr.bf16.mxu0 0
        %3028 = vmatpush1.bf16.msra.mxu0 0
        %3029 = vmatprep.subr.bf16.mxu0 0
        %3030 = vmatpush1.bf16.msra.mxu0 0
        %3031 = vmatprep.mubr.bf16.mxu0 0
        %3032 = vmatmul.mubr.bf16.gmra.mrb[0].mxu0 %v2997
        %v3033 = vpop.f32.mrb[0].mxu0
        %v3034 = vadd.f32 %v2983, %v3033
        %v3035 = vpop.f32.mrb[0].mxu0
        %v3036 = vpop.f32.mrb[0].mxu0
        %v3037 = vpop.f32.mrb[0].mxu0
        %3038 = vdwg.mxu0
        %3039 = vst [vmem:[%s697] sm:$0x1] %v3034
        %s3040 = sand.u32 %s521, 1
        %s3041 = scalar_lea.sflag [#allocation3], %s3040
        %s3042 = sand.u32 %s521, 1
        %s3043 = scalar_lea.vmem [#allocation2], %s3042
        // Predicated region
        $region109: #{tpu_custom_call.1} parent=107 // pred_check
          %p3044 = pneg %p531
        $region110: #{tpu_custom_call.1} parent=107 // pred_check_branch
          %3046 = sbr.rel (%p3044) target = $region112
        $region111: #{tpu_custom_call.1} parent=107 // pred_region
          %s3048 = ssub.s32 16, 16
          %3049 = vsyncadd %s3041, %s3048
          %s3050 = smul.addr %s36, 16
          %s3051 = scalar_lea.hbm %s22, %s3050
          %s3053 = sshll.u32 %s3043, 4
          %s3054 = int_to_ptr.vmem [resolvable:$true] %s3053
          %3056 = dma.vmem_to_hbm [thread:$0]  %s3054, 16, %s3051, %s3041
        $region112: #{tpu_custom_call.1} parent=107 // pred_fallthru
          _
      $region108: #{tpu_custom_call.1} parent=5 // pred_fallthru
        _
      %p3057 = scmp.le.s32.totalorder 2, %s31
      // Predicated region
      $region113: #{tpu_custom_call.1} parent=5 // pred_check
        %p3058 = pneg %p3057
      $region114: #{tpu_custom_call.1} parent=5 // pred_check_branch
        %3060 = sbr.rel (%p3058) target = $region116
      $region115: #{tpu_custom_call.1} parent=5 // pred_region
        %s3061 = ssub.s32 %s31, 2
        // Predicated region
        $region117: #{tpu_custom_call.1} parent=115 // pred_check
          %p3062 = pneg %p537
        $region118: #{tpu_custom_call.1} parent=115 // pred_check_branch
          %3064 = sbr.rel (%p3062) target = $region120
        $region119: #{tpu_custom_call.1} parent=115 // pred_region
          %s3065 = sand.u32 %s522, 1
          %s3066 = scalar_lea.sflag [#allocation3], %s3065
          %s3067 = sand.u32 %s522, 1
          %s3068 = scalar_lea.vmem [#allocation2], %s3067
          %3069 = dma.done %s3066, 16
        $region120: #{tpu_custom_call.1} parent=115 // pred_fallthru
          _
      $region116: #{tpu_custom_call.1} parent=5 // pred_fallthru
        _
    $region6: #{tpu_custom_call.1} parent=1 // loop_footer
      %s35 = sadd.s32 1, %s31
    $region7: #{tpu_custom_call.1} parent=1 // loop_footer_branch
      %30 = sbr.rel target = $region3
    $region8: #{tpu_custom_call.1} parent=1 // loop_exit
      _
    %3070 = vsyncpa [#allocation3], 1
    %s3071 = scalar_lea.sflag [#allocation3], 1
    %3072 = vsyncpa %s3071, 1

</llo_original>
